<compile_context>
chip_gen: v7x
topology: tpu7x:2x2x1
jax: 0.10.0
libtpu: 0.0.40
codegen_flags: <defaults>
</compile_context>

<pallas_src>
import functools
import numpy as np
import jax
import jax.numpy as jnp
from jax.experimental import pallas as pl
from jax.experimental.pallas import tpu as pltpu

SOFTPLUS_BETA = 100.0
SOFTPLUS_THRESHOLD = 20.0  # torch.nn.Softplus default threshold


def _softplus(x, beta=SOFTPLUS_BETA, threshold=SOFTPLUS_THRESHOLD):
    # torch.nn.Softplus(beta=100): (1/beta) * log(1 + exp(beta*x)),
    # reverting to the identity when beta*x > threshold.
    bx = beta * x
    safe = jnp.minimum(bx, threshold)
    return jnp.where(bx > threshold, x, jnp.log1p(jnp.exp(safe)) * (1.0 / beta))


def sdf_kernel(x_ref, *refs, num_lin, skip_in):
    """Feature-major MLP: activations (channels, TILE_N); weights (out, in)."""
    ws = refs[:num_lin]
    bs = refs[num_lin:2 * num_lin]
    o_ref = refs[2 * num_lin]

    x = x_ref[...]                     # (d_in, TILE_N); scale folded into W0 already
    h = x
    for l in range(num_lin):           # fully unrolled static MLP loop
        w = ws[l][...]                 # (out_dim, in_dim); scale / 1/sqrt(2) pre-folded
        b = bs[l][...]                 # (out_dim, 1), broadcasts along lanes
        if l in skip_in:
            # torch: x = cat([x, inputs], 1) / sqrt(2); x = lin(x)
            # Split matmul (identical math); 1/sqrt(2) already folded into w.
            pre = h.shape[0]
            h = (jnp.dot(w[:, :pre], h, preferred_element_type=jnp.float32)
                 + jnp.dot(w[:, pre:], x, preferred_element_type=jnp.float32)
                 + b)
        else:
            h = jnp.dot(w, h, preferred_element_type=jnp.float32) + b
        if l < num_lin - 1:            # activation on all but the last layer
            h = _softplus(h)
    # Column-0 / scale rescale is folded into the last layer -> plain dense store.
    o_ref[...] = h


def _fold_params(Ws, Bs, *, skip_in, scale, d_in):
    """Fold `scale`, the skip 1/sqrt(2), and the output column-0 rescale into
    the parameters (math identical to the PyTorch forward).  Ws[l]: (out, in)."""
    Ws = [jnp.asarray(w, jnp.float32) for w in Ws]
    Bs = [jnp.asarray(b, jnp.float32) for b in Bs]
    scale = float(scale)
    # Layer 0 consumes inputs = x*scale  ->  (scale*W0) @ x.
    Ws[0] = Ws[0] * scale
    for l in skip_in:
        pre = Ws[l].shape[1] - d_in
        w = Ws[l] / np.sqrt(2.0)                 # cat(...)/sqrt(2)
        w = w.at[:, pre:].multiply(scale)        # the `inputs` half sees raw x
        Ws[l] = w
    # Output: cat([y[:, :1]/scale, y[:, 1:]]) -> divide row 0 of W_last, b_last.
    Ws[-1] = Ws[-1].at[0, :].divide(scale)
    Bs[-1] = Bs[-1].at[0].divide(scale)
    Wk = [w.astype(jnp.float32) for w in Ws]
    Bk = [b.reshape(-1, 1).astype(jnp.float32) for b in Bs]
    return Wk, Bk


def sdf_forward(x, Ws, Bs, *, skip_in=(4,), scale=1.0, tile_n=2048):
    """x: (N, d_in); Ws[l]: (out_dim, in_dim) (PyTorch layout); Bs[l]: (out_dim,)."""
    N, d_in = x.shape
    d_out = Ws[-1].shape[0]
    num_lin = len(Ws)
    skip_in = tuple(skip_in)

    Wk, Bk = _fold_params(Ws, Bs, skip_in=skip_in, scale=scale, d_in=d_in)

    # Pad N to a multiple of tile_n (multiple of 128 -> lane-dense, unmasked
    # stores) and go feature-major: (d_in, N_pad).
    assert tile_n % 128 == 0
    n_pad = ((N + tile_n - 1) // tile_n) * tile_n
    xt = jnp.zeros((d_in, n_pad), jnp.float32).at[:, :N].set(
        x.T.astype(jnp.float32))

    grid = (n_pad // tile_n,)

    in_specs = [pl.BlockSpec((d_in, tile_n), lambda i: (0, i))]
    # Weights/biases: same block every grid step -> fetched once, VMEM-resident.
    in_specs += [pl.BlockSpec(w.shape, lambda i: (0, 0)) for w in Wk]
    in_specs += [pl.BlockSpec(b.shape, lambda i: (0, 0)) for b in Bk]
    out_spec = pl.BlockSpec((d_out, tile_n), lambda i: (0, i))

    flops = 2 * n_pad * sum(int(w.shape[0]) * int(w.shape[1]) for w in Wk)
    transcendentals = 2 * n_pad * sum(int(w.shape[0]) for w in Wk[:-1])  # exp + log1p
    bytes_accessed = 4 * (n_pad * (d_in + d_out)
                          + sum(int(np.prod(w.shape)) for w in Wk)
                          + sum(int(np.prod(b.shape)) for b in Bk))

    kernel = functools.partial(sdf_kernel, num_lin=num_lin, skip_in=skip_in)

    out_t = pl.pallas_call(
        kernel,
        out_shape=jax.ShapeDtypeStruct((d_out, n_pad), jnp.float32),
        grid=grid,
        in_specs=in_specs,
        out_specs=out_spec,
        compiler_params=pltpu.CompilerParams(
            dimension_semantics=("parallel",),        # v7x: shard N over 2 TCs
            vmem_limit_bytes=32 * 1024 * 1024),       # explicit, large headroom
        cost_estimate=pl.CostEstimate(
            flops=flops, transcendentals=transcendentals,
            bytes_accessed=bytes_accessed),
    )(xt, *Wk, *Bk)

    return out_t[:, :N].T                              # back to (N, d_out)


def init_sdf_params(key, d_in, d_out, d_hidden, n_layers, skip_in=(4,),
                    multires=0, bias=0.5, geometric_init=True,
                    inside_outside=False):
    """Deterministic re-implementation of SDFNetwork.__init__ parameter init.
    Returns PyTorch-layout params: W[l] is (out_dim, in_dim), b[l] is (out_dim,)."""
    # TODO(synk): multires > 0 (positional-encoding embedder) not wired up; we
    # use multires=0 so dims[0] == d_in and embed_fn_fine is None.
    assert multires == 0
    dims = [d_in] + [d_hidden] * n_layers + [d_out]
    num_layers = len(dims)
    Ws, Bs = [], []
    for l in range(num_layers - 1):
        in_dim = dims[l]
        out_dim = dims[l + 1] - dims[0] if (l + 1) in skip_in else dims[l + 1]
        key, sub = jax.random.split(key)
        if geometric_init:
            if l == num_layers - 2:
                mean = np.sqrt(np.pi) / np.sqrt(dims[l])
                if inside_outside:
                    mean = -mean
                W = mean + 1e-4 * jax.random.normal(sub, (out_dim, in_dim), jnp.float32)
                b = jnp.full((out_dim,), bias if inside_outside else -bias, jnp.float32)
            else:
                std = np.sqrt(2.0) / np.sqrt(out_dim)
                W = std * jax.random.normal(sub, (out_dim, in_dim), jnp.float32)
                b = jnp.zeros((out_dim,), jnp.float32)
        else:
            lim = 1.0 / np.sqrt(in_dim)
            W = jax.random.uniform(sub, (out_dim, in_dim), jnp.float32, -lim, lim)
            b = jnp.zeros((out_dim,), jnp.float32)
        # weight_norm: w_eff = g * v / ||v|| with g initialized to ||v|| per row,
        # so at init the effective weight equals v — nothing extra to do.
        Ws.append(W)
        Bs.append(b)
    return Ws, Bs


def sdf_reference(x, Ws, Bs, skip_in=(4,), scale=1.0):
    """Pure-JAX reference mirroring the PyTorch forward exactly (HIGHEST precision)."""
    inputs = x * scale
    h = inputs
    num_lin = len(Ws)
    for l in range(num_lin):
        if l in skip_in:
            h = jnp.concatenate([h, inputs], axis=1) / np.sqrt(2.0)
        h = jnp.dot(h, Ws[l].T, precision=jax.lax.Precision.HIGHEST) + Bs[l]
        if l < num_lin - 1:
            h = _softplus(h)
    return jnp.concatenate([h[:, :1] / scale, h[:, 1:]], axis=-1)


if __name__ == "__main__":
    # Small config consistent with SDFNetwork(d_in=3, d_out=5, d_hidden=32,
    # n_layers=6, skip_in=(4,), multires=0, bias=0.5).
    d_in, d_out, d_hidden, n_layers = 3, 5, 32, 6
    skip_in = (4,)

    key = jax.random.PRNGKey(0)
    key, kx = jax.random.split(key)
    Ws, Bs = init_sdf_params(key, d_in, d_out, d_hidden, n_layers,
                             skip_in=skip_in, multires=0, bias=0.5,
                             geometric_init=True, inside_outside=False)

    # Check 1: tiny batch, single tile, scale=1.
    N1, scale1 = 8, 1.0
    x1 = jax.random.normal(kx, (N1, d_in), jnp.float32)
    out1 = jax.block_until_ready(
        sdf_forward(x1, Ws, Bs, skip_in=skip_in, scale=scale1, tile_n=512))
    ref1 = sdf_reference(x1, Ws, Bs, skip_in=skip_in, scale=scale1)
    assert out1.shape == (N1, d_out)
    # Tolerance accounts for DEFAULT-precision (bf16 MXU) matmuls in the kernel
    # vs HIGHEST-precision f32 reference.
    np.testing.assert_allclose(np.asarray(out1), np.asarray(ref1),
                               rtol=5e-2, atol=5e-2)

    # Check 2: multi-tile grid with a padded last tile + non-unit scale
    # (exercises the tiled pipeline and the scale/skip/output-col folding).
    key, kx2 = jax.random.split(key)
    N2, scale2 = 1000, 3.0
    x2 = jax.random.normal(kx2, (N2, d_in), jnp.float32)
    out2 = jax.block_until_ready(
        sdf_forward(x2, Ws, Bs, skip_in=skip_in, scale=scale2, tile_n=256))
    ref2 = sdf_reference(x2, Ws, Bs, skip_in=skip_in, scale=scale2)
    assert out2.shape == (N2, d_out)
    np.testing.assert_allclose(np.asarray(out2), np.asarray(ref2),
                               rtol=5e-2, atol=5e-2)

    print("KERNEL_OK")
</pallas_src>

<mosaic_0001>
module attributes {stable_mosaic.version = 11 : i64} {
  func.func @sdf_kernel(%arg0: i32, %arg1: memref<3x512xf32, #tpu.memory_space<vmem>>, %arg2: memref<32x3xf32, #tpu.memory_space<vmem>>, %arg3: memref<32x32xf32, #tpu.memory_space<vmem>>, %arg4: memref<32x32xf32, #tpu.memory_space<vmem>>, %arg5: memref<29x32xf32, #tpu.memory_space<vmem>>, %arg6: memref<32x32xf32, #tpu.memory_space<vmem>>, %arg7: memref<32x32xf32, #tpu.memory_space<vmem>>, %arg8: memref<5x32xf32, #tpu.memory_space<vmem>>, %arg9: memref<32x1xf32, #tpu.memory_space<vmem>>, %arg10: memref<32x1xf32, #tpu.memory_space<vmem>>, %arg11: memref<32x1xf32, #tpu.memory_space<vmem>>, %arg12: memref<29x1xf32, #tpu.memory_space<vmem>>, %arg13: memref<32x1xf32, #tpu.memory_space<vmem>>, %arg14: memref<32x1xf32, #tpu.memory_space<vmem>>, %arg15: memref<5x1xf32, #tpu.memory_space<vmem>>, %arg16: memref<5x512xf32, #tpu.memory_space<vmem>>) attributes {dimension_semantics = [#tpu.dimension_semantics<parallel>], iteration_bounds = array<i64: 1>, scalar_prefetch = 0 : i64, scratch_operands = 0 : i64, tpu.core_type = #tpu.core_type<tc>, window_params = [{transform_indices = @transform_0, window_bounds = array<i64: 3, 512>}, {pipeline_mode = #tpu.pipeline_mode<synchronous>, transform_indices = @transform_1, window_bounds = array<i64: 32, 3>}, {pipeline_mode = #tpu.pipeline_mode<synchronous>, transform_indices = @transform_2, window_bounds = array<i64: 32, 32>}, {pipeline_mode = #tpu.pipeline_mode<synchronous>, transform_indices = @transform_3, window_bounds = array<i64: 32, 32>}, {pipeline_mode = #tpu.pipeline_mode<synchronous>, transform_indices = @transform_4, window_bounds = array<i64: 29, 32>}, {pipeline_mode = #tpu.pipeline_mode<synchronous>, transform_indices = @transform_5, window_bounds = array<i64: 32, 32>}, {pipeline_mode = #tpu.pipeline_mode<synchronous>, transform_indices = @transform_6, window_bounds = array<i64: 32, 32>}, {pipeline_mode = #tpu.pipeline_mode<synchronous>, transform_indices = @transform_7, window_bounds = array<i64: 5, 32>}, {pipeline_mode = #tpu.pipeline_mode<synchronous>, transform_indices = @transform_8, window_bounds = array<i64: 32, 1>}, {pipeline_mode = #tpu.pipeline_mode<synchronous>, transform_indices = @transform_9, window_bounds = array<i64: 32, 1>}, {pipeline_mode = #tpu.pipeline_mode<synchronous>, transform_indices = @transform_10, window_bounds = array<i64: 32, 1>}, {pipeline_mode = #tpu.pipeline_mode<synchronous>, transform_indices = @transform_11, window_bounds = array<i64: 29, 1>}, {pipeline_mode = #tpu.pipeline_mode<synchronous>, transform_indices = @transform_12, window_bounds = array<i64: 32, 1>}, {pipeline_mode = #tpu.pipeline_mode<synchronous>, transform_indices = @transform_13, window_bounds = array<i64: 32, 1>}, {pipeline_mode = #tpu.pipeline_mode<synchronous>, transform_indices = @transform_14, window_bounds = array<i64: 5, 1>}, {transform_indices = @transform_15, window_bounds = array<i64: 5, 512>}]} {
    %c0 = arith.constant 0 : index
    %c0_0 = arith.constant 0 : index
    %0 = vector.load %arg1[%c0, %c0_0] : memref<3x512xf32, #tpu.memory_space<vmem>>, vector<3x512xf32>
    %c0_1 = arith.constant 0 : index
    %c0_2 = arith.constant 0 : index
    %1 = vector.load %arg2[%c0_1, %c0_2] : memref<32x3xf32, #tpu.memory_space<vmem>>, vector<32x3xf32>
    %c0_3 = arith.constant 0 : index
    %c0_4 = arith.constant 0 : index
    %2 = vector.load %arg9[%c0_3, %c0_4] : memref<32x1xf32, #tpu.memory_space<vmem>>, vector<32x1xf32>
    %cst = arith.constant dense<0.000000e+00> : vector<32x512xf32>
    %3 = tpu.matmul %1, %0, %cst {dimension_numbers = #tpu.dot_dimension_numbers<[1], [0], [0], [1], [0, 0, 1, 1], [], []>} : vector<32x3xf32>, vector<3x512xf32>, vector<32x512xf32> -> vector<32x512xf32>
    %4 = vector.broadcast %2 : vector<32x1xf32> to vector<32x512xf32>
    %5 = arith.addf %3, %4 : vector<32x512xf32>
    %cst_5 = arith.constant 1.000000e+02 : f32
    %6 = vector.broadcast %cst_5 : f32 to vector<32x512xf32>
    %7 = arith.mulf %6, %5 : vector<32x512xf32>
    %cst_6 = arith.constant 2.000000e+01 : f32
    %8 = vector.broadcast %cst_6 : f32 to vector<32x512xf32>
    %9 = arith.minimumf %7, %8 : vector<32x512xf32>
    %cst_7 = arith.constant 2.000000e+01 : f32
    %10 = vector.broadcast %cst_7 : f32 to vector<32x512xf32>
    %11 = arith.cmpf ogt, %7, %10 : vector<32x512xf32>
    %12 = math.exp %9 : vector<32x512xf32>
    %13 = math.log1p %12 : vector<32x512xf32>
    %cst_8 = arith.constant 0.00999999977 : f32
    %14 = vector.broadcast %cst_8 : f32 to vector<32x512xf32>
    %15 = arith.mulf %13, %14 : vector<32x512xf32>
    %16 = arith.select %11, %5, %15 : vector<32x512xi1>, vector<32x512xf32>
    %c0_9 = arith.constant 0 : index
    %c0_10 = arith.constant 0 : index
    %17 = vector.load %arg3[%c0_9, %c0_10] : memref<32x32xf32, #tpu.memory_space<vmem>>, vector<32x32xf32>
    %c0_11 = arith.constant 0 : index
    %c0_12 = arith.constant 0 : index
    %18 = vector.load %arg10[%c0_11, %c0_12] : memref<32x1xf32, #tpu.memory_space<vmem>>, vector<32x1xf32>
    %cst_13 = arith.constant dense<0.000000e+00> : vector<32x512xf32>
    %19 = tpu.matmul %17, %16, %cst_13 {dimension_numbers = #tpu.dot_dimension_numbers<[1], [0], [0], [1], [0, 0, 1, 1], [], []>} : vector<32x32xf32>, vector<32x512xf32>, vector<32x512xf32> -> vector<32x512xf32>
    %20 = vector.broadcast %18 : vector<32x1xf32> to vector<32x512xf32>
    %21 = arith.addf %19, %20 : vector<32x512xf32>
    %cst_14 = arith.constant 1.000000e+02 : f32
    %22 = vector.broadcast %cst_14 : f32 to vector<32x512xf32>
    %23 = arith.mulf %22, %21 : vector<32x512xf32>
    %cst_15 = arith.constant 2.000000e+01 : f32
    %24 = vector.broadcast %cst_15 : f32 to vector<32x512xf32>
    %25 = arith.minimumf %23, %24 : vector<32x512xf32>
    %cst_16 = arith.constant 2.000000e+01 : f32
    %26 = vector.broadcast %cst_16 : f32 to vector<32x512xf32>
    %27 = arith.cmpf ogt, %23, %26 : vector<32x512xf32>
    %28 = math.exp %25 : vector<32x512xf32>
    %29 = math.log1p %28 : vector<32x512xf32>
    %cst_17 = arith.constant 0.00999999977 : f32
    %30 = vector.broadcast %cst_17 : f32 to vector<32x512xf32>
    %31 = arith.mulf %29, %30 : vector<32x512xf32>
    %32 = arith.select %27, %21, %31 : vector<32x512xi1>, vector<32x512xf32>
    %c0_18 = arith.constant 0 : index
    %c0_19 = arith.constant 0 : index
    %33 = vector.load %arg4[%c0_18, %c0_19] : memref<32x32xf32, #tpu.memory_space<vmem>>, vector<32x32xf32>
    %c0_20 = arith.constant 0 : index
    %c0_21 = arith.constant 0 : index
    %34 = vector.load %arg11[%c0_20, %c0_21] : memref<32x1xf32, #tpu.memory_space<vmem>>, vector<32x1xf32>
    %cst_22 = arith.constant dense<0.000000e+00> : vector<32x512xf32>
    %35 = tpu.matmul %33, %32, %cst_22 {dimension_numbers = #tpu.dot_dimension_numbers<[1], [0], [0], [1], [0, 0, 1, 1], [], []>} : vector<32x32xf32>, vector<32x512xf32>, vector<32x512xf32> -> vector<32x512xf32>
    %36 = vector.broadcast %34 : vector<32x1xf32> to vector<32x512xf32>
    %37 = arith.addf %35, %36 : vector<32x512xf32>
    %cst_23 = arith.constant 1.000000e+02 : f32
    %38 = vector.broadcast %cst_23 : f32 to vector<32x512xf32>
    %39 = arith.mulf %38, %37 : vector<32x512xf32>
    %cst_24 = arith.constant 2.000000e+01 : f32
    %40 = vector.broadcast %cst_24 : f32 to vector<32x512xf32>
    %41 = arith.minimumf %39, %40 : vector<32x512xf32>
    %cst_25 = arith.constant 2.000000e+01 : f32
    %42 = vector.broadcast %cst_25 : f32 to vector<32x512xf32>
    %43 = arith.cmpf ogt, %39, %42 : vector<32x512xf32>
    %44 = math.exp %41 : vector<32x512xf32>
    %45 = math.log1p %44 : vector<32x512xf32>
    %cst_26 = arith.constant 0.00999999977 : f32
    %46 = vector.broadcast %cst_26 : f32 to vector<32x512xf32>
    %47 = arith.mulf %45, %46 : vector<32x512xf32>
    %48 = arith.select %43, %37, %47 : vector<32x512xi1>, vector<32x512xf32>
    %c0_27 = arith.constant 0 : index
    %c0_28 = arith.constant 0 : index
    %49 = vector.load %arg5[%c0_27, %c0_28] : memref<29x32xf32, #tpu.memory_space<vmem>>, vector<29x32xf32>
    %c0_29 = arith.constant 0 : index
    %c0_30 = arith.constant 0 : index
    %50 = vector.load %arg12[%c0_29, %c0_30] : memref<29x1xf32, #tpu.memory_space<vmem>>, vector<29x1xf32>
    %cst_31 = arith.constant dense<0.000000e+00> : vector<29x512xf32>
    %51 = tpu.matmul %49, %48, %cst_31 {dimension_numbers = #tpu.dot_dimension_numbers<[1], [0], [0], [1], [0, 0, 1, 1], [], []>} : vector<29x32xf32>, vector<32x512xf32>, vector<29x512xf32> -> vector<29x512xf32>
    %52 = vector.broadcast %50 : vector<29x1xf32> to vector<29x512xf32>
    %53 = arith.addf %51, %52 : vector<29x512xf32>
    %cst_32 = arith.constant 1.000000e+02 : f32
    %54 = vector.broadcast %cst_32 : f32 to vector<29x512xf32>
    %55 = arith.mulf %54, %53 : vector<29x512xf32>
    %cst_33 = arith.constant 2.000000e+01 : f32
    %56 = vector.broadcast %cst_33 : f32 to vector<29x512xf32>
    %57 = arith.minimumf %55, %56 : vector<29x512xf32>
    %cst_34 = arith.constant 2.000000e+01 : f32
    %58 = vector.broadcast %cst_34 : f32 to vector<29x512xf32>
    %59 = arith.cmpf ogt, %55, %58 : vector<29x512xf32>
    %60 = math.exp %57 : vector<29x512xf32>
    %61 = math.log1p %60 : vector<29x512xf32>
    %cst_35 = arith.constant 0.00999999977 : f32
    %62 = vector.broadcast %cst_35 : f32 to vector<29x512xf32>
    %63 = arith.mulf %61, %62 : vector<29x512xf32>
    %64 = arith.select %59, %53, %63 : vector<29x512xi1>, vector<29x512xf32>
    %c0_36 = arith.constant 0 : index
    %c0_37 = arith.constant 0 : index
    %65 = vector.load %arg6[%c0_36, %c0_37] : memref<32x32xf32, #tpu.memory_space<vmem>>, vector<32x32xf32>
    %c0_38 = arith.constant 0 : index
    %c0_39 = arith.constant 0 : index
    %66 = vector.load %arg13[%c0_38, %c0_39] : memref<32x1xf32, #tpu.memory_space<vmem>>, vector<32x1xf32>
    %67 = vector.extract_strided_slice %65 {offsets = [0, 0], sizes = [32, 29], strides = [1, 1]} : vector<32x32xf32> to vector<32x29xf32>
    %cst_40 = arith.constant dense<0.000000e+00> : vector<32x512xf32>
    %68 = tpu.matmul %67, %64, %cst_40 {dimension_numbers = #tpu.dot_dimension_numbers<[1], [0], [0], [1], [0, 0, 1, 1], [], []>} : vector<32x29xf32>, vector<29x512xf32>, vector<32x512xf32> -> vector<32x512xf32>
    %69 = vector.extract_strided_slice %65 {offsets = [0, 29], sizes = [32, 3], strides = [1, 1]} : vector<32x32xf32> to vector<32x3xf32>
    %cst_41 = arith.constant dense<0.000000e+00> : vector<32x512xf32>
    %70 = tpu.matmul %69, %0, %cst_41 {dimension_numbers = #tpu.dot_dimension_numbers<[1], [0], [0], [1], [0, 0, 1, 1], [], []>} : vector<32x3xf32>, vector<3x512xf32>, vector<32x512xf32> -> vector<32x512xf32>
    %71 = arith.addf %68, %70 : vector<32x512xf32>
    %72 = vector.broadcast %66 : vector<32x1xf32> to vector<32x512xf32>
    %73 = arith.addf %71, %72 : vector<32x512xf32>
    %cst_42 = arith.constant 1.000000e+02 : f32
    %74 = vector.broadcast %cst_42 : f32 to vector<32x512xf32>
    %75 = arith.mulf %74, %73 : vector<32x512xf32>
    %cst_43 = arith.constant 2.000000e+01 : f32
    %76 = vector.broadcast %cst_43 : f32 to vector<32x512xf32>
    %77 = arith.minimumf %75, %76 : vector<32x512xf32>
    %cst_44 = arith.constant 2.000000e+01 : f32
    %78 = vector.broadcast %cst_44 : f32 to vector<32x512xf32>
    %79 = arith.cmpf ogt, %75, %78 : vector<32x512xf32>
    %80 = math.exp %77 : vector<32x512xf32>
    %81 = math.log1p %80 : vector<32x512xf32>
    %cst_45 = arith.constant 0.00999999977 : f32
    %82 = vector.broadcast %cst_45 : f32 to vector<32x512xf32>
    %83 = arith.mulf %81, %82 : vector<32x512xf32>
    %84 = arith.select %79, %73, %83 : vector<32x512xi1>, vector<32x512xf32>
    %c0_46 = arith.constant 0 : index
    %c0_47 = arith.constant 0 : index
    %85 = vector.load %arg7[%c0_46, %c0_47] : memref<32x32xf32, #tpu.memory_space<vmem>>, vector<32x32xf32>
    %c0_48 = arith.constant 0 : index
    %c0_49 = arith.constant 0 : index
    %86 = vector.load %arg14[%c0_48, %c0_49] : memref<32x1xf32, #tpu.memory_space<vmem>>, vector<32x1xf32>
    %cst_50 = arith.constant dense<0.000000e+00> : vector<32x512xf32>
    %87 = tpu.matmul %85, %84, %cst_50 {dimension_numbers = #tpu.dot_dimension_numbers<[1], [0], [0], [1], [0, 0, 1, 1], [], []>} : vector<32x32xf32>, vector<32x512xf32>, vector<32x512xf32> -> vector<32x512xf32>
    %88 = vector.broadcast %86 : vector<32x1xf32> to vector<32x512xf32>
    %89 = arith.addf %87, %88 : vector<32x512xf32>
    %cst_51 = arith.constant 1.000000e+02 : f32
    %90 = vector.broadcast %cst_51 : f32 to vector<32x512xf32>
    %91 = arith.mulf %90, %89 : vector<32x512xf32>
    %cst_52 = arith.constant 2.000000e+01 : f32
    %92 = vector.broadcast %cst_52 : f32 to vector<32x512xf32>
    %93 = arith.minimumf %91, %92 : vector<32x512xf32>
    %cst_53 = arith.constant 2.000000e+01 : f32
    %94 = vector.broadcast %cst_53 : f32 to vector<32x512xf32>
    %95 = arith.cmpf ogt, %91, %94 : vector<32x512xf32>
    %96 = math.exp %93 : vector<32x512xf32>
    %97 = math.log1p %96 : vector<32x512xf32>
    %cst_54 = arith.constant 0.00999999977 : f32
    %98 = vector.broadcast %cst_54 : f32 to vector<32x512xf32>
    %99 = arith.mulf %97, %98 : vector<32x512xf32>
    %100 = arith.select %95, %89, %99 : vector<32x512xi1>, vector<32x512xf32>
    %c0_55 = arith.constant 0 : index
    %c0_56 = arith.constant 0 : index
    %101 = vector.load %arg8[%c0_55, %c0_56] : memref<5x32xf32, #tpu.memory_space<vmem>>, vector<5x32xf32>
    %c0_57 = arith.constant 0 : index
    %c0_58 = arith.constant 0 : index
    %102 = vector.load %arg15[%c0_57, %c0_58] : memref<5x1xf32, #tpu.memory_space<vmem>>, vector<5x1xf32>
    %cst_59 = arith.constant dense<0.000000e+00> : vector<5x512xf32>
    %103 = tpu.matmul %101, %100, %cst_59 {dimension_numbers = #tpu.dot_dimension_numbers<[1], [0], [0], [1], [0, 0, 1, 1], [], []>} : vector<5x32xf32>, vector<32x512xf32>, vector<5x512xf32> -> vector<5x512xf32>
    %104 = vector.broadcast %102 : vector<5x1xf32> to vector<5x512xf32>
    %105 = arith.addf %103, %104 : vector<5x512xf32>
    %c0_60 = arith.constant 0 : index
    %c0_61 = arith.constant 0 : index
    %106 = vector.load %arg16[%c0_60, %c0_61] : memref<5x512xf32, #tpu.memory_space<vmem>>, vector<5x512xf32>
    tpu.vector_store %arg16[%c0_60, %c0_61], %105 {strides = array<i32>} : memref<5x512xf32, #tpu.memory_space<vmem>>, vector<5x512xf32>,
    return
  }
  func.func @transform_0(%arg0: i32) -> (i32, i32) {
    %c0_i32 = arith.constant 0 : i32
    %c0_i32_0 = arith.constant 0 : i32
    return %c0_i32, %arg0 : i32, i32
  }
  func.func @transform_1(%arg0: i32) -> (i32, i32) {
    %c0_i32 = arith.constant 0 : i32
    %c0_i32_0 = arith.constant 0 : i32
    %c0_i32_1 = arith.constant 0 : i32
    return %c0_i32, %c0_i32_0 : i32, i32
  }
  func.func @transform_2(%arg0: i32) -> (i32, i32) {
    %c0_i32 = arith.constant 0 : i32
    %c0_i32_0 = arith.constant 0 : i32
    %c0_i32_1 = arith.constant 0 : i32
    return %c0_i32, %c0_i32_0 : i32, i32
  }
  func.func @transform_3(%arg0: i32) -> (i32, i32) {
    %c0_i32 = arith.constant 0 : i32
    %c0_i32_0 = arith.constant 0 : i32
    %c0_i32_1 = arith.constant 0 : i32
    return %c0_i32, %c0_i32_0 : i32, i32
  }
  func.func @transform_4(%arg0: i32) -> (i32, i32) {
    %c0_i32 = arith.constant 0 : i32
    %c0_i32_0 = arith.constant 0 : i32
    %c0_i32_1 = arith.constant 0 : i32
    return %c0_i32, %c0_i32_0 : i32, i32
  }
  func.func @transform_5(%arg0: i32) -> (i32, i32) {
    %c0_i32 = arith.constant 0 : i32
    %c0_i32_0 = arith.constant 0 : i32
    %c0_i32_1 = arith.constant 0 : i32
    return %c0_i32, %c0_i32_0 : i32, i32
  }
  func.func @transform_6(%arg0: i32) -> (i32, i32) {
    %c0_i32 = arith.constant 0 : i32
    %c0_i32_0 = arith.constant 0 : i32
    %c0_i32_1 = arith.constant 0 : i32
    return %c0_i32, %c0_i32_0 : i32, i32
  }
  func.func @transform_7(%arg0: i32) -> (i32, i32) {
    %c0_i32 = arith.constant 0 : i32
    %c0_i32_0 = arith.constant 0 : i32
    %c0_i32_1 = arith.constant 0 : i32
    return %c0_i32, %c0_i32_0 : i32, i32
  }
  func.func @transform_8(%arg0: i32) -> (i32, i32) {
    %c0_i32 = arith.constant 0 : i32
    %c0_i32_0 = arith.constant 0 : i32
    %c0_i32_1 = arith.constant 0 : i32
    return %c0_i32, %c0_i32_0 : i32, i32
  }
  func.func @transform_9(%arg0: i32) -> (i32, i32) {
    %c0_i32 = arith.constant 0 : i32
    %c0_i32_0 = arith.constant 0 : i32
    %c0_i32_1 = arith.constant 0 : i32
    return %c0_i32, %c0_i32_0 : i32, i32
  }
  func.func @transform_10(%arg0: i32) -> (i32, i32) {
    %c0_i32 = arith.constant 0 : i32
    %c0_i32_0 = arith.constant 0 : i32
    %c0_i32_1 = arith.constant 0 : i32
    return %c0_i32, %c0_i32_0 : i32, i32
  }
  func.func @transform_11(%arg0: i32) -> (i32, i32) {
    %c0_i32 = arith.constant 0 : i32
    %c0_i32_0 = arith.constant 0 : i32
    %c0_i32_1 = arith.constant 0 : i32
    return %c0_i32, %c0_i32_0 : i32, i32
  }
  func.func @transform_12(%arg0: i32) -> (i32, i32) {
    %c0_i32 = arith.constant 0 : i32
    %c0_i32_0 = arith.constant 0 : i32
    %c0_i32_1 = arith.constant 0 : i32
    return %c0_i32, %c0_i32_0 : i32, i32
  }
  func.func @transform_13(%arg0: i32) -> (i32, i32) {
    %c0_i32 = arith.constant 0 : i32
    %c0_i32_0 = arith.constant 0 : i32
    %c0_i32_1 = arith.constant 0 : i32
    return %c0_i32, %c0_i32_0 : i32, i32
  }
  func.func @transform_14(%arg0: i32) -> (i32, i32) {
    %c0_i32 = arith.constant 0 : i32
    %c0_i32_0 = arith.constant 0 : i32
    %c0_i32_1 = arith.constant 0 : i32
    return %c0_i32, %c0_i32_0 : i32, i32
  }
  func.func @transform_15(%arg0: i32) -> (i32, i32) {
    %c0_i32 = arith.constant 0 : i32
    %c0_i32_0 = arith.constant 0 : i32
    return %c0_i32, %arg0 : i32, i32
  }
}

</mosaic_0001>

<llo_original>
// kernel: tpu_custom_call.1
$region0: #{tpu_custom_call.1}
  #allocation0 [shape = 'u32[]', space=smem, size = 0x4, offset = 0x4, fixed_abs, tag = 'smem constant byte address 0x4 - core index']
  #allocation1 [shape = 'u32[144,128]{1,0:T(1,128)}', space=vmem, size = 0x12000, scoped, tag = 'internal scratch']
  %s0 = inlined_call_operand.vmem [shape: f32[3,512], index: 0, kind: input, shape index: {}]
  %s1 = inlined_call_operand.vmem [shape: f32[32,3], index: 1, kind: input, shape index: {}]
  %s2 = inlined_call_operand.vmem [shape: f32[32,32], index: 2, kind: input, shape index: {}]
  %s3 = inlined_call_operand.vmem [shape: f32[32,32], index: 3, kind: input, shape index: {}]
  %s4 = inlined_call_operand.vmem [shape: f32[29,32], index: 4, kind: input, shape index: {}]
  %s5 = inlined_call_operand.vmem [shape: f32[32,32], index: 5, kind: input, shape index: {}]
  %s6 = inlined_call_operand.vmem [shape: f32[32,32], index: 6, kind: input, shape index: {}]
  %s7 = inlined_call_operand.vmem [shape: f32[5,32], index: 7, kind: input, shape index: {}]
  %s8 = inlined_call_operand.vmem [shape: f32[32,1], index: 8, kind: input, shape index: {}]
  %s9 = inlined_call_operand.vmem [shape: f32[32,1], index: 9, kind: input, shape index: {}]
  %s10 = inlined_call_operand.vmem [shape: f32[32,1], index: 10, kind: input, shape index: {}]
  %s11 = inlined_call_operand.vmem [shape: f32[29,1], index: 11, kind: input, shape index: {}]
  %s12 = inlined_call_operand.vmem [shape: f32[32,1], index: 12, kind: input, shape index: {}]
  %s13 = inlined_call_operand.vmem [shape: f32[32,1], index: 13, kind: input, shape index: {}]
  %s14 = inlined_call_operand.vmem [shape: f32[5,1], index: 14, kind: input, shape index: {}]
  %s15 = inlined_call_operand.hbm [shape: f32[5,512], index: 15, kind: output, shape index: {}]
  %s16 = sld [smem:[#allocation0]]
  $region70: #{tpu_custom_call.1} parent=0
    _
  %s18 = ssub.s32 1, %s16
  %s19 = scalar_select 0, %s18, %s16
  $region1: #{tpu_custom_call.1} parent=0
    #allocation2 [shape = 'u8[16384]{0}', space=vmem, size = 0x4000, scoped, tag = 'output window, operand 0, single buffered']
    #allocation3 [shape = 's32[1]{0}', space=sflag, size = 0x4, scoped, tag = 'scoped memory for tpu_custom_call.1']
    %20 = vsyncpa [#allocation3], 0
    // Predicated region
    $region2: #{tpu_custom_call.1} parent=1 // pred_check
      _
    $region3: #{tpu_custom_call.1} parent=1 // pred_check_branch
      %22 = sbr.rel (0) target = $region5
    $region4: #{tpu_custom_call.1} parent=1 // pred_region
      _
    $region5: #{tpu_custom_call.1} parent=1 // pred_fallthru
      _
    // Predicated region
    $region6: #{tpu_custom_call.1} parent=1 // pred_check
      _
    $region7: #{tpu_custom_call.1} parent=1 // pred_check_branch
      %24 = sbr.rel (0) target = $region9
    $region8: #{tpu_custom_call.1} parent=1 // pred_region
      _
    $region9: #{tpu_custom_call.1} parent=1 // pred_fallthru
      _
    // Predicated region
    $region10: #{tpu_custom_call.1} parent=1 // pred_check
      _
    $region11: #{tpu_custom_call.1} parent=1 // pred_check_branch
      %26 = sbr.rel (0) target = $region13
    $region12: #{tpu_custom_call.1} parent=1 // pred_region
      _
    $region13: #{tpu_custom_call.1} parent=1 // pred_fallthru
      _
    // Predicated region
    $region14: #{tpu_custom_call.1} parent=1 // pred_check
      _
    $region15: #{tpu_custom_call.1} parent=1 // pred_check_branch
      %28 = sbr.rel (0) target = $region17
    $region16: #{tpu_custom_call.1} parent=1 // pred_region
      _
    $region17: #{tpu_custom_call.1} parent=1 // pred_fallthru
      _
    // Predicated region
    $region18: #{tpu_custom_call.1} parent=1 // pred_check
      _
    $region19: #{tpu_custom_call.1} parent=1 // pred_check_branch
      %30 = sbr.rel (0) target = $region21
    $region20: #{tpu_custom_call.1} parent=1 // pred_region
      _
    $region21: #{tpu_custom_call.1} parent=1 // pred_fallthru
      _
    // Predicated region
    $region22: #{tpu_custom_call.1} parent=1 // pred_check
      _
    $region23: #{tpu_custom_call.1} parent=1 // pred_check_branch
      %32 = sbr.rel (0) target = $region25
    $region24: #{tpu_custom_call.1} parent=1 // pred_region
      _
    $region25: #{tpu_custom_call.1} parent=1 // pred_fallthru
      _
    // Predicated region
    $region26: #{tpu_custom_call.1} parent=1 // pred_check
      _
    $region27: #{tpu_custom_call.1} parent=1 // pred_check_branch
      %34 = sbr.rel (0) target = $region29
    $region28: #{tpu_custom_call.1} parent=1 // pred_region
      _
    $region29: #{tpu_custom_call.1} parent=1 // pred_fallthru
      _
    // Predicated region
    $region30: #{tpu_custom_call.1} parent=1 // pred_check
      _
    $region31: #{tpu_custom_call.1} parent=1 // pred_check_branch
      %36 = sbr.rel (0) target = $region33
    $region32: #{tpu_custom_call.1} parent=1 // pred_region
      _
    $region33: #{tpu_custom_call.1} parent=1 // pred_fallthru
      _
    // Predicated region
    $region34: #{tpu_custom_call.1} parent=1 // pred_check
      _
    $region35: #{tpu_custom_call.1} parent=1 // pred_check_branch
      %38 = sbr.rel (0) target = $region37
    $region36: #{tpu_custom_call.1} parent=1 // pred_region
      _
    $region37: #{tpu_custom_call.1} parent=1 // pred_fallthru
      _
    // Predicated region
    $region38: #{tpu_custom_call.1} parent=1 // pred_check
      _
    $region39: #{tpu_custom_call.1} parent=1 // pred_check_branch
      %40 = sbr.rel (0) target = $region41
    $region40: #{tpu_custom_call.1} parent=1 // pred_region
      _
    $region41: #{tpu_custom_call.1} parent=1 // pred_fallthru
      _
    // Predicated region
    $region42: #{tpu_custom_call.1} parent=1 // pred_check
      _
    $region43: #{tpu_custom_call.1} parent=1 // pred_check_branch
      %42 = sbr.rel (0) target = $region45
    $region44: #{tpu_custom_call.1} parent=1 // pred_region
      _
    $region45: #{tpu_custom_call.1} parent=1 // pred_fallthru
      _
    // Predicated region
    $region46: #{tpu_custom_call.1} parent=1 // pred_check
      _
    $region47: #{tpu_custom_call.1} parent=1 // pred_check_branch
      %44 = sbr.rel (0) target = $region49
    $region48: #{tpu_custom_call.1} parent=1 // pred_region
      _
    $region49: #{tpu_custom_call.1} parent=1 // pred_fallthru
      _
    // Predicated region
    $region50: #{tpu_custom_call.1} parent=1 // pred_check
      _
    $region51: #{tpu_custom_call.1} parent=1 // pred_check_branch
      %46 = sbr.rel (0) target = $region53
    $region52: #{tpu_custom_call.1} parent=1 // pred_region
      _
    $region53: #{tpu_custom_call.1} parent=1 // pred_fallthru
      _
    // Predicated region
    $region54: #{tpu_custom_call.1} parent=1 // pred_check
      _
    $region55: #{tpu_custom_call.1} parent=1 // pred_check_branch
      %48 = sbr.rel (0) target = $region57
    $region56: #{tpu_custom_call.1} parent=1 // pred_region
      _
    $region57: #{tpu_custom_call.1} parent=1 // pred_fallthru
      _
    // Predicated region
    $region58: #{tpu_custom_call.1} parent=1 // pred_check
      _
    $region59: #{tpu_custom_call.1} parent=1 // pred_check_branch
      %50 = sbr.rel (0) target = $region61
    $region60: #{tpu_custom_call.1} parent=1 // pred_region
      _
    $region61: #{tpu_custom_call.1} parent=1 // pred_fallthru
      _
    %v51 = vld [vmem:[%s0] sm:$0x77]
    %v52 = vld [vmem:[%s0 + $0x8] sm:$0x77]
    %v53 = vld [vmem:[%s1] sm:$0xff]
    %v54 = vld [vmem:[%s1 + $0x8] sm:$0xff]
    %v55 = vld [vmem:[%s1 + $0x10] sm:$0xff]
    %v56 = vld [vmem:[%s1 + $0x18] sm:$0xff]
    %v57 = vld [vmem:[%s8] sm:$0xff]
    %v58 = vld [vmem:[%s8 + $0x8] sm:$0xff]
    %v59 = vld [vmem:[%s8 + $0x10] sm:$0xff]
    %v60 = vld [vmem:[%s8 + $0x18] sm:$0xff]
    %62 = vset.pattern.permute.xlu0 0
    %63 = vperm.xlu0 %62, %v57
    %v64 = vpop.permute.xlu0 %63
    %67 = vset.pattern.permute.xlu0 0
    %68 = vperm.xlu0 %67, %v58
    %v69 = vpop.permute.xlu0 %68
    %72 = vset.pattern.permute.xlu0 0
    %73 = vperm.xlu0 %72, %v59
    %v74 = vpop.permute.xlu0 %73
    %77 = vset.pattern.permute.xlu0 0
    %78 = vperm.xlu0 %77, %v60
    %v79 = vpop.permute.xlu0 %78
    %v83 = vcombine.high %v51, %v51
    %v84 = vcombine.high %v52, %v52
    %vm85 = vcmask 23552
    %v87 = vsel %vm85, %v53, 0
    %v90 = vsel %vm85, %v54, 0
    %v93 = vsel %vm85, %v55, 0
    %v96 = vsel %vm85, %v56, 0
    %vm98 = vcmask 1042432
    %v99 = vsel %vm98, %v51, 0
    %v101 = vsel %vm98, %v83, 0
    %v103 = vsel %vm98, %v52, 0
    %v105 = vsel %vm98, %v84, 0
    %107 = vmatprep.subr.mxu0 %v101
    %108 = vmatpush1.msra.mxu0 %v99
    %109 = vmatprep.subr.mxu0 0.0
    %110 = vmatpush1.msra.mxu0 0.0
    %111 = vmatprep.subr.mxu0 0.0
    %112 = vmatpush1.msra.mxu0 0.0
    %113 = vmatprep.subr.mxu0 0.0
    %114 = vmatpush1.msra.mxu0 0.0
    %115 = vmatprep.subr.mxu0 0.0
    %116 = vmatpush1.msra.mxu0 0.0
    %117 = vmatprep.subr.mxu0 0.0
    %118 = vmatpush1.msra.mxu0 0.0
    %119 = vmatprep.subr.mxu0 0.0
    %120 = vmatpush1.msra.mxu0 0.0
    %121 = vmatprep.subr.mxu0 0.0
    %122 = vmatpush1.msra.mxu0 0.0
    %123 = vmatprep.subr.mxu0 0.0
    %124 = vmatpush1.msra.mxu0 0.0
    %125 = vmatprep.subr.mxu0 0.0
    %126 = vmatpush1.msra.mxu0 0.0
    %127 = vmatprep.subr.mxu0 0.0
    %128 = vmatpush1.msra.mxu0 0.0
    %129 = vmatprep.subr.mxu0 0.0
    %130 = vmatpush1.msra.mxu0 0.0
    %131 = vmatprep.subr.mxu0 0.0
    %132 = vmatpush1.msra.mxu0 0.0
    %133 = vmatprep.subr.mxu0 0.0
    %134 = vmatpush1.msra.mxu0 0.0
    %135 = vmatprep.subr.mxu0 0.0
    %136 = vmatpush1.msra.mxu0 0.0
    %137 = vmatprep.subr.mxu0 0.0
    %138 = vmatpush1.msra.mxu0 0.0
    %139 = vmatprep.subr.mxu0 0.0
    %140 = vmatpush1.msra.mxu0 0.0
    %141 = vmatprep.subr.mxu0 0.0
    %142 = vmatpush1.msra.mxu0 0.0
    %143 = vmatprep.subr.mxu0 0.0
    %144 = vmatpush1.msra.mxu0 0.0
    %145 = vmatprep.subr.mxu0 0.0
    %146 = vmatpush1.msra.mxu0 0.0
    %147 = vmatprep.subr.mxu0 0.0
    %148 = vmatpush1.msra.mxu0 0.0
    %149 = vmatprep.subr.mxu0 0.0
    %150 = vmatpush1.msra.mxu0 0.0
    %151 = vmatprep.subr.mxu0 0.0
    %152 = vmatpush1.msra.mxu0 0.0
    %153 = vmatprep.subr.mxu0 0.0
    %154 = vmatpush1.msra.mxu0 0.0
    %155 = vmatprep.subr.mxu0 0.0
    %156 = vmatpush1.msra.mxu0 0.0
    %157 = vmatprep.subr.mxu0 0.0
    %158 = vmatpush1.msra.mxu0 0.0
    %159 = vmatprep.subr.mxu0 0.0
    %160 = vmatpush1.msra.mxu0 0.0
    %161 = vmatprep.subr.mxu0 0.0
    %162 = vmatpush1.msra.mxu0 0.0
    %163 = vmatprep.subr.mxu0 0.0
    %164 = vmatpush1.msra.mxu0 0.0
    %165 = vmatprep.subr.mxu0 0.0
    %166 = vmatpush1.msra.mxu0 0.0
    %167 = vmatprep.subr.mxu0 0.0
    %168 = vmatpush1.msra.mxu0 0.0
    %169 = vmatprep.subr.mxu0 0.0
    %170 = vmatpush1.msra.mxu0 0.0
    %171 = vmatprep.mubr.f32.mxu0 0.0
    %172 = vmatmul.mubr.f32.gmra.mrb[0].mxu0 %v87
    %v173 = vpop.f32.mrb[0].mxu0
    %v174 = vadd.f32 %v64, %v173
    %v175 = vpop.f32.mrb[0].mxu0
    %v176 = vadd.f32 %v64, %v175
    %177 = vmatprep.mubr.f32.mxu0 0.0
    %178 = vmatmul.mubr.f32.gmra.mrb[0].mxu0 %v90
    %v179 = vpop.f32.mrb[0].mxu0
    %v180 = vadd.f32 %v69, %v179
    %v181 = vpop.f32.mrb[0].mxu0
    %v182 = vadd.f32 %v69, %v181
    %183 = vmatprep.mubr.f32.mxu0 0.0
    %184 = vmatmul.mubr.f32.gmra.mrb[0].mxu0 %v93
    %v185 = vpop.f32.mrb[0].mxu0
    %v186 = vadd.f32 %v74, %v185
    %v187 = vpop.f32.mrb[0].mxu0
    %v188 = vadd.f32 %v74, %v187
    %189 = vmatprep.mubr.f32.mxu0 0.0
    %190 = vmatmul.mubr.f32.gmra.mrb[0].mxu0 %v96
    %v191 = vpop.f32.mrb[0].mxu0
    %v192 = vadd.f32 %v79, %v191
    %v193 = vpop.f32.mrb[0].mxu0
    %v194 = vadd.f32 %v79, %v193
    %195 = vdwg.mxu0
    %196 = vmatprep.subr.mxu0 %v105
    %197 = vmatpush1.msra.mxu0 %v103
    %198 = vmatprep.subr.mxu0 0.0
    %199 = vmatpush1.msra.mxu0 0.0
    %200 = vmatprep.subr.mxu0 0.0
    %201 = vmatpush1.msra.mxu0 0.0
    %202 = vmatprep.subr.mxu0 0.0
    %203 = vmatpush1.msra.mxu0 0.0
    %204 = vmatprep.subr.mxu0 0.0
    %205 = vmatpush1.msra.mxu0 0.0
    %206 = vmatprep.subr.mxu0 0.0
    %207 = vmatpush1.msra.mxu0 0.0
    %208 = vmatprep.subr.mxu0 0.0
    %209 = vmatpush1.msra.mxu0 0.0
    %210 = vmatprep.subr.mxu0 0.0
    %211 = vmatpush1.msra.mxu0 0.0
    %212 = vmatprep.subr.mxu0 0.0
    %213 = vmatpush1.msra.mxu0 0.0
    %214 = vmatprep.subr.mxu0 0.0
    %215 = vmatpush1.msra.mxu0 0.0
    %216 = vmatprep.subr.mxu0 0.0
    %217 = vmatpush1.msra.mxu0 0.0
    %218 = vmatprep.subr.mxu0 0.0
    %219 = vmatpush1.msra.mxu0 0.0
    %220 = vmatprep.subr.mxu0 0.0
    %221 = vmatpush1.msra.mxu0 0.0
    %222 = vmatprep.subr.mxu0 0.0
    %223 = vmatpush1.msra.mxu0 0.0
    %224 = vmatprep.subr.mxu0 0.0
    %225 = vmatpush1.msra.mxu0 0.0
    %226 = vmatprep.subr.mxu0 0.0
    %227 = vmatpush1.msra.mxu0 0.0
    %228 = vmatprep.subr.mxu0 0.0
    %229 = vmatpush1.msra.mxu0 0.0
    %230 = vmatprep.subr.mxu0 0.0
    %231 = vmatpush1.msra.mxu0 0.0
    %232 = vmatprep.subr.mxu0 0.0
    %233 = vmatpush1.msra.mxu0 0.0
    %234 = vmatprep.subr.mxu0 0.0
    %235 = vmatpush1.msra.mxu0 0.0
    %236 = vmatprep.subr.mxu0 0.0
    %237 = vmatpush1.msra.mxu0 0.0
    %238 = vmatprep.subr.mxu0 0.0
    %239 = vmatpush1.msra.mxu0 0.0
    %240 = vmatprep.subr.mxu0 0.0
    %241 = vmatpush1.msra.mxu0 0.0
    %242 = vmatprep.subr.mxu0 0.0
    %243 = vmatpush1.msra.mxu0 0.0
    %244 = vmatprep.subr.mxu0 0.0
    %245 = vmatpush1.msra.mxu0 0.0
    %246 = vmatprep.subr.mxu0 0.0
    %247 = vmatpush1.msra.mxu0 0.0
    %248 = vmatprep.subr.mxu0 0.0
    %249 = vmatpush1.msra.mxu0 0.0
    %250 = vmatprep.subr.mxu0 0.0
    %251 = vmatpush1.msra.mxu0 0.0
    %252 = vmatprep.subr.mxu0 0.0
    %253 = vmatpush1.msra.mxu0 0.0
    %254 = vmatprep.subr.mxu0 0.0
    %255 = vmatpush1.msra.mxu0 0.0
    %256 = vmatprep.subr.mxu0 0.0
    %257 = vmatpush1.msra.mxu0 0.0
    %258 = vmatprep.subr.mxu0 0.0
    %259 = vmatpush1.msra.mxu0 0.0
    %260 = vmatprep.mubr.f32.mxu0 0.0
    %261 = vmatmul.mubr.f32.gmra.mrb[0].mxu0 %v87
    %v262 = vpop.f32.mrb[0].mxu0
    %v263 = vadd.f32 %v64, %v262
    %v264 = vpop.f32.mrb[0].mxu0
    %v265 = vadd.f32 %v64, %v264
    %266 = vmatprep.mubr.f32.mxu0 0.0
    %267 = vmatmul.mubr.f32.gmra.mrb[0].mxu0 %v90
    %v268 = vpop.f32.mrb[0].mxu0
    %v269 = vadd.f32 %v69, %v268
    %v270 = vpop.f32.mrb[0].mxu0
    %v271 = vadd.f32 %v69, %v270
    %272 = vmatprep.mubr.f32.mxu0 0.0
    %273 = vmatmul.mubr.f32.gmra.mrb[0].mxu0 %v93
    %v274 = vpop.f32.mrb[0].mxu0
    %v275 = vadd.f32 %v74, %v274
    %v276 = vpop.f32.mrb[0].mxu0
    %v277 = vadd.f32 %v74, %v276
    %278 = vmatprep.mubr.f32.mxu0 0.0
    %279 = vmatmul.mubr.f32.gmra.mrb[0].mxu0 %v96
    %v280 = vpop.f32.mrb[0].mxu0
    %v281 = vadd.f32 %v79, %v280
    %v282 = vpop.f32.mrb[0].mxu0
    %v283 = vadd.f32 %v79, %v282
    %284 = vdwg.mxu0
    %v285 = vmul.f32 %v174, 100.0
    %v286 = vmul.f32 %v176, 100.0
    %v287 = vmul.f32 %v263, 100.0
    %v288 = vmul.f32 %v265, 100.0
    %v289 = vmul.f32 %v180, 100.0
    %v290 = vmul.f32 %v182, 100.0
    %v291 = vmul.f32 %v269, 100.0
    %v292 = vmul.f32 %v271, 100.0
    %v293 = vmul.f32 %v186, 100.0
    %v294 = vmul.f32 %v188, 100.0
    %v295 = vmul.f32 %v275, 100.0
    %v296 = vmul.f32 %v277, 100.0
    %v297 = vmul.f32 %v192, 100.0
    %v298 = vmul.f32 %v194, 100.0
    %v299 = vmul.f32 %v281, 100.0
    %v300 = vmul.f32 %v283, 100.0
    %v301 = vmin.f32 %v285, 20.0
    %v302 = vmin.f32 %v286, 20.0
    %v303 = vmin.f32 %v287, 20.0
    %v304 = vmin.f32 %v288, 20.0
    %v305 = vmin.f32 %v289, 20.0
    %v306 = vmin.f32 %v290, 20.0
    %v307 = vmin.f32 %v291, 20.0
    %v308 = vmin.f32 %v292, 20.0
    %v309 = vmin.f32 %v293, 20.0
    %v310 = vmin.f32 %v294, 20.0
    %v311 = vmin.f32 %v295, 20.0
    %v312 = vmin.f32 %v296, 20.0
    %v313 = vmin.f32 %v297, 20.0
    %v314 = vmin.f32 %v298, 20.0
    %v315 = vmin.f32 %v299, 20.0
    %v316 = vmin.f32 %v300, 20.0
    %vm317 = vcmp.gt.f32.partialorder %v285, 20.0
    %vm318 = vcmp.gt.f32.partialorder %v286, 20.0
    %vm319 = vcmp.gt.f32.partialorder %v287, 20.0
    %vm320 = vcmp.gt.f32.partialorder %v288, 20.0
    %vm321 = vcmp.gt.f32.partialorder %v289, 20.0
    %vm322 = vcmp.gt.f32.partialorder %v290, 20.0
    %vm323 = vcmp.gt.f32.partialorder %v291, 20.0
    %vm324 = vcmp.gt.f32.partialorder %v292, 20.0
    %vm325 = vcmp.gt.f32.partialorder %v293, 20.0
    %vm326 = vcmp.gt.f32.partialorder %v294, 20.0
    %vm327 = vcmp.gt.f32.partialorder %v295, 20.0
    %vm328 = vcmp.gt.f32.partialorder %v296, 20.0
    %vm329 = vcmp.gt.f32.partialorder %v297, 20.0
    %vm330 = vcmp.gt.f32.partialorder %v298, 20.0
    %vm331 = vcmp.gt.f32.partialorder %v299, 20.0
    %vm332 = vcmp.gt.f32.partialorder %v300, 20.0
    %v333 = vmul.f32 %v301, 1.442695
    %v334 = vpow.pop %v333
    %v335 = vmul.f32 %v302, 1.442695
    %v336 = vpow.pop %v335
    %v337 = vmul.f32 %v303, 1.442695
    %v338 = vpow.pop %v337
    %v339 = vmul.f32 %v304, 1.442695
    %v340 = vpow.pop %v339
    %v341 = vmul.f32 %v305, 1.442695
    %v342 = vpow.pop %v341
    %v343 = vmul.f32 %v306, 1.442695
    %v344 = vpow.pop %v343
    %v345 = vmul.f32 %v307, 1.442695
    %v346 = vpow.pop %v345
    %v347 = vmul.f32 %v308, 1.442695
    %v348 = vpow.pop %v347
    %v349 = vmul.f32 %v309, 1.442695
    %v350 = vpow.pop %v349
    %v351 = vmul.f32 %v310, 1.442695
    %v352 = vpow.pop %v351
    %v353 = vmul.f32 %v311, 1.442695
    %v354 = vpow.pop %v353
    %v355 = vmul.f32 %v312, 1.442695
    %v356 = vpow.pop %v355
    %v357 = vmul.f32 %v313, 1.442695
    %v358 = vpow.pop %v357
    %v359 = vmul.f32 %v314, 1.442695
    %v360 = vpow.pop %v359
    %v361 = vmul.f32 %v315, 1.442695
    %v362 = vpow.pop %v361
    %v363 = vmul.f32 %v316, 1.442695
    %v364 = vpow.pop %v363
    %v365 = vadd.f32 %v334, 1.0
    %v366 = vlog2.pop %v365
    %v367 = vmul.f32 %v366, 0.6931472
    %v368 = vmul.f32 -0.5, %v334
    %v369 = vadd.f32 %v368, 1.0
    %v370 = vmul.f32 %v369, %v334
    %v371 = vand.u32 2147483647, %v334
    %vm372 = vcmp.lt.f32.partialorder %v371, 0.0004427343
    %v373 = vsel %vm372, %v370, %v367
    %v374 = vadd.f32 %v336, 1.0
    %v375 = vlog2.pop %v374
    %v376 = vmul.f32 %v375, 0.6931472
    %v377 = vmul.f32 -0.5, %v336
    %v378 = vadd.f32 %v377, 1.0
    %v379 = vmul.f32 %v378, %v336
    %v380 = vand.u32 2147483647, %v336
    %vm381 = vcmp.lt.f32.partialorder %v380, 0.0004427343
    %v382 = vsel %vm381, %v379, %v376
    %v383 = vadd.f32 %v338, 1.0
    %v384 = vlog2.pop %v383
    %v385 = vmul.f32 %v384, 0.6931472
    %v386 = vmul.f32 -0.5, %v338
    %v387 = vadd.f32 %v386, 1.0
    %v388 = vmul.f32 %v387, %v338
    %v389 = vand.u32 2147483647, %v338
    %vm390 = vcmp.lt.f32.partialorder %v389, 0.0004427343
    %v391 = vsel %vm390, %v388, %v385
    %v392 = vadd.f32 %v340, 1.0
    %v393 = vlog2.pop %v392
    %v394 = vmul.f32 %v393, 0.6931472
    %v395 = vmul.f32 -0.5, %v340
    %v396 = vadd.f32 %v395, 1.0
    %v397 = vmul.f32 %v396, %v340
    %v398 = vand.u32 2147483647, %v340
    %vm399 = vcmp.lt.f32.partialorder %v398, 0.0004427343
    %v400 = vsel %vm399, %v397, %v394
    %v401 = vadd.f32 %v342, 1.0
    %v402 = vlog2.pop %v401
    %v403 = vmul.f32 %v402, 0.6931472
    %v404 = vmul.f32 -0.5, %v342
    %v405 = vadd.f32 %v404, 1.0
    %v406 = vmul.f32 %v405, %v342
    %v407 = vand.u32 2147483647, %v342
    %vm408 = vcmp.lt.f32.partialorder %v407, 0.0004427343
    %v409 = vsel %vm408, %v406, %v403
    %v410 = vadd.f32 %v344, 1.0
    %v411 = vlog2.pop %v410
    %v412 = vmul.f32 %v411, 0.6931472
    %v413 = vmul.f32 -0.5, %v344
    %v414 = vadd.f32 %v413, 1.0
    %v415 = vmul.f32 %v414, %v344
    %v416 = vand.u32 2147483647, %v344
    %vm417 = vcmp.lt.f32.partialorder %v416, 0.0004427343
    %v418 = vsel %vm417, %v415, %v412
    %v419 = vadd.f32 %v346, 1.0
    %v420 = vlog2.pop %v419
    %v421 = vmul.f32 %v420, 0.6931472
    %v422 = vmul.f32 -0.5, %v346
    %v423 = vadd.f32 %v422, 1.0
    %v424 = vmul.f32 %v423, %v346
    %v425 = vand.u32 2147483647, %v346
    %vm426 = vcmp.lt.f32.partialorder %v425, 0.0004427343
    %v427 = vsel %vm426, %v424, %v421
    %v428 = vadd.f32 %v348, 1.0
    %v429 = vlog2.pop %v428
    %v430 = vmul.f32 %v429, 0.6931472
    %v431 = vmul.f32 -0.5, %v348
    %v432 = vadd.f32 %v431, 1.0
    %v433 = vmul.f32 %v432, %v348
    %v434 = vand.u32 2147483647, %v348
    %vm435 = vcmp.lt.f32.partialorder %v434, 0.0004427343
    %v436 = vsel %vm435, %v433, %v430
    %v437 = vadd.f32 %v350, 1.0
    %v438 = vlog2.pop %v437
    %v439 = vmul.f32 %v438, 0.6931472
    %v440 = vmul.f32 -0.5, %v350
    %v441 = vadd.f32 %v440, 1.0
    %v442 = vmul.f32 %v441, %v350
    %v443 = vand.u32 2147483647, %v350
    %vm444 = vcmp.lt.f32.partialorder %v443, 0.0004427343
    %v445 = vsel %vm444, %v442, %v439
    %v446 = vadd.f32 %v352, 1.0
    %v447 = vlog2.pop %v446
    %v448 = vmul.f32 %v447, 0.6931472
    %v449 = vmul.f32 -0.5, %v352
    %v450 = vadd.f32 %v449, 1.0
    %v451 = vmul.f32 %v450, %v352
    %v452 = vand.u32 2147483647, %v352
    %vm453 = vcmp.lt.f32.partialorder %v452, 0.0004427343
    %v454 = vsel %vm453, %v451, %v448
    %v455 = vadd.f32 %v354, 1.0
    %v456 = vlog2.pop %v455
    %v457 = vmul.f32 %v456, 0.6931472
    %v458 = vmul.f32 -0.5, %v354
    %v459 = vadd.f32 %v458, 1.0
    %v460 = vmul.f32 %v459, %v354
    %v461 = vand.u32 2147483647, %v354
    %vm462 = vcmp.lt.f32.partialorder %v461, 0.0004427343
    %v463 = vsel %vm462, %v460, %v457
    %v464 = vadd.f32 %v356, 1.0
    %v465 = vlog2.pop %v464
    %v466 = vmul.f32 %v465, 0.6931472
    %v467 = vmul.f32 -0.5, %v356
    %v468 = vadd.f32 %v467, 1.0
    %v469 = vmul.f32 %v468, %v356
    %v470 = vand.u32 2147483647, %v356
    %vm471 = vcmp.lt.f32.partialorder %v470, 0.0004427343
    %v472 = vsel %vm471, %v469, %v466
    %v473 = vadd.f32 %v358, 1.0
    %v474 = vlog2.pop %v473
    %v475 = vmul.f32 %v474, 0.6931472
    %v476 = vmul.f32 -0.5, %v358
    %v477 = vadd.f32 %v476, 1.0
    %v478 = vmul.f32 %v477, %v358
    %v479 = vand.u32 2147483647, %v358
    %vm480 = vcmp.lt.f32.partialorder %v479, 0.0004427343
    %v481 = vsel %vm480, %v478, %v475
    %v482 = vadd.f32 %v360, 1.0
    %v483 = vlog2.pop %v482
    %v484 = vmul.f32 %v483, 0.6931472
    %v485 = vmul.f32 -0.5, %v360
    %v486 = vadd.f32 %v485, 1.0
    %v487 = vmul.f32 %v486, %v360
    %v488 = vand.u32 2147483647, %v360
    %vm489 = vcmp.lt.f32.partialorder %v488, 0.0004427343
    %v490 = vsel %vm489, %v487, %v484
    %v491 = vadd.f32 %v362, 1.0
    %v492 = vlog2.pop %v491
    %v493 = vmul.f32 %v492, 0.6931472
    %v494 = vmul.f32 -0.5, %v362
    %v495 = vadd.f32 %v494, 1.0
    %v496 = vmul.f32 %v495, %v362
    %v497 = vand.u32 2147483647, %v362
    %vm498 = vcmp.lt.f32.partialorder %v497, 0.0004427343
    %v499 = vsel %vm498, %v496, %v493
    %v500 = vadd.f32 %v364, 1.0
    %v501 = vlog2.pop %v500
    %v502 = vmul.f32 %v501, 0.6931472
    %v503 = vmul.f32 -0.5, %v364
    %v504 = vadd.f32 %v503, 1.0
    %v505 = vmul.f32 %v504, %v364
    %v506 = vand.u32 2147483647, %v364
    %vm507 = vcmp.lt.f32.partialorder %v506, 0.0004427343
    %v508 = vsel %vm507, %v505, %v502
    %v509 = vmul.f32 %v373, 0.01
    %v510 = vmul.f32 %v382, 0.01
    %v511 = vmul.f32 %v391, 0.01
    %v512 = vmul.f32 %v400, 0.01
    %v513 = vmul.f32 %v409, 0.01
    %v514 = vmul.f32 %v418, 0.01
    %v515 = vmul.f32 %v427, 0.01
    %v516 = vmul.f32 %v436, 0.01
    %v517 = vmul.f32 %v445, 0.01
    %v518 = vmul.f32 %v454, 0.01
    %v519 = vmul.f32 %v463, 0.01
    %v520 = vmul.f32 %v472, 0.01
    %v521 = vmul.f32 %v481, 0.01
    %v522 = vmul.f32 %v490, 0.01
    %v523 = vmul.f32 %v499, 0.01
    %v524 = vmul.f32 %v508, 0.01
    %v525 = vsel %vm317, %v174, %v509
    %v526 = vsel %vm318, %v176, %v510
    %v527 = vsel %vm319, %v263, %v511
    %v528 = vsel %vm320, %v265, %v512
    %v529 = vsel %vm321, %v180, %v513
    %v530 = vsel %vm322, %v182, %v514
    %v531 = vsel %vm323, %v269, %v515
    %v532 = vsel %vm324, %v271, %v516
    %v533 = vsel %vm325, %v186, %v517
    %v534 = vsel %vm326, %v188, %v518
    %v535 = vsel %vm327, %v275, %v519
    %v536 = vsel %vm328, %v277, %v520
    %v537 = vsel %vm329, %v192, %v521
    %v538 = vsel %vm330, %v194, %v522
    %v539 = vsel %vm331, %v281, %v523
    %v540 = vsel %vm332, %v283, %v524
    %v541 = vld [vmem:[%s2] sm:$0xff]
    %v542 = vld [vmem:[%s2 + $0x8] sm:$0xff]
    %v543 = vld [vmem:[%s2 + $0x10] sm:$0xff]
    %v544 = vld [vmem:[%s2 + $0x18] sm:$0xff]
    %v545 = vld [vmem:[%s9] sm:$0xff]
    %v546 = vld [vmem:[%s9 + $0x8] sm:$0xff]
    %v547 = vld [vmem:[%s9 + $0x10] sm:$0xff]
    %v548 = vld [vmem:[%s9 + $0x18] sm:$0xff]
    %550 = vset.pattern.permute.xlu0 0
    %551 = vperm.xlu0 %550, %v545
    %v552 = vpop.permute.xlu0 %551
    %555 = vset.pattern.permute.xlu0 0
    %556 = vperm.xlu0 %555, %v546
    %v557 = vpop.permute.xlu0 %556
    %560 = vset.pattern.permute.xlu0 0
    %561 = vperm.xlu0 %560, %v547
    %v562 = vpop.permute.xlu0 %561
    %565 = vset.pattern.permute.xlu0 0
    %566 = vperm.xlu0 %565, %v548
    %v567 = vpop.permute.xlu0 %566
    %vm569 = vcmask 261120
    %v571 = vsel %vm569, %v541, 0
    %v574 = vsel %vm569, %v542, 0
    %v577 = vsel %vm569, %v543, 0
    %v580 = vsel %vm569, %v544, 0
    %582 = vmatprep.subr.mxu0 %v526
    %583 = vmatpush1.msra.mxu0 %v525
    %584 = vmatprep.subr.mxu0 %v530
    %585 = vmatpush1.msra.mxu0 %v529
    %586 = vmatprep.subr.mxu0 %v534
    %587 = vmatpush1.msra.mxu0 %v533
    %588 = vmatprep.subr.mxu0 %v538
    %589 = vmatpush1.msra.mxu0 %v537
    %590 = vmatprep.subr.mxu0 0.0
    %591 = vmatpush1.msra.mxu0 0.0
    %592 = vmatprep.subr.mxu0 0.0
    %593 = vmatpush1.msra.mxu0 0.0
    %594 = vmatprep.subr.mxu0 0.0
    %595 = vmatpush1.msra.mxu0 0.0
    %596 = vmatprep.subr.mxu0 0.0
    %597 = vmatpush1.msra.mxu0 0.0
    %598 = vmatprep.subr.mxu0 0.0
    %599 = vmatpush1.msra.mxu0 0.0
    %600 = vmatprep.subr.mxu0 0.0
    %601 = vmatpush1.msra.mxu0 0.0
    %602 = vmatprep.subr.mxu0 0.0
    %603 = vmatpush1.msra.mxu0 0.0
    %604 = vmatprep.subr.mxu0 0.0
    %605 = vmatpush1.msra.mxu0 0.0
    %606 = vmatprep.subr.mxu0 0.0
    %607 = vmatpush1.msra.mxu0 0.0
    %608 = vmatprep.subr.mxu0 0.0
    %609 = vmatpush1.msra.mxu0 0.0
    %610 = vmatprep.subr.mxu0 0.0
    %611 = vmatpush1.msra.mxu0 0.0
    %612 = vmatprep.subr.mxu0 0.0
    %613 = vmatpush1.msra.mxu0 0.0
    %614 = vmatprep.subr.mxu0 0.0
    %615 = vmatpush1.msra.mxu0 0.0
    %616 = vmatprep.subr.mxu0 0.0
    %617 = vmatpush1.msra.mxu0 0.0
    %618 = vmatprep.subr.mxu0 0.0
    %619 = vmatpush1.msra.mxu0 0.0
    %620 = vmatprep.subr.mxu0 0.0
    %621 = vmatpush1.msra.mxu0 0.0
    %622 = vmatprep.subr.mxu0 0.0
    %623 = vmatpush1.msra.mxu0 0.0
    %624 = vmatprep.subr.mxu0 0.0
    %625 = vmatpush1.msra.mxu0 0.0
    %626 = vmatprep.subr.mxu0 0.0
    %627 = vmatpush1.msra.mxu0 0.0
    %628 = vmatprep.subr.mxu0 0.0
    %629 = vmatpush1.msra.mxu0 0.0
    %630 = vmatprep.subr.mxu0 0.0
    %631 = vmatpush1.msra.mxu0 0.0
    %632 = vmatprep.subr.mxu0 0.0
    %633 = vmatpush1.msra.mxu0 0.0
    %634 = vmatprep.subr.mxu0 0.0
    %635 = vmatpush1.msra.mxu0 0.0
    %636 = vmatprep.subr.mxu0 0.0
    %637 = vmatpush1.msra.mxu0 0.0
    %638 = vmatprep.subr.mxu0 0.0
    %639 = vmatpush1.msra.mxu0 0.0
    %640 = vmatprep.subr.mxu0 0.0
    %641 = vmatpush1.msra.mxu0 0.0
    %642 = vmatprep.subr.mxu0 0.0
    %643 = vmatpush1.msra.mxu0 0.0
    %644 = vmatprep.subr.mxu0 0.0
    %645 = vmatpush1.msra.mxu0 0.0
    %646 = vmatprep.mubr.f32.mxu0 0.0
    %647 = vmatmul.mubr.f32.gmra.mrb[0].mxu0 %v571
    %v648 = vpop.f32.mrb[0].mxu0
    %v649 = vadd.f32 %v552, %v648
    %v650 = vpop.f32.mrb[0].mxu0
    %v651 = vadd.f32 %v552, %v650
    %652 = vmatprep.mubr.f32.mxu0 0.0
    %653 = vmatmul.mubr.f32.gmra.mrb[0].mxu0 %v574
    %v654 = vpop.f32.mrb[0].mxu0
    %v655 = vadd.f32 %v557, %v654
    %v656 = vpop.f32.mrb[0].mxu0
    %v657 = vadd.f32 %v557, %v656
    %658 = vmatprep.mubr.f32.mxu0 0.0
    %659 = vmatmul.mubr.f32.gmra.mrb[0].mxu0 %v577
    %v660 = vpop.f32.mrb[0].mxu0
    %v661 = vadd.f32 %v562, %v660
    %v662 = vpop.f32.mrb[0].mxu0
    %v663 = vadd.f32 %v562, %v662
    %664 = vmatprep.mubr.f32.mxu0 0.0
    %665 = vmatmul.mubr.f32.gmra.mrb[0].mxu0 %v580
    %v666 = vpop.f32.mrb[0].mxu0
    %v667 = vadd.f32 %v567, %v666
    %v668 = vpop.f32.mrb[0].mxu0
    %v669 = vadd.f32 %v567, %v668
    %670 = vdwg.mxu0
    %671 = vmatprep.subr.mxu0 %v528
    %672 = vmatpush1.msra.mxu0 %v527
    %673 = vmatprep.subr.mxu0 %v532
    %674 = vmatpush1.msra.mxu0 %v531
    %675 = vmatprep.subr.mxu0 %v536
    %676 = vmatpush1.msra.mxu0 %v535
    %677 = vmatprep.subr.mxu0 %v540
    %678 = vmatpush1.msra.mxu0 %v539
    %679 = vmatprep.subr.mxu0 0.0
    %680 = vmatpush1.msra.mxu0 0.0
    %681 = vmatprep.subr.mxu0 0.0
    %682 = vmatpush1.msra.mxu0 0.0
    %683 = vmatprep.subr.mxu0 0.0
    %684 = vmatpush1.msra.mxu0 0.0
    %685 = vmatprep.subr.mxu0 0.0
    %686 = vmatpush1.msra.mxu0 0.0
    %687 = vmatprep.subr.mxu0 0.0
    %688 = vmatpush1.msra.mxu0 0.0
    %689 = vmatprep.subr.mxu0 0.0
    %690 = vmatpush1.msra.mxu0 0.0
    %691 = vmatprep.subr.mxu0 0.0
    %692 = vmatpush1.msra.mxu0 0.0
    %693 = vmatprep.subr.mxu0 0.0
    %694 = vmatpush1.msra.mxu0 0.0
    %695 = vmatprep.subr.mxu0 0.0
    %696 = vmatpush1.msra.mxu0 0.0
    %697 = vmatprep.subr.mxu0 0.0
    %698 = vmatpush1.msra.mxu0 0.0
    %699 = vmatprep.subr.mxu0 0.0
    %700 = vmatpush1.msra.mxu0 0.0
    %701 = vmatprep.subr.mxu0 0.0
    %702 = vmatpush1.msra.mxu0 0.0
    %703 = vmatprep.subr.mxu0 0.0
    %704 = vmatpush1.msra.mxu0 0.0
    %705 = vmatprep.subr.mxu0 0.0
    %706 = vmatpush1.msra.mxu0 0.0
    %707 = vmatprep.subr.mxu0 0.0
    %708 = vmatpush1.msra.mxu0 0.0
    %709 = vmatprep.subr.mxu0 0.0
    %710 = vmatpush1.msra.mxu0 0.0
    %711 = vmatprep.subr.mxu0 0.0
    %712 = vmatpush1.msra.mxu0 0.0
    %713 = vmatprep.subr.mxu0 0.0
    %714 = vmatpush1.msra.mxu0 0.0
    %715 = vmatprep.subr.mxu0 0.0
    %716 = vmatpush1.msra.mxu0 0.0
    %717 = vmatprep.subr.mxu0 0.0
    %718 = vmatpush1.msra.mxu0 0.0
    %719 = vmatprep.subr.mxu0 0.0
    %720 = vmatpush1.msra.mxu0 0.0
    %721 = vmatprep.subr.mxu0 0.0
    %722 = vmatpush1.msra.mxu0 0.0
    %723 = vmatprep.subr.mxu0 0.0
    %724 = vmatpush1.msra.mxu0 0.0
    %725 = vmatprep.subr.mxu0 0.0
    %726 = vmatpush1.msra.mxu0 0.0
    %727 = vmatprep.subr.mxu0 0.0
    %728 = vmatpush1.msra.mxu0 0.0
    %729 = vmatprep.subr.mxu0 0.0
    %730 = vmatpush1.msra.mxu0 0.0
    %731 = vmatprep.subr.mxu0 0.0
    %732 = vmatpush1.msra.mxu0 0.0
    %733 = vmatprep.subr.mxu0 0.0
    %734 = vmatpush1.msra.mxu0 0.0
    %735 = vmatprep.mubr.f32.mxu0 0.0
    %736 = vmatmul.mubr.f32.gmra.mrb[0].mxu0 %v571
    %v737 = vpop.f32.mrb[0].mxu0
    %v738 = vadd.f32 %v552, %v737
    %v739 = vpop.f32.mrb[0].mxu0
    %v740 = vadd.f32 %v552, %v739
    %741 = vmatprep.mubr.f32.mxu0 0.0
    %742 = vmatmul.mubr.f32.gmra.mrb[0].mxu0 %v574
    %v743 = vpop.f32.mrb[0].mxu0
    %v744 = vadd.f32 %v557, %v743
    %v745 = vpop.f32.mrb[0].mxu0
    %v746 = vadd.f32 %v557, %v745
    %747 = vmatprep.mubr.f32.mxu0 0.0
    %748 = vmatmul.mubr.f32.gmra.mrb[0].mxu0 %v577
    %v749 = vpop.f32.mrb[0].mxu0
    %v750 = vadd.f32 %v562, %v749
    %v751 = vpop.f32.mrb[0].mxu0
    %v752 = vadd.f32 %v562, %v751
    %753 = vmatprep.mubr.f32.mxu0 0.0
    %754 = vmatmul.mubr.f32.gmra.mrb[0].mxu0 %v580
    %v755 = vpop.f32.mrb[0].mxu0
    %v756 = vadd.f32 %v567, %v755
    %v757 = vpop.f32.mrb[0].mxu0
    %v758 = vadd.f32 %v567, %v757
    %759 = vdwg.mxu0
    %v760 = vmul.f32 %v649, 100.0
    %v761 = vmul.f32 %v651, 100.0
    %v762 = vmul.f32 %v738, 100.0
    %v763 = vmul.f32 %v740, 100.0
    %v764 = vmul.f32 %v655, 100.0
    %v765 = vmul.f32 %v657, 100.0
    %v766 = vmul.f32 %v744, 100.0
    %v767 = vmul.f32 %v746, 100.0
    %v768 = vmul.f32 %v661, 100.0
    %v769 = vmul.f32 %v663, 100.0
    %v770 = vmul.f32 %v750, 100.0
    %v771 = vmul.f32 %v752, 100.0
    %v772 = vmul.f32 %v667, 100.0
    %v773 = vmul.f32 %v669, 100.0
    %v774 = vmul.f32 %v756, 100.0
    %v775 = vmul.f32 %v758, 100.0
    %v776 = vmin.f32 %v760, 20.0
    %v777 = vmin.f32 %v761, 20.0
    %v778 = vmin.f32 %v762, 20.0
    %v779 = vmin.f32 %v763, 20.0
    %v780 = vmin.f32 %v764, 20.0
    %v781 = vmin.f32 %v765, 20.0
    %v782 = vmin.f32 %v766, 20.0
    %v783 = vmin.f32 %v767, 20.0
    %v784 = vmin.f32 %v768, 20.0
    %v785 = vmin.f32 %v769, 20.0
    %v786 = vmin.f32 %v770, 20.0
    %v787 = vmin.f32 %v771, 20.0
    %v788 = vmin.f32 %v772, 20.0
    %v789 = vmin.f32 %v773, 20.0
    %v790 = vmin.f32 %v774, 20.0
    %v791 = vmin.f32 %v775, 20.0
    %vm792 = vcmp.gt.f32.partialorder %v760, 20.0
    %vm793 = vcmp.gt.f32.partialorder %v761, 20.0
    %vm794 = vcmp.gt.f32.partialorder %v762, 20.0
    %vm795 = vcmp.gt.f32.partialorder %v763, 20.0
    %vm796 = vcmp.gt.f32.partialorder %v764, 20.0
    %vm797 = vcmp.gt.f32.partialorder %v765, 20.0
    %vm798 = vcmp.gt.f32.partialorder %v766, 20.0
    %vm799 = vcmp.gt.f32.partialorder %v767, 20.0
    %vm800 = vcmp.gt.f32.partialorder %v768, 20.0
    %vm801 = vcmp.gt.f32.partialorder %v769, 20.0
    %vm802 = vcmp.gt.f32.partialorder %v770, 20.0
    %vm803 = vcmp.gt.f32.partialorder %v771, 20.0
    %vm804 = vcmp.gt.f32.partialorder %v772, 20.0
    %vm805 = vcmp.gt.f32.partialorder %v773, 20.0
    %vm806 = vcmp.gt.f32.partialorder %v774, 20.0
    %vm807 = vcmp.gt.f32.partialorder %v775, 20.0
    %v808 = vmul.f32 %v776, 1.442695
    %v809 = vpow.pop %v808
    %v810 = vmul.f32 %v777, 1.442695
    %v811 = vpow.pop %v810
    %v812 = vmul.f32 %v778, 1.442695
    %v813 = vpow.pop %v812
    %v814 = vmul.f32 %v779, 1.442695
    %v815 = vpow.pop %v814
    %v816 = vmul.f32 %v780, 1.442695
    %v817 = vpow.pop %v816
    %v818 = vmul.f32 %v781, 1.442695
    %v819 = vpow.pop %v818
    %v820 = vmul.f32 %v782, 1.442695
    %v821 = vpow.pop %v820
    %v822 = vmul.f32 %v783, 1.442695
    %v823 = vpow.pop %v822
    %v824 = vmul.f32 %v784, 1.442695
    %v825 = vpow.pop %v824
    %v826 = vmul.f32 %v785, 1.442695
    %v827 = vpow.pop %v826
    %v828 = vmul.f32 %v786, 1.442695
    %v829 = vpow.pop %v828
    %v830 = vmul.f32 %v787, 1.442695
    %v831 = vpow.pop %v830
    %v832 = vmul.f32 %v788, 1.442695
    %v833 = vpow.pop %v832
    %v834 = vmul.f32 %v789, 1.442695
    %v835 = vpow.pop %v834
    %v836 = vmul.f32 %v790, 1.442695
    %v837 = vpow.pop %v836
    %v838 = vmul.f32 %v791, 1.442695
    %v839 = vpow.pop %v838
    %v840 = vadd.f32 %v809, 1.0
    %v841 = vlog2.pop %v840
    %v842 = vmul.f32 %v841, 0.6931472
    %v843 = vmul.f32 -0.5, %v809
    %v844 = vadd.f32 %v843, 1.0
    %v845 = vmul.f32 %v844, %v809
    %v846 = vand.u32 2147483647, %v809
    %vm847 = vcmp.lt.f32.partialorder %v846, 0.0004427343
    %v848 = vsel %vm847, %v845, %v842
    %v849 = vadd.f32 %v811, 1.0
    %v850 = vlog2.pop %v849
    %v851 = vmul.f32 %v850, 0.6931472
    %v852 = vmul.f32 -0.5, %v811
    %v853 = vadd.f32 %v852, 1.0
    %v854 = vmul.f32 %v853, %v811
    %v855 = vand.u32 2147483647, %v811
    %vm856 = vcmp.lt.f32.partialorder %v855, 0.0004427343
    %v857 = vsel %vm856, %v854, %v851
    %v858 = vadd.f32 %v813, 1.0
    %v859 = vlog2.pop %v858
    %v860 = vmul.f32 %v859, 0.6931472
    %v861 = vmul.f32 -0.5, %v813
    %v862 = vadd.f32 %v861, 1.0
    %v863 = vmul.f32 %v862, %v813
    %v864 = vand.u32 2147483647, %v813
    %vm865 = vcmp.lt.f32.partialorder %v864, 0.0004427343
    %v866 = vsel %vm865, %v863, %v860
    %v867 = vadd.f32 %v815, 1.0
    %v868 = vlog2.pop %v867
    %v869 = vmul.f32 %v868, 0.6931472
    %v870 = vmul.f32 -0.5, %v815
    %v871 = vadd.f32 %v870, 1.0
    %v872 = vmul.f32 %v871, %v815
    %v873 = vand.u32 2147483647, %v815
    %vm874 = vcmp.lt.f32.partialorder %v873, 0.0004427343
    %v875 = vsel %vm874, %v872, %v869
    %v876 = vadd.f32 %v817, 1.0
    %v877 = vlog2.pop %v876
    %v878 = vmul.f32 %v877, 0.6931472
    %v879 = vmul.f32 -0.5, %v817
    %v880 = vadd.f32 %v879, 1.0
    %v881 = vmul.f32 %v880, %v817
    %v882 = vand.u32 2147483647, %v817
    %vm883 = vcmp.lt.f32.partialorder %v882, 0.0004427343
    %v884 = vsel %vm883, %v881, %v878
    %v885 = vadd.f32 %v819, 1.0
    %v886 = vlog2.pop %v885
    %v887 = vmul.f32 %v886, 0.6931472
    %v888 = vmul.f32 -0.5, %v819
    %v889 = vadd.f32 %v888, 1.0
    %v890 = vmul.f32 %v889, %v819
    %v891 = vand.u32 2147483647, %v819
    %vm892 = vcmp.lt.f32.partialorder %v891, 0.0004427343
    %v893 = vsel %vm892, %v890, %v887
    %v894 = vadd.f32 %v821, 1.0
    %v895 = vlog2.pop %v894
    %v896 = vmul.f32 %v895, 0.6931472
    %v897 = vmul.f32 -0.5, %v821
    %v898 = vadd.f32 %v897, 1.0
    %v899 = vmul.f32 %v898, %v821
    %v900 = vand.u32 2147483647, %v821
    %vm901 = vcmp.lt.f32.partialorder %v900, 0.0004427343
    %v902 = vsel %vm901, %v899, %v896
    %v903 = vadd.f32 %v823, 1.0
    %v904 = vlog2.pop %v903
    %v905 = vmul.f32 %v904, 0.6931472
    %v906 = vmul.f32 -0.5, %v823
    %v907 = vadd.f32 %v906, 1.0
    %v908 = vmul.f32 %v907, %v823
    %v909 = vand.u32 2147483647, %v823
    %vm910 = vcmp.lt.f32.partialorder %v909, 0.0004427343
    %v911 = vsel %vm910, %v908, %v905
    %v912 = vadd.f32 %v825, 1.0
    %v913 = vlog2.pop %v912
    %v914 = vmul.f32 %v913, 0.6931472
    %v915 = vmul.f32 -0.5, %v825
    %v916 = vadd.f32 %v915, 1.0
    %v917 = vmul.f32 %v916, %v825
    %v918 = vand.u32 2147483647, %v825
    %vm919 = vcmp.lt.f32.partialorder %v918, 0.0004427343
    %v920 = vsel %vm919, %v917, %v914
    %v921 = vadd.f32 %v827, 1.0
    %v922 = vlog2.pop %v921
    %v923 = vmul.f32 %v922, 0.6931472
    %v924 = vmul.f32 -0.5, %v827
    %v925 = vadd.f32 %v924, 1.0
    %v926 = vmul.f32 %v925, %v827
    %v927 = vand.u32 2147483647, %v827
    %vm928 = vcmp.lt.f32.partialorder %v927, 0.0004427343
    %v929 = vsel %vm928, %v926, %v923
    %v930 = vadd.f32 %v829, 1.0
    %v931 = vlog2.pop %v930
    %v932 = vmul.f32 %v931, 0.6931472
    %v933 = vmul.f32 -0.5, %v829
    %v934 = vadd.f32 %v933, 1.0
    %v935 = vmul.f32 %v934, %v829
    %v936 = vand.u32 2147483647, %v829
    %vm937 = vcmp.lt.f32.partialorder %v936, 0.0004427343
    %v938 = vsel %vm937, %v935, %v932
    %v939 = vadd.f32 %v831, 1.0
    %v940 = vlog2.pop %v939
    %v941 = vmul.f32 %v940, 0.6931472
    %v942 = vmul.f32 -0.5, %v831
    %v943 = vadd.f32 %v942, 1.0
    %v944 = vmul.f32 %v943, %v831
    %v945 = vand.u32 2147483647, %v831
    %vm946 = vcmp.lt.f32.partialorder %v945, 0.0004427343
    %v947 = vsel %vm946, %v944, %v941
    %v948 = vadd.f32 %v833, 1.0
    %v949 = vlog2.pop %v948
    %v950 = vmul.f32 %v949, 0.6931472
    %v951 = vmul.f32 -0.5, %v833
    %v952 = vadd.f32 %v951, 1.0
    %v953 = vmul.f32 %v952, %v833
    %v954 = vand.u32 2147483647, %v833
    %vm955 = vcmp.lt.f32.partialorder %v954, 0.0004427343
    %v956 = vsel %vm955, %v953, %v950
    %v957 = vadd.f32 %v835, 1.0
    %v958 = vlog2.pop %v957
    %v959 = vmul.f32 %v958, 0.6931472
    %v960 = vmul.f32 -0.5, %v835
    %v961 = vadd.f32 %v960, 1.0
    %v962 = vmul.f32 %v961, %v835
    %v963 = vand.u32 2147483647, %v835
    %vm964 = vcmp.lt.f32.partialorder %v963, 0.0004427343
    %v965 = vsel %vm964, %v962, %v959
    %v966 = vadd.f32 %v837, 1.0
    %v967 = vlog2.pop %v966
    %v968 = vmul.f32 %v967, 0.6931472
    %v969 = vmul.f32 -0.5, %v837
    %v970 = vadd.f32 %v969, 1.0
    %v971 = vmul.f32 %v970, %v837
    %v972 = vand.u32 2147483647, %v837
    %vm973 = vcmp.lt.f32.partialorder %v972, 0.0004427343
    %v974 = vsel %vm973, %v971, %v968
    %v975 = vadd.f32 %v839, 1.0
    %v976 = vlog2.pop %v975
    %v977 = vmul.f32 %v976, 0.6931472
    %v978 = vmul.f32 -0.5, %v839
    %v979 = vadd.f32 %v978, 1.0
    %v980 = vmul.f32 %v979, %v839
    %v981 = vand.u32 2147483647, %v839
    %vm982 = vcmp.lt.f32.partialorder %v981, 0.0004427343
    %v983 = vsel %vm982, %v980, %v977
    %v984 = vmul.f32 %v848, 0.01
    %v985 = vmul.f32 %v857, 0.01
    %v986 = vmul.f32 %v866, 0.01
    %v987 = vmul.f32 %v875, 0.01
    %v988 = vmul.f32 %v884, 0.01
    %v989 = vmul.f32 %v893, 0.01
    %v990 = vmul.f32 %v902, 0.01
    %v991 = vmul.f32 %v911, 0.01
    %v992 = vmul.f32 %v920, 0.01
    %v993 = vmul.f32 %v929, 0.01
    %v994 = vmul.f32 %v938, 0.01
    %v995 = vmul.f32 %v947, 0.01
    %v996 = vmul.f32 %v956, 0.01
    %v997 = vmul.f32 %v965, 0.01
    %v998 = vmul.f32 %v974, 0.01
    %v999 = vmul.f32 %v983, 0.01
    %v1000 = vsel %vm792, %v649, %v984
    %v1001 = vsel %vm793, %v651, %v985
    %v1002 = vsel %vm794, %v738, %v986
    %v1003 = vsel %vm795, %v740, %v987
    %v1004 = vsel %vm796, %v655, %v988
    %v1005 = vsel %vm797, %v657, %v989
    %v1006 = vsel %vm798, %v744, %v990
    %v1007 = vsel %vm799, %v746, %v991
    %v1008 = vsel %vm800, %v661, %v992
    %v1009 = vsel %vm801, %v663, %v993
    %v1010 = vsel %vm802, %v750, %v994
    %v1011 = vsel %vm803, %v752, %v995
    %v1012 = vsel %vm804, %v667, %v996
    %v1013 = vsel %vm805, %v669, %v997
    %v1014 = vsel %vm806, %v756, %v998
    %v1015 = vsel %vm807, %v758, %v999
    %v1016 = vld [vmem:[%s3] sm:$0xff]
    %v1017 = vld [vmem:[%s3 + $0x8] sm:$0xff]
    %v1018 = vld [vmem:[%s3 + $0x10] sm:$0xff]
    %v1019 = vld [vmem:[%s3 + $0x18] sm:$0xff]
    %v1020 = vld [vmem:[%s10] sm:$0xff]
    %v1021 = vld [vmem:[%s10 + $0x8] sm:$0xff]
    %v1022 = vld [vmem:[%s10 + $0x10] sm:$0xff]
    %v1023 = vld [vmem:[%s10 + $0x18] sm:$0xff]
    %1025 = vset.pattern.permute.xlu0 0
    %1026 = vperm.xlu0 %1025, %v1020
    %v1027 = vpop.permute.xlu0 %1026
    %1030 = vset.pattern.permute.xlu0 0
    %1031 = vperm.xlu0 %1030, %v1021
    %v1032 = vpop.permute.xlu0 %1031
    %1035 = vset.pattern.permute.xlu0 0
    %1036 = vperm.xlu0 %1035, %v1022
    %v1037 = vpop.permute.xlu0 %1036
    %1040 = vset.pattern.permute.xlu0 0
    %1041 = vperm.xlu0 %1040, %v1023
    %v1042 = vpop.permute.xlu0 %1041
    %v1045 = vsel %vm569, %v1016, 0
    %v1048 = vsel %vm569, %v1017, 0
    %v1051 = vsel %vm569, %v1018, 0
    %v1054 = vsel %vm569, %v1019, 0
    %1056 = vmatprep.subr.mxu0 %v1001
    %1057 = vmatpush1.msra.mxu0 %v1000
    %1058 = vmatprep.subr.mxu0 %v1005
    %1059 = vmatpush1.msra.mxu0 %v1004
    %1060 = vmatprep.subr.mxu0 %v1009
    %1061 = vmatpush1.msra.mxu0 %v1008
    %1062 = vmatprep.subr.mxu0 %v1013
    %1063 = vmatpush1.msra.mxu0 %v1012
    %1064 = vmatprep.subr.mxu0 0.0
    %1065 = vmatpush1.msra.mxu0 0.0
    %1066 = vmatprep.subr.mxu0 0.0
    %1067 = vmatpush1.msra.mxu0 0.0
    %1068 = vmatprep.subr.mxu0 0.0
    %1069 = vmatpush1.msra.mxu0 0.0
    %1070 = vmatprep.subr.mxu0 0.0
    %1071 = vmatpush1.msra.mxu0 0.0
    %1072 = vmatprep.subr.mxu0 0.0
    %1073 = vmatpush1.msra.mxu0 0.0
    %1074 = vmatprep.subr.mxu0 0.0
    %1075 = vmatpush1.msra.mxu0 0.0
    %1076 = vmatprep.subr.mxu0 0.0
    %1077 = vmatpush1.msra.mxu0 0.0
    %1078 = vmatprep.subr.mxu0 0.0
    %1079 = vmatpush1.msra.mxu0 0.0
    %1080 = vmatprep.subr.mxu0 0.0
    %1081 = vmatpush1.msra.mxu0 0.0
    %1082 = vmatprep.subr.mxu0 0.0
    %1083 = vmatpush1.msra.mxu0 0.0
    %1084 = vmatprep.subr.mxu0 0.0
    %1085 = vmatpush1.msra.mxu0 0.0
    %1086 = vmatprep.subr.mxu0 0.0
    %1087 = vmatpush1.msra.mxu0 0.0
    %1088 = vmatprep.subr.mxu0 0.0
    %1089 = vmatpush1.msra.mxu0 0.0
    %1090 = vmatprep.subr.mxu0 0.0
    %1091 = vmatpush1.msra.mxu0 0.0
    %1092 = vmatprep.subr.mxu0 0.0
    %1093 = vmatpush1.msra.mxu0 0.0
    %1094 = vmatprep.subr.mxu0 0.0
    %1095 = vmatpush1.msra.mxu0 0.0
    %1096 = vmatprep.subr.mxu0 0.0
    %1097 = vmatpush1.msra.mxu0 0.0
    %1098 = vmatprep.subr.mxu0 0.0
    %1099 = vmatpush1.msra.mxu0 0.0
    %1100 = vmatprep.subr.mxu0 0.0
    %1101 = vmatpush1.msra.mxu0 0.0
    %1102 = vmatprep.subr.mxu0 0.0
    %1103 = vmatpush1.msra.mxu0 0.0
    %1104 = vmatprep.subr.mxu0 0.0
    %1105 = vmatpush1.msra.mxu0 0.0
    %1106 = vmatprep.subr.mxu0 0.0
    %1107 = vmatpush1.msra.mxu0 0.0
    %1108 = vmatprep.subr.mxu0 0.0
    %1109 = vmatpush1.msra.mxu0 0.0
    %1110 = vmatprep.subr.mxu0 0.0
    %1111 = vmatpush1.msra.mxu0 0.0
    %1112 = vmatprep.subr.mxu0 0.0
    %1113 = vmatpush1.msra.mxu0 0.0
    %1114 = vmatprep.subr.mxu0 0.0
    %1115 = vmatpush1.msra.mxu0 0.0
    %1116 = vmatprep.subr.mxu0 0.0
    %1117 = vmatpush1.msra.mxu0 0.0
    %1118 = vmatprep.subr.mxu0 0.0
    %1119 = vmatpush1.msra.mxu0 0.0
    %1120 = vmatprep.mubr.f32.mxu0 0.0
    %1121 = vmatmul.mubr.f32.gmra.mrb[0].mxu0 %v1045
    %v1122 = vpop.f32.mrb[0].mxu0
    %v1123 = vadd.f32 %v1027, %v1122
    %v1124 = vpop.f32.mrb[0].mxu0
    %v1125 = vadd.f32 %v1027, %v1124
    %1126 = vmatprep.mubr.f32.mxu0 0.0
    %1127 = vmatmul.mubr.f32.gmra.mrb[0].mxu0 %v1048
    %v1128 = vpop.f32.mrb[0].mxu0
    %v1129 = vadd.f32 %v1032, %v1128
    %v1130 = vpop.f32.mrb[0].mxu0
    %v1131 = vadd.f32 %v1032, %v1130
    %1132 = vmatprep.mubr.f32.mxu0 0.0
    %1133 = vmatmul.mubr.f32.gmra.mrb[0].mxu0 %v1051
    %v1134 = vpop.f32.mrb[0].mxu0
    %v1135 = vadd.f32 %v1037, %v1134
    %v1136 = vpop.f32.mrb[0].mxu0
    %v1137 = vadd.f32 %v1037, %v1136
    %1138 = vmatprep.mubr.f32.mxu0 0.0
    %1139 = vmatmul.mubr.f32.gmra.mrb[0].mxu0 %v1054
    %v1140 = vpop.f32.mrb[0].mxu0
    %v1141 = vadd.f32 %v1042, %v1140
    %v1142 = vpop.f32.mrb[0].mxu0
    %v1143 = vadd.f32 %v1042, %v1142
    %1144 = vdwg.mxu0
    %1145 = vmatprep.subr.mxu0 %v1003
    %1146 = vmatpush1.msra.mxu0 %v1002
    %1147 = vmatprep.subr.mxu0 %v1007
    %1148 = vmatpush1.msra.mxu0 %v1006
    %1149 = vmatprep.subr.mxu0 %v1011
    %1150 = vmatpush1.msra.mxu0 %v1010
    %1151 = vmatprep.subr.mxu0 %v1015
    %1152 = vmatpush1.msra.mxu0 %v1014
    %1153 = vmatprep.subr.mxu0 0.0
    %1154 = vmatpush1.msra.mxu0 0.0
    %1155 = vmatprep.subr.mxu0 0.0
    %1156 = vmatpush1.msra.mxu0 0.0
    %1157 = vmatprep.subr.mxu0 0.0
    %1158 = vmatpush1.msra.mxu0 0.0
    %1159 = vmatprep.subr.mxu0 0.0
    %1160 = vmatpush1.msra.mxu0 0.0
    %1161 = vmatprep.subr.mxu0 0.0
    %1162 = vmatpush1.msra.mxu0 0.0
    %1163 = vmatprep.subr.mxu0 0.0
    %1164 = vmatpush1.msra.mxu0 0.0
    %1165 = vmatprep.subr.mxu0 0.0
    %1166 = vmatpush1.msra.mxu0 0.0
    %1167 = vmatprep.subr.mxu0 0.0
    %1168 = vmatpush1.msra.mxu0 0.0
    %1169 = vmatprep.subr.mxu0 0.0
    %1170 = vmatpush1.msra.mxu0 0.0
    %1171 = vmatprep.subr.mxu0 0.0
    %1172 = vmatpush1.msra.mxu0 0.0
    %1173 = vmatprep.subr.mxu0 0.0
    %1174 = vmatpush1.msra.mxu0 0.0
    %1175 = vmatprep.subr.mxu0 0.0
    %1176 = vmatpush1.msra.mxu0 0.0
    %1177 = vmatprep.subr.mxu0 0.0
    %1178 = vmatpush1.msra.mxu0 0.0
    %1179 = vmatprep.subr.mxu0 0.0
    %1180 = vmatpush1.msra.mxu0 0.0
    %1181 = vmatprep.subr.mxu0 0.0
    %1182 = vmatpush1.msra.mxu0 0.0
    %1183 = vmatprep.subr.mxu0 0.0
    %1184 = vmatpush1.msra.mxu0 0.0
    %1185 = vmatprep.subr.mxu0 0.0
    %1186 = vmatpush1.msra.mxu0 0.0
    %1187 = vmatprep.subr.mxu0 0.0
    %1188 = vmatpush1.msra.mxu0 0.0
    %1189 = vmatprep.subr.mxu0 0.0
    %1190 = vmatpush1.msra.mxu0 0.0
    %1191 = vmatprep.subr.mxu0 0.0
    %1192 = vmatpush1.msra.mxu0 0.0
    %1193 = vmatprep.subr.mxu0 0.0
    %1194 = vmatpush1.msra.mxu0 0.0
    %1195 = vmatprep.subr.mxu0 0.0
    %1196 = vmatpush1.msra.mxu0 0.0
    %1197 = vmatprep.subr.mxu0 0.0
    %1198 = vmatpush1.msra.mxu0 0.0
    %1199 = vmatprep.subr.mxu0 0.0
    %1200 = vmatpush1.msra.mxu0 0.0
    %1201 = vmatprep.subr.mxu0 0.0
    %1202 = vmatpush1.msra.mxu0 0.0
    %1203 = vmatprep.subr.mxu0 0.0
    %1204 = vmatpush1.msra.mxu0 0.0
    %1205 = vmatprep.subr.mxu0 0.0
    %1206 = vmatpush1.msra.mxu0 0.0
    %1207 = vmatprep.subr.mxu0 0.0
    %1208 = vmatpush1.msra.mxu0 0.0
    %1209 = vmatprep.mubr.f32.mxu0 0.0
    %1210 = vmatmul.mubr.f32.gmra.mrb[0].mxu0 %v1045
    %v1211 = vpop.f32.mrb[0].mxu0
    %v1212 = vadd.f32 %v1027, %v1211
    %v1213 = vpop.f32.mrb[0].mxu0
    %v1214 = vadd.f32 %v1027, %v1213
    %1215 = vmatprep.mubr.f32.mxu0 0.0
    %1216 = vmatmul.mubr.f32.gmra.mrb[0].mxu0 %v1048
    %v1217 = vpop.f32.mrb[0].mxu0
    %v1218 = vadd.f32 %v1032, %v1217
    %v1219 = vpop.f32.mrb[0].mxu0
    %v1220 = vadd.f32 %v1032, %v1219
    %1221 = vmatprep.mubr.f32.mxu0 0.0
    %1222 = vmatmul.mubr.f32.gmra.mrb[0].mxu0 %v1051
    %v1223 = vpop.f32.mrb[0].mxu0
    %v1224 = vadd.f32 %v1037, %v1223
    %v1225 = vpop.f32.mrb[0].mxu0
    %v1226 = vadd.f32 %v1037, %v1225
    %1227 = vmatprep.mubr.f32.mxu0 0.0
    %1228 = vmatmul.mubr.f32.gmra.mrb[0].mxu0 %v1054
    %v1229 = vpop.f32.mrb[0].mxu0
    %v1230 = vadd.f32 %v1042, %v1229
    %v1231 = vpop.f32.mrb[0].mxu0
    %v1232 = vadd.f32 %v1042, %v1231
    %1233 = vdwg.mxu0
    %v1234 = vmul.f32 %v1123, 100.0
    %v1235 = vmul.f32 %v1125, 100.0
    %v1236 = vmul.f32 %v1212, 100.0
    %v1237 = vmul.f32 %v1214, 100.0
    %v1238 = vmul.f32 %v1129, 100.0
    %v1239 = vmul.f32 %v1131, 100.0
    %v1240 = vmul.f32 %v1218, 100.0
    %v1241 = vmul.f32 %v1220, 100.0
    %v1242 = vmul.f32 %v1135, 100.0
    %v1243 = vmul.f32 %v1137, 100.0
    %v1244 = vmul.f32 %v1224, 100.0
    %v1245 = vmul.f32 %v1226, 100.0
    %v1246 = vmul.f32 %v1141, 100.0
    %v1247 = vmul.f32 %v1143, 100.0
    %v1248 = vmul.f32 %v1230, 100.0
    %v1249 = vmul.f32 %v1232, 100.0
    %v1250 = vmin.f32 %v1234, 20.0
    %v1251 = vmin.f32 %v1235, 20.0
    %v1252 = vmin.f32 %v1236, 20.0
    %v1253 = vmin.f32 %v1237, 20.0
    %v1254 = vmin.f32 %v1238, 20.0
    %v1255 = vmin.f32 %v1239, 20.0
    %v1256 = vmin.f32 %v1240, 20.0
    %v1257 = vmin.f32 %v1241, 20.0
    %v1258 = vmin.f32 %v1242, 20.0
    %v1259 = vmin.f32 %v1243, 20.0
    %v1260 = vmin.f32 %v1244, 20.0
    %v1261 = vmin.f32 %v1245, 20.0
    %v1262 = vmin.f32 %v1246, 20.0
    %v1263 = vmin.f32 %v1247, 20.0
    %v1264 = vmin.f32 %v1248, 20.0
    %v1265 = vmin.f32 %v1249, 20.0
    %vm1266 = vcmp.gt.f32.partialorder %v1234, 20.0
    %vm1267 = vcmp.gt.f32.partialorder %v1235, 20.0
    %vm1268 = vcmp.gt.f32.partialorder %v1236, 20.0
    %vm1269 = vcmp.gt.f32.partialorder %v1237, 20.0
    %vm1270 = vcmp.gt.f32.partialorder %v1238, 20.0
    %vm1271 = vcmp.gt.f32.partialorder %v1239, 20.0
    %vm1272 = vcmp.gt.f32.partialorder %v1240, 20.0
    %vm1273 = vcmp.gt.f32.partialorder %v1241, 20.0
    %vm1274 = vcmp.gt.f32.partialorder %v1242, 20.0
    %vm1275 = vcmp.gt.f32.partialorder %v1243, 20.0
    %vm1276 = vcmp.gt.f32.partialorder %v1244, 20.0
    %vm1277 = vcmp.gt.f32.partialorder %v1245, 20.0
    %vm1278 = vcmp.gt.f32.partialorder %v1246, 20.0
    %vm1279 = vcmp.gt.f32.partialorder %v1247, 20.0
    %vm1280 = vcmp.gt.f32.partialorder %v1248, 20.0
    %vm1281 = vcmp.gt.f32.partialorder %v1249, 20.0
    %v1282 = vmul.f32 %v1250, 1.442695
    %v1283 = vpow.pop %v1282
    %v1284 = vmul.f32 %v1251, 1.442695
    %v1285 = vpow.pop %v1284
    %v1286 = vmul.f32 %v1252, 1.442695
    %v1287 = vpow.pop %v1286
    %v1288 = vmul.f32 %v1253, 1.442695
    %v1289 = vpow.pop %v1288
    %v1290 = vmul.f32 %v1254, 1.442695
    %v1291 = vpow.pop %v1290
    %v1292 = vmul.f32 %v1255, 1.442695
    %v1293 = vpow.pop %v1292
    %v1294 = vmul.f32 %v1256, 1.442695
    %v1295 = vpow.pop %v1294
    %v1296 = vmul.f32 %v1257, 1.442695
    %v1297 = vpow.pop %v1296
    %v1298 = vmul.f32 %v1258, 1.442695
    %v1299 = vpow.pop %v1298
    %v1300 = vmul.f32 %v1259, 1.442695
    %v1301 = vpow.pop %v1300
    %v1302 = vmul.f32 %v1260, 1.442695
    %v1303 = vpow.pop %v1302
    %v1304 = vmul.f32 %v1261, 1.442695
    %v1305 = vpow.pop %v1304
    %v1306 = vmul.f32 %v1262, 1.442695
    %v1307 = vpow.pop %v1306
    %v1308 = vmul.f32 %v1263, 1.442695
    %v1309 = vpow.pop %v1308
    %v1310 = vmul.f32 %v1264, 1.442695
    %v1311 = vpow.pop %v1310
    %v1312 = vmul.f32 %v1265, 1.442695
    %v1313 = vpow.pop %v1312
    %v1314 = vadd.f32 %v1283, 1.0
    %v1315 = vlog2.pop %v1314
    %v1316 = vmul.f32 %v1315, 0.6931472
    %v1317 = vmul.f32 -0.5, %v1283
    %v1318 = vadd.f32 %v1317, 1.0
    %v1319 = vmul.f32 %v1318, %v1283
    %v1320 = vand.u32 2147483647, %v1283
    %vm1321 = vcmp.lt.f32.partialorder %v1320, 0.0004427343
    %v1322 = vsel %vm1321, %v1319, %v1316
    %v1323 = vadd.f32 %v1285, 1.0
    %v1324 = vlog2.pop %v1323
    %v1325 = vmul.f32 %v1324, 0.6931472
    %v1326 = vmul.f32 -0.5, %v1285
    %v1327 = vadd.f32 %v1326, 1.0
    %v1328 = vmul.f32 %v1327, %v1285
    %v1329 = vand.u32 2147483647, %v1285
    %vm1330 = vcmp.lt.f32.partialorder %v1329, 0.0004427343
    %v1331 = vsel %vm1330, %v1328, %v1325
    %v1332 = vadd.f32 %v1287, 1.0
    %v1333 = vlog2.pop %v1332
    %v1334 = vmul.f32 %v1333, 0.6931472
    %v1335 = vmul.f32 -0.5, %v1287
    %v1336 = vadd.f32 %v1335, 1.0
    %v1337 = vmul.f32 %v1336, %v1287
    %v1338 = vand.u32 2147483647, %v1287
    %vm1339 = vcmp.lt.f32.partialorder %v1338, 0.0004427343
    %v1340 = vsel %vm1339, %v1337, %v1334
    %v1341 = vadd.f32 %v1289, 1.0
    %v1342 = vlog2.pop %v1341
    %v1343 = vmul.f32 %v1342, 0.6931472
    %v1344 = vmul.f32 -0.5, %v1289
    %v1345 = vadd.f32 %v1344, 1.0
    %v1346 = vmul.f32 %v1345, %v1289
    %v1347 = vand.u32 2147483647, %v1289
    %vm1348 = vcmp.lt.f32.partialorder %v1347, 0.0004427343
    %v1349 = vsel %vm1348, %v1346, %v1343
    %v1350 = vadd.f32 %v1291, 1.0
    %v1351 = vlog2.pop %v1350
    %v1352 = vmul.f32 %v1351, 0.6931472
    %v1353 = vmul.f32 -0.5, %v1291
    %v1354 = vadd.f32 %v1353, 1.0
    %v1355 = vmul.f32 %v1354, %v1291
    %v1356 = vand.u32 2147483647, %v1291
    %vm1357 = vcmp.lt.f32.partialorder %v1356, 0.0004427343
    %v1358 = vsel %vm1357, %v1355, %v1352
    %v1359 = vadd.f32 %v1293, 1.0
    %v1360 = vlog2.pop %v1359
    %v1361 = vmul.f32 %v1360, 0.6931472
    %v1362 = vmul.f32 -0.5, %v1293
    %v1363 = vadd.f32 %v1362, 1.0
    %v1364 = vmul.f32 %v1363, %v1293
    %v1365 = vand.u32 2147483647, %v1293
    %vm1366 = vcmp.lt.f32.partialorder %v1365, 0.0004427343
    %v1367 = vsel %vm1366, %v1364, %v1361
    %v1368 = vadd.f32 %v1295, 1.0
    %v1369 = vlog2.pop %v1368
    %v1370 = vmul.f32 %v1369, 0.6931472
    %v1371 = vmul.f32 -0.5, %v1295
    %v1372 = vadd.f32 %v1371, 1.0
    %v1373 = vmul.f32 %v1372, %v1295
    %v1374 = vand.u32 2147483647, %v1295
    %vm1375 = vcmp.lt.f32.partialorder %v1374, 0.0004427343
    %v1376 = vsel %vm1375, %v1373, %v1370
    %v1377 = vadd.f32 %v1297, 1.0
    %v1378 = vlog2.pop %v1377
    %v1379 = vmul.f32 %v1378, 0.6931472
    %v1380 = vmul.f32 -0.5, %v1297
    %v1381 = vadd.f32 %v1380, 1.0
    %v1382 = vmul.f32 %v1381, %v1297
    %v1383 = vand.u32 2147483647, %v1297
    %vm1384 = vcmp.lt.f32.partialorder %v1383, 0.0004427343
    %v1385 = vsel %vm1384, %v1382, %v1379
    %v1386 = vadd.f32 %v1299, 1.0
    %v1387 = vlog2.pop %v1386
    %v1388 = vmul.f32 %v1387, 0.6931472
    %v1389 = vmul.f32 -0.5, %v1299
    %v1390 = vadd.f32 %v1389, 1.0
    %v1391 = vmul.f32 %v1390, %v1299
    %v1392 = vand.u32 2147483647, %v1299
    %vm1393 = vcmp.lt.f32.partialorder %v1392, 0.0004427343
    %v1394 = vsel %vm1393, %v1391, %v1388
    %v1395 = vadd.f32 %v1301, 1.0
    %v1396 = vlog2.pop %v1395
    %v1397 = vmul.f32 %v1396, 0.6931472
    %v1398 = vmul.f32 -0.5, %v1301
    %v1399 = vadd.f32 %v1398, 1.0
    %v1400 = vmul.f32 %v1399, %v1301
    %v1401 = vand.u32 2147483647, %v1301
    %vm1402 = vcmp.lt.f32.partialorder %v1401, 0.0004427343
    %v1403 = vsel %vm1402, %v1400, %v1397
    %v1404 = vadd.f32 %v1303, 1.0
    %v1405 = vlog2.pop %v1404
    %v1406 = vmul.f32 %v1405, 0.6931472
    %v1407 = vmul.f32 -0.5, %v1303
    %v1408 = vadd.f32 %v1407, 1.0
    %v1409 = vmul.f32 %v1408, %v1303
    %v1410 = vand.u32 2147483647, %v1303
    %vm1411 = vcmp.lt.f32.partialorder %v1410, 0.0004427343
    %v1412 = vsel %vm1411, %v1409, %v1406
    %v1413 = vadd.f32 %v1305, 1.0
    %v1414 = vlog2.pop %v1413
    %v1415 = vmul.f32 %v1414, 0.6931472
    %v1416 = vmul.f32 -0.5, %v1305
    %v1417 = vadd.f32 %v1416, 1.0
    %v1418 = vmul.f32 %v1417, %v1305
    %v1419 = vand.u32 2147483647, %v1305
    %vm1420 = vcmp.lt.f32.partialorder %v1419, 0.0004427343
    %v1421 = vsel %vm1420, %v1418, %v1415
    %v1422 = vadd.f32 %v1307, 1.0
    %v1423 = vlog2.pop %v1422
    %v1424 = vmul.f32 %v1423, 0.6931472
    %v1425 = vmul.f32 -0.5, %v1307
    %v1426 = vadd.f32 %v1425, 1.0
    %v1427 = vmul.f32 %v1426, %v1307
    %v1428 = vand.u32 2147483647, %v1307
    %vm1429 = vcmp.lt.f32.partialorder %v1428, 0.0004427343
    %v1430 = vsel %vm1429, %v1427, %v1424
    %v1431 = vadd.f32 %v1309, 1.0
    %v1432 = vlog2.pop %v1431
    %v1433 = vmul.f32 %v1432, 0.6931472
    %v1434 = vmul.f32 -0.5, %v1309
    %v1435 = vadd.f32 %v1434, 1.0
    %v1436 = vmul.f32 %v1435, %v1309
    %v1437 = vand.u32 2147483647, %v1309
    %vm1438 = vcmp.lt.f32.partialorder %v1437, 0.0004427343
    %v1439 = vsel %vm1438, %v1436, %v1433
    %v1440 = vadd.f32 %v1311, 1.0
    %v1441 = vlog2.pop %v1440
    %v1442 = vmul.f32 %v1441, 0.6931472
    %v1443 = vmul.f32 -0.5, %v1311
    %v1444 = vadd.f32 %v1443, 1.0
    %v1445 = vmul.f32 %v1444, %v1311
    %v1446 = vand.u32 2147483647, %v1311
    %vm1447 = vcmp.lt.f32.partialorder %v1446, 0.0004427343
    %v1448 = vsel %vm1447, %v1445, %v1442
    %v1449 = vadd.f32 %v1313, 1.0
    %v1450 = vlog2.pop %v1449
    %v1451 = vmul.f32 %v1450, 0.6931472
    %v1452 = vmul.f32 -0.5, %v1313
    %v1453 = vadd.f32 %v1452, 1.0
    %v1454 = vmul.f32 %v1453, %v1313
    %v1455 = vand.u32 2147483647, %v1313
    %vm1456 = vcmp.lt.f32.partialorder %v1455, 0.0004427343
    %v1457 = vsel %vm1456, %v1454, %v1451
    %v1458 = vmul.f32 %v1322, 0.01
    %v1459 = vmul.f32 %v1331, 0.01
    %v1460 = vmul.f32 %v1340, 0.01
    %v1461 = vmul.f32 %v1349, 0.01
    %v1462 = vmul.f32 %v1358, 0.01
    %v1463 = vmul.f32 %v1367, 0.01
    %v1464 = vmul.f32 %v1376, 0.01
    %v1465 = vmul.f32 %v1385, 0.01
    %v1466 = vmul.f32 %v1394, 0.01
    %v1467 = vmul.f32 %v1403, 0.01
    %v1468 = vmul.f32 %v1412, 0.01
    %v1469 = vmul.f32 %v1421, 0.01
    %v1470 = vmul.f32 %v1430, 0.01
    %v1471 = vmul.f32 %v1439, 0.01
    %v1472 = vmul.f32 %v1448, 0.01
    %v1473 = vmul.f32 %v1457, 0.01
    %v1474 = vsel %vm1266, %v1123, %v1458
    %v1475 = vsel %vm1267, %v1125, %v1459
    %v1476 = vsel %vm1268, %v1212, %v1460
    %v1477 = vsel %vm1269, %v1214, %v1461
    %v1478 = vsel %vm1270, %v1129, %v1462
    %v1479 = vsel %vm1271, %v1131, %v1463
    %v1480 = vsel %vm1272, %v1218, %v1464
    %v1481 = vsel %vm1273, %v1220, %v1465
    %v1482 = vsel %vm1274, %v1135, %v1466
    %v1483 = vsel %vm1275, %v1137, %v1467
    %v1484 = vsel %vm1276, %v1224, %v1468
    %v1485 = vsel %vm1277, %v1226, %v1469
    %v1486 = vsel %vm1278, %v1141, %v1470
    %v1487 = vsel %vm1279, %v1143, %v1471
    %v1488 = vsel %vm1280, %v1230, %v1472
    %v1489 = vsel %vm1281, %v1232, %v1473
    %v1490 = vld [vmem:[%s4] sm:$0xff]
    %v1491 = vld [vmem:[%s4 + $0x8] sm:$0xff]
    %v1492 = vld [vmem:[%s4 + $0x10] sm:$0xff]
    %v1493 = vld [vmem:[%s4 + $0x18] sm:$0x1f]
    %v1494 = vld [vmem:[%s11] sm:$0xff]
    %v1495 = vld [vmem:[%s11 + $0x8] sm:$0xff]
    %v1496 = vld [vmem:[%s11 + $0x10] sm:$0xff]
    %v1497 = vld [vmem:[%s11 + $0x18] sm:$0x1f]
    %1499 = vset.pattern.permute.xlu0 0
    %1500 = vperm.xlu0 %1499, %v1494
    %v1501 = vpop.permute.xlu0 %1500
    %1504 = vset.pattern.permute.xlu0 0
    %1505 = vperm.xlu0 %1504, %v1495
    %v1506 = vpop.permute.xlu0 %1505
    %1509 = vset.pattern.permute.xlu0 0
    %1510 = vperm.xlu0 %1509, %v1496
    %v1511 = vpop.permute.xlu0 %1510
    %1514 = vset.pattern.permute.xlu0 0
    %1515 = vperm.xlu0 %1514, %v1497
    %v1516 = vpop.permute.xlu0 %1515
    %v1519 = vsel %vm569, %v1490, 0
    %v1522 = vsel %vm569, %v1491, 0
    %v1525 = vsel %vm569, %v1492, 0
    %v1528 = vsel %vm569, %v1493, 0
    %1530 = vmatprep.subr.mxu0 %v1475
    %1531 = vmatpush1.msra.mxu0 %v1474
    %1532 = vmatprep.subr.mxu0 %v1479
    %1533 = vmatpush1.msra.mxu0 %v1478
    %1534 = vmatprep.subr.mxu0 %v1483
    %1535 = vmatpush1.msra.mxu0 %v1482
    %1536 = vmatprep.subr.mxu0 %v1487
    %1537 = vmatpush1.msra.mxu0 %v1486
    %1538 = vmatprep.subr.mxu0 0.0
    %1539 = vmatpush1.msra.mxu0 0.0
    %1540 = vmatprep.subr.mxu0 0.0
    %1541 = vmatpush1.msra.mxu0 0.0
    %1542 = vmatprep.subr.mxu0 0.0
    %1543 = vmatpush1.msra.mxu0 0.0
    %1544 = vmatprep.subr.mxu0 0.0
    %1545 = vmatpush1.msra.mxu0 0.0
    %1546 = vmatprep.subr.mxu0 0.0
    %1547 = vmatpush1.msra.mxu0 0.0
    %1548 = vmatprep.subr.mxu0 0.0
    %1549 = vmatpush1.msra.mxu0 0.0
    %1550 = vmatprep.subr.mxu0 0.0
    %1551 = vmatpush1.msra.mxu0 0.0
    %1552 = vmatprep.subr.mxu0 0.0
    %1553 = vmatpush1.msra.mxu0 0.0
    %1554 = vmatprep.subr.mxu0 0.0
    %1555 = vmatpush1.msra.mxu0 0.0
    %1556 = vmatprep.subr.mxu0 0.0
    %1557 = vmatpush1.msra.mxu0 0.0
    %1558 = vmatprep.subr.mxu0 0.0
    %1559 = vmatpush1.msra.mxu0 0.0
    %1560 = vmatprep.subr.mxu0 0.0
    %1561 = vmatpush1.msra.mxu0 0.0
    %1562 = vmatprep.subr.mxu0 0.0
    %1563 = vmatpush1.msra.mxu0 0.0
    %1564 = vmatprep.subr.mxu0 0.0
    %1565 = vmatpush1.msra.mxu0 0.0
    %1566 = vmatprep.subr.mxu0 0.0
    %1567 = vmatpush1.msra.mxu0 0.0
    %1568 = vmatprep.subr.mxu0 0.0
    %1569 = vmatpush1.msra.mxu0 0.0
    %1570 = vmatprep.subr.mxu0 0.0
    %1571 = vmatpush1.msra.mxu0 0.0
    %1572 = vmatprep.subr.mxu0 0.0
    %1573 = vmatpush1.msra.mxu0 0.0
    %1574 = vmatprep.subr.mxu0 0.0
    %1575 = vmatpush1.msra.mxu0 0.0
    %1576 = vmatprep.subr.mxu0 0.0
    %1577 = vmatpush1.msra.mxu0 0.0
    %1578 = vmatprep.subr.mxu0 0.0
    %1579 = vmatpush1.msra.mxu0 0.0
    %1580 = vmatprep.subr.mxu0 0.0
    %1581 = vmatpush1.msra.mxu0 0.0
    %1582 = vmatprep.subr.mxu0 0.0
    %1583 = vmatpush1.msra.mxu0 0.0
    %1584 = vmatprep.subr.mxu0 0.0
    %1585 = vmatpush1.msra.mxu0 0.0
    %1586 = vmatprep.subr.mxu0 0.0
    %1587 = vmatpush1.msra.mxu0 0.0
    %1588 = vmatprep.subr.mxu0 0.0
    %1589 = vmatpush1.msra.mxu0 0.0
    %1590 = vmatprep.subr.mxu0 0.0
    %1591 = vmatpush1.msra.mxu0 0.0
    %1592 = vmatprep.subr.mxu0 0.0
    %1593 = vmatpush1.msra.mxu0 0.0
    %1594 = vmatprep.mubr.f32.mxu0 0.0
    %1595 = vmatmul.mubr.f32.gmra.mrb[0].mxu0 %v1519
    %v1596 = vpop.f32.mrb[0].mxu0
    %v1597 = vadd.f32 %v1501, %v1596
    %v1598 = vpop.f32.mrb[0].mxu0
    %v1599 = vadd.f32 %v1501, %v1598
    %1600 = vmatprep.mubr.f32.mxu0 0.0
    %1601 = vmatmul.mubr.f32.gmra.mrb[0].mxu0 %v1522
    %v1602 = vpop.f32.mrb[0].mxu0
    %v1603 = vadd.f32 %v1506, %v1602
    %v1604 = vpop.f32.mrb[0].mxu0
    %v1605 = vadd.f32 %v1506, %v1604
    %1606 = vmatprep.mubr.f32.mxu0 0.0
    %1607 = vmatmul.mubr.f32.gmra.mrb[0].mxu0 %v1525
    %v1608 = vpop.f32.mrb[0].mxu0
    %v1609 = vadd.f32 %v1511, %v1608
    %v1610 = vpop.f32.mrb[0].mxu0
    %v1611 = vadd.f32 %v1511, %v1610
    %1612 = vmatprep.mubr.f32.mxu0 0.0
    %1613 = vmatmul.mubr.f32.gmra.mrb[0].mxu0 %v1528
    %v1614 = vpop.f32.mrb[0].mxu0
    %v1615 = vadd.f32 %v1516, %v1614
    %v1616 = vpop.f32.mrb[0].mxu0
    %v1617 = vadd.f32 %v1516, %v1616
    %1618 = vdwg.mxu0
    %1619 = vmatprep.subr.mxu0 %v1477
    %1620 = vmatpush1.msra.mxu0 %v1476
    %1621 = vmatprep.subr.mxu0 %v1481
    %1622 = vmatpush1.msra.mxu0 %v1480
    %1623 = vmatprep.subr.mxu0 %v1485
    %1624 = vmatpush1.msra.mxu0 %v1484
    %1625 = vmatprep.subr.mxu0 %v1489
    %1626 = vmatpush1.msra.mxu0 %v1488
    %1627 = vmatprep.subr.mxu0 0.0
    %1628 = vmatpush1.msra.mxu0 0.0
    %1629 = vmatprep.subr.mxu0 0.0
    %1630 = vmatpush1.msra.mxu0 0.0
    %1631 = vmatprep.subr.mxu0 0.0
    %1632 = vmatpush1.msra.mxu0 0.0
    %1633 = vmatprep.subr.mxu0 0.0
    %1634 = vmatpush1.msra.mxu0 0.0
    %1635 = vmatprep.subr.mxu0 0.0
    %1636 = vmatpush1.msra.mxu0 0.0
    %1637 = vmatprep.subr.mxu0 0.0
    %1638 = vmatpush1.msra.mxu0 0.0
    %1639 = vmatprep.subr.mxu0 0.0
    %1640 = vmatpush1.msra.mxu0 0.0
    %1641 = vmatprep.subr.mxu0 0.0
    %1642 = vmatpush1.msra.mxu0 0.0
    %1643 = vmatprep.subr.mxu0 0.0
    %1644 = vmatpush1.msra.mxu0 0.0
    %1645 = vmatprep.subr.mxu0 0.0
    %1646 = vmatpush1.msra.mxu0 0.0
    %1647 = vmatprep.subr.mxu0 0.0
    %1648 = vmatpush1.msra.mxu0 0.0
    %1649 = vmatprep.subr.mxu0 0.0
    %1650 = vmatpush1.msra.mxu0 0.0
    %1651 = vmatprep.subr.mxu0 0.0
    %1652 = vmatpush1.msra.mxu0 0.0
    %1653 = vmatprep.subr.mxu0 0.0
    %1654 = vmatpush1.msra.mxu0 0.0
    %1655 = vmatprep.subr.mxu0 0.0
    %1656 = vmatpush1.msra.mxu0 0.0
    %1657 = vmatprep.subr.mxu0 0.0
    %1658 = vmatpush1.msra.mxu0 0.0
    %1659 = vmatprep.subr.mxu0 0.0
    %1660 = vmatpush1.msra.mxu0 0.0
    %1661 = vmatprep.subr.mxu0 0.0
    %1662 = vmatpush1.msra.mxu0 0.0
    %1663 = vmatprep.subr.mxu0 0.0
    %1664 = vmatpush1.msra.mxu0 0.0
    %1665 = vmatprep.subr.mxu0 0.0
    %1666 = vmatpush1.msra.mxu0 0.0
    %1667 = vmatprep.subr.mxu0 0.0
    %1668 = vmatpush1.msra.mxu0 0.0
    %1669 = vmatprep.subr.mxu0 0.0
    %1670 = vmatpush1.msra.mxu0 0.0
    %1671 = vmatprep.subr.mxu0 0.0
    %1672 = vmatpush1.msra.mxu0 0.0
    %1673 = vmatprep.subr.mxu0 0.0
    %1674 = vmatpush1.msra.mxu0 0.0
    %1675 = vmatprep.subr.mxu0 0.0
    %1676 = vmatpush1.msra.mxu0 0.0
    %1677 = vmatprep.subr.mxu0 0.0
    %1678 = vmatpush1.msra.mxu0 0.0
    %1679 = vmatprep.subr.mxu0 0.0
    %1680 = vmatpush1.msra.mxu0 0.0
    %1681 = vmatprep.subr.mxu0 0.0
    %1682 = vmatpush1.msra.mxu0 0.0
    %1683 = vmatprep.mubr.f32.mxu0 0.0
    %1684 = vmatmul.mubr.f32.gmra.mrb[0].mxu0 %v1519
    %v1685 = vpop.f32.mrb[0].mxu0
    %v1686 = vadd.f32 %v1501, %v1685
    %v1687 = vpop.f32.mrb[0].mxu0
    %v1688 = vadd.f32 %v1501, %v1687
    %1689 = vmatprep.mubr.f32.mxu0 0.0
    %1690 = vmatmul.mubr.f32.gmra.mrb[0].mxu0 %v1522
    %v1691 = vpop.f32.mrb[0].mxu0
    %v1692 = vadd.f32 %v1506, %v1691
    %v1693 = vpop.f32.mrb[0].mxu0
    %v1694 = vadd.f32 %v1506, %v1693
    %1695 = vmatprep.mubr.f32.mxu0 0.0
    %1696 = vmatmul.mubr.f32.gmra.mrb[0].mxu0 %v1525
    %v1697 = vpop.f32.mrb[0].mxu0
    %v1698 = vadd.f32 %v1511, %v1697
    %v1699 = vpop.f32.mrb[0].mxu0
    %v1700 = vadd.f32 %v1511, %v1699
    %1701 = vmatprep.mubr.f32.mxu0 0.0
    %1702 = vmatmul.mubr.f32.gmra.mrb[0].mxu0 %v1528
    %v1703 = vpop.f32.mrb[0].mxu0
    %v1704 = vadd.f32 %v1516, %v1703
    %v1705 = vpop.f32.mrb[0].mxu0
    %v1706 = vadd.f32 %v1516, %v1705
    %1707 = vdwg.mxu0
    %v1708 = vmul.f32 %v1597, 100.0
    %v1709 = vmul.f32 %v1599, 100.0
    %v1710 = vmul.f32 %v1686, 100.0
    %v1711 = vmul.f32 %v1688, 100.0
    %v1712 = vmul.f32 %v1603, 100.0
    %v1713 = vmul.f32 %v1605, 100.0
    %v1714 = vmul.f32 %v1692, 100.0
    %v1715 = vmul.f32 %v1694, 100.0
    %v1716 = vmul.f32 %v1609, 100.0
    %v1717 = vmul.f32 %v1611, 100.0
    %v1718 = vmul.f32 %v1698, 100.0
    %v1719 = vmul.f32 %v1700, 100.0
    %v1720 = vmul.f32 %v1615, 100.0
    %v1721 = vmul.f32 %v1617, 100.0
    %v1722 = vmul.f32 %v1704, 100.0
    %v1723 = vmul.f32 %v1706, 100.0
    %v1724 = vmin.f32 %v1708, 20.0
    %v1725 = vmin.f32 %v1709, 20.0
    %v1726 = vmin.f32 %v1710, 20.0
    %v1727 = vmin.f32 %v1711, 20.0
    %v1728 = vmin.f32 %v1712, 20.0
    %v1729 = vmin.f32 %v1713, 20.0
    %v1730 = vmin.f32 %v1714, 20.0
    %v1731 = vmin.f32 %v1715, 20.0
    %v1732 = vmin.f32 %v1716, 20.0
    %v1733 = vmin.f32 %v1717, 20.0
    %v1734 = vmin.f32 %v1718, 20.0
    %v1735 = vmin.f32 %v1719, 20.0
    %v1736 = vmin.f32 %v1720, 20.0
    %v1737 = vmin.f32 %v1721, 20.0
    %v1738 = vmin.f32 %v1722, 20.0
    %v1739 = vmin.f32 %v1723, 20.0
    %vm1740 = vcmp.gt.f32.partialorder %v1708, 20.0
    %vm1741 = vcmp.gt.f32.partialorder %v1709, 20.0
    %vm1742 = vcmp.gt.f32.partialorder %v1710, 20.0
    %vm1743 = vcmp.gt.f32.partialorder %v1711, 20.0
    %vm1744 = vcmp.gt.f32.partialorder %v1712, 20.0
    %vm1745 = vcmp.gt.f32.partialorder %v1713, 20.0
    %vm1746 = vcmp.gt.f32.partialorder %v1714, 20.0
    %vm1747 = vcmp.gt.f32.partialorder %v1715, 20.0
    %vm1748 = vcmp.gt.f32.partialorder %v1716, 20.0
    %vm1749 = vcmp.gt.f32.partialorder %v1717, 20.0
    %vm1750 = vcmp.gt.f32.partialorder %v1718, 20.0
    %vm1751 = vcmp.gt.f32.partialorder %v1719, 20.0
    %vm1752 = vcmp.gt.f32.partialorder %v1720, 20.0
    %vm1753 = vcmp.gt.f32.partialorder %v1721, 20.0
    %vm1754 = vcmp.gt.f32.partialorder %v1722, 20.0
    %vm1755 = vcmp.gt.f32.partialorder %v1723, 20.0
    %v1756 = vmul.f32 %v1724, 1.442695
    %v1757 = vpow.pop %v1756
    %v1758 = vmul.f32 %v1725, 1.442695
    %v1759 = vpow.pop %v1758
    %v1760 = vmul.f32 %v1726, 1.442695
    %v1761 = vpow.pop %v1760
    %v1762 = vmul.f32 %v1727, 1.442695
    %v1763 = vpow.pop %v1762
    %v1764 = vmul.f32 %v1728, 1.442695
    %v1765 = vpow.pop %v1764
    %v1766 = vmul.f32 %v1729, 1.442695
    %v1767 = vpow.pop %v1766
    %v1768 = vmul.f32 %v1730, 1.442695
    %v1769 = vpow.pop %v1768
    %v1770 = vmul.f32 %v1731, 1.442695
    %v1771 = vpow.pop %v1770
    %v1772 = vmul.f32 %v1732, 1.442695
    %v1773 = vpow.pop %v1772
    %v1774 = vmul.f32 %v1733, 1.442695
    %v1775 = vpow.pop %v1774
    %v1776 = vmul.f32 %v1734, 1.442695
    %v1777 = vpow.pop %v1776
    %v1778 = vmul.f32 %v1735, 1.442695
    %v1779 = vpow.pop %v1778
    %v1780 = vmul.f32 %v1736, 1.442695
    %v1781 = vpow.pop %v1780
    %v1782 = vmul.f32 %v1737, 1.442695
    %v1783 = vpow.pop %v1782
    %v1784 = vmul.f32 %v1738, 1.442695
    %v1785 = vpow.pop %v1784
    %v1786 = vmul.f32 %v1739, 1.442695
    %v1787 = vpow.pop %v1786
    %v1788 = vadd.f32 %v1757, 1.0
    %v1789 = vlog2.pop %v1788
    %v1790 = vmul.f32 %v1789, 0.6931472
    %v1791 = vmul.f32 -0.5, %v1757
    %v1792 = vadd.f32 %v1791, 1.0
    %v1793 = vmul.f32 %v1792, %v1757
    %v1794 = vand.u32 2147483647, %v1757
    %vm1795 = vcmp.lt.f32.partialorder %v1794, 0.0004427343
    %v1796 = vsel %vm1795, %v1793, %v1790
    %v1797 = vadd.f32 %v1759, 1.0
    %v1798 = vlog2.pop %v1797
    %v1799 = vmul.f32 %v1798, 0.6931472
    %v1800 = vmul.f32 -0.5, %v1759
    %v1801 = vadd.f32 %v1800, 1.0
    %v1802 = vmul.f32 %v1801, %v1759
    %v1803 = vand.u32 2147483647, %v1759
    %vm1804 = vcmp.lt.f32.partialorder %v1803, 0.0004427343
    %v1805 = vsel %vm1804, %v1802, %v1799
    %v1806 = vadd.f32 %v1761, 1.0
    %v1807 = vlog2.pop %v1806
    %v1808 = vmul.f32 %v1807, 0.6931472
    %v1809 = vmul.f32 -0.5, %v1761
    %v1810 = vadd.f32 %v1809, 1.0
    %v1811 = vmul.f32 %v1810, %v1761
    %v1812 = vand.u32 2147483647, %v1761
    %vm1813 = vcmp.lt.f32.partialorder %v1812, 0.0004427343
    %v1814 = vsel %vm1813, %v1811, %v1808
    %v1815 = vadd.f32 %v1763, 1.0
    %v1816 = vlog2.pop %v1815
    %v1817 = vmul.f32 %v1816, 0.6931472
    %v1818 = vmul.f32 -0.5, %v1763
    %v1819 = vadd.f32 %v1818, 1.0
    %v1820 = vmul.f32 %v1819, %v1763
    %v1821 = vand.u32 2147483647, %v1763
    %vm1822 = vcmp.lt.f32.partialorder %v1821, 0.0004427343
    %v1823 = vsel %vm1822, %v1820, %v1817
    %v1824 = vadd.f32 %v1765, 1.0
    %v1825 = vlog2.pop %v1824
    %v1826 = vmul.f32 %v1825, 0.6931472
    %v1827 = vmul.f32 -0.5, %v1765
    %v1828 = vadd.f32 %v1827, 1.0
    %v1829 = vmul.f32 %v1828, %v1765
    %v1830 = vand.u32 2147483647, %v1765
    %vm1831 = vcmp.lt.f32.partialorder %v1830, 0.0004427343
    %v1832 = vsel %vm1831, %v1829, %v1826
    %v1833 = vadd.f32 %v1767, 1.0
    %v1834 = vlog2.pop %v1833
    %v1835 = vmul.f32 %v1834, 0.6931472
    %v1836 = vmul.f32 -0.5, %v1767
    %v1837 = vadd.f32 %v1836, 1.0
    %v1838 = vmul.f32 %v1837, %v1767
    %v1839 = vand.u32 2147483647, %v1767
    %vm1840 = vcmp.lt.f32.partialorder %v1839, 0.0004427343
    %v1841 = vsel %vm1840, %v1838, %v1835
    %v1842 = vadd.f32 %v1769, 1.0
    %v1843 = vlog2.pop %v1842
    %v1844 = vmul.f32 %v1843, 0.6931472
    %v1845 = vmul.f32 -0.5, %v1769
    %v1846 = vadd.f32 %v1845, 1.0
    %v1847 = vmul.f32 %v1846, %v1769
    %v1848 = vand.u32 2147483647, %v1769
    %vm1849 = vcmp.lt.f32.partialorder %v1848, 0.0004427343
    %v1850 = vsel %vm1849, %v1847, %v1844
    %v1851 = vadd.f32 %v1771, 1.0
    %v1852 = vlog2.pop %v1851
    %v1853 = vmul.f32 %v1852, 0.6931472
    %v1854 = vmul.f32 -0.5, %v1771
    %v1855 = vadd.f32 %v1854, 1.0
    %v1856 = vmul.f32 %v1855, %v1771
    %v1857 = vand.u32 2147483647, %v1771
    %vm1858 = vcmp.lt.f32.partialorder %v1857, 0.0004427343
    %v1859 = vsel %vm1858, %v1856, %v1853
    %v1860 = vadd.f32 %v1773, 1.0
    %v1861 = vlog2.pop %v1860
    %v1862 = vmul.f32 %v1861, 0.6931472
    %v1863 = vmul.f32 -0.5, %v1773
    %v1864 = vadd.f32 %v1863, 1.0
    %v1865 = vmul.f32 %v1864, %v1773
    %v1866 = vand.u32 2147483647, %v1773
    %vm1867 = vcmp.lt.f32.partialorder %v1866, 0.0004427343
    %v1868 = vsel %vm1867, %v1865, %v1862
    %v1869 = vadd.f32 %v1775, 1.0
    %v1870 = vlog2.pop %v1869
    %v1871 = vmul.f32 %v1870, 0.6931472
    %v1872 = vmul.f32 -0.5, %v1775
    %v1873 = vadd.f32 %v1872, 1.0
    %v1874 = vmul.f32 %v1873, %v1775
    %v1875 = vand.u32 2147483647, %v1775
    %vm1876 = vcmp.lt.f32.partialorder %v1875, 0.0004427343
    %v1877 = vsel %vm1876, %v1874, %v1871
    %v1878 = vadd.f32 %v1777, 1.0
    %v1879 = vlog2.pop %v1878
    %v1880 = vmul.f32 %v1879, 0.6931472
    %v1881 = vmul.f32 -0.5, %v1777
    %v1882 = vadd.f32 %v1881, 1.0
    %v1883 = vmul.f32 %v1882, %v1777
    %v1884 = vand.u32 2147483647, %v1777
    %vm1885 = vcmp.lt.f32.partialorder %v1884, 0.0004427343
    %v1886 = vsel %vm1885, %v1883, %v1880
    %v1887 = vadd.f32 %v1779, 1.0
    %v1888 = vlog2.pop %v1887
    %v1889 = vmul.f32 %v1888, 0.6931472
    %v1890 = vmul.f32 -0.5, %v1779
    %v1891 = vadd.f32 %v1890, 1.0
    %v1892 = vmul.f32 %v1891, %v1779
    %v1893 = vand.u32 2147483647, %v1779
    %vm1894 = vcmp.lt.f32.partialorder %v1893, 0.0004427343
    %v1895 = vsel %vm1894, %v1892, %v1889
    %v1896 = vadd.f32 %v1781, 1.0
    %v1897 = vlog2.pop %v1896
    %v1898 = vmul.f32 %v1897, 0.6931472
    %v1899 = vmul.f32 -0.5, %v1781
    %v1900 = vadd.f32 %v1899, 1.0
    %v1901 = vmul.f32 %v1900, %v1781
    %v1902 = vand.u32 2147483647, %v1781
    %vm1903 = vcmp.lt.f32.partialorder %v1902, 0.0004427343
    %v1904 = vsel %vm1903, %v1901, %v1898
    %v1905 = vadd.f32 %v1783, 1.0
    %v1906 = vlog2.pop %v1905
    %v1907 = vmul.f32 %v1906, 0.6931472
    %v1908 = vmul.f32 -0.5, %v1783
    %v1909 = vadd.f32 %v1908, 1.0
    %v1910 = vmul.f32 %v1909, %v1783
    %v1911 = vand.u32 2147483647, %v1783
    %vm1912 = vcmp.lt.f32.partialorder %v1911, 0.0004427343
    %v1913 = vsel %vm1912, %v1910, %v1907
    %v1914 = vadd.f32 %v1785, 1.0
    %v1915 = vlog2.pop %v1914
    %v1916 = vmul.f32 %v1915, 0.6931472
    %v1917 = vmul.f32 -0.5, %v1785
    %v1918 = vadd.f32 %v1917, 1.0
    %v1919 = vmul.f32 %v1918, %v1785
    %v1920 = vand.u32 2147483647, %v1785
    %vm1921 = vcmp.lt.f32.partialorder %v1920, 0.0004427343
    %v1922 = vsel %vm1921, %v1919, %v1916
    %v1923 = vadd.f32 %v1787, 1.0
    %v1924 = vlog2.pop %v1923
    %v1925 = vmul.f32 %v1924, 0.6931472
    %v1926 = vmul.f32 -0.5, %v1787
    %v1927 = vadd.f32 %v1926, 1.0
    %v1928 = vmul.f32 %v1927, %v1787
    %v1929 = vand.u32 2147483647, %v1787
    %vm1930 = vcmp.lt.f32.partialorder %v1929, 0.0004427343
    %v1931 = vsel %vm1930, %v1928, %v1925
    %v1932 = vmul.f32 %v1796, 0.01
    %v1933 = vmul.f32 %v1805, 0.01
    %v1934 = vmul.f32 %v1814, 0.01
    %v1935 = vmul.f32 %v1823, 0.01
    %v1936 = vmul.f32 %v1832, 0.01
    %v1937 = vmul.f32 %v1841, 0.01
    %v1938 = vmul.f32 %v1850, 0.01
    %v1939 = vmul.f32 %v1859, 0.01
    %v1940 = vmul.f32 %v1868, 0.01
    %v1941 = vmul.f32 %v1877, 0.01
    %v1942 = vmul.f32 %v1886, 0.01
    %v1943 = vmul.f32 %v1895, 0.01
    %v1944 = vmul.f32 %v1904, 0.01
    %v1945 = vmul.f32 %v1913, 0.01
    %v1946 = vmul.f32 %v1922, 0.01
    %v1947 = vmul.f32 %v1931, 0.01
    %v1948 = vsel %vm1740, %v1597, %v1932
    %v1949 = vsel %vm1741, %v1599, %v1933
    %v1950 = vsel %vm1742, %v1686, %v1934
    %v1951 = vsel %vm1743, %v1688, %v1935
    %v1952 = vsel %vm1744, %v1603, %v1936
    %v1953 = vsel %vm1745, %v1605, %v1937
    %v1954 = vsel %vm1746, %v1692, %v1938
    %v1955 = vsel %vm1747, %v1694, %v1939
    %v1956 = vsel %vm1748, %v1609, %v1940
    %v1957 = vsel %vm1749, %v1611, %v1941
    %v1958 = vsel %vm1750, %v1698, %v1942
    %v1959 = vsel %vm1751, %v1700, %v1943
    %v1960 = vsel %vm1752, %v1615, %v1944
    %v1961 = vsel %vm1753, %v1617, %v1945
    %v1962 = vsel %vm1754, %v1704, %v1946
    %v1963 = vsel %vm1755, %v1706, %v1947
    %v1964 = vld [vmem:[%s5] sm:$0xff]
    %v1965 = vld [vmem:[%s5 + $0x8] sm:$0xff]
    %v1966 = vld [vmem:[%s5 + $0x10] sm:$0xff]
    %v1967 = vld [vmem:[%s5 + $0x18] sm:$0xff]
    %v1968 = vld [vmem:[%s12] sm:$0xff]
    %v1969 = vld [vmem:[%s12 + $0x8] sm:$0xff]
    %v1970 = vld [vmem:[%s12 + $0x10] sm:$0xff]
    %v1971 = vld [vmem:[%s12 + $0x18] sm:$0xff]
    %1976 = vrot.lane.b32.xlu0 %v1964, 99
    %v1977 = vpop.permute.xlu0 %1976
    %1978 = vrot.lane.b32.xlu0 %v1965, 99
    %v1979 = vpop.permute.xlu0 %1978
    %1980 = vrot.lane.b32.xlu0 %v1966, 99
    %v1981 = vpop.permute.xlu0 %1980
    %1982 = vrot.lane.b32.xlu0 %v1967, 99
    %v1983 = vpop.permute.xlu0 %1982
    %v1984 = vsel %vm85, %v1977, 0
    %v1986 = vsel %vm85, %v1979, 0
    %v1988 = vsel %vm85, %v1981, 0
    %v1990 = vsel %vm85, %v1983, 0
    %1992 = vmatprep.subr.mxu0 %v101
    %1993 = vmatpush1.msra.mxu0 %v99
    %1994 = vmatprep.subr.mxu0 0.0
    %1995 = vmatpush1.msra.mxu0 0.0
    %1996 = vmatprep.subr.mxu0 0.0
    %1997 = vmatpush1.msra.mxu0 0.0
    %1998 = vmatprep.subr.mxu0 0.0
    %1999 = vmatpush1.msra.mxu0 0.0
    %2000 = vmatprep.subr.mxu0 0.0
    %2001 = vmatpush1.msra.mxu0 0.0
    %2002 = vmatprep.subr.mxu0 0.0
    %2003 = vmatpush1.msra.mxu0 0.0
    %2004 = vmatprep.subr.mxu0 0.0
    %2005 = vmatpush1.msra.mxu0 0.0
    %2006 = vmatprep.subr.mxu0 0.0
    %2007 = vmatpush1.msra.mxu0 0.0
    %2008 = vmatprep.subr.mxu0 0.0
    %2009 = vmatpush1.msra.mxu0 0.0
    %2010 = vmatprep.subr.mxu0 0.0
    %2011 = vmatpush1.msra.mxu0 0.0
    %2012 = vmatprep.subr.mxu0 0.0
    %2013 = vmatpush1.msra.mxu0 0.0
    %2014 = vmatprep.subr.mxu0 0.0
    %2015 = vmatpush1.msra.mxu0 0.0
    %2016 = vmatprep.subr.mxu0 0.0
    %2017 = vmatpush1.msra.mxu0 0.0
    %2018 = vmatprep.subr.mxu0 0.0
    %2019 = vmatpush1.msra.mxu0 0.0
    %2020 = vmatprep.subr.mxu0 0.0
    %2021 = vmatpush1.msra.mxu0 0.0
    %2022 = vmatprep.subr.mxu0 0.0
    %2023 = vmatpush1.msra.mxu0 0.0
    %2024 = vmatprep.subr.mxu0 0.0
    %2025 = vmatpush1.msra.mxu0 0.0
    %2026 = vmatprep.subr.mxu0 0.0
    %2027 = vmatpush1.msra.mxu0 0.0
    %2028 = vmatprep.subr.mxu0 0.0
    %2029 = vmatpush1.msra.mxu0 0.0
    %2030 = vmatprep.subr.mxu0 0.0
    %2031 = vmatpush1.msra.mxu0 0.0
    %2032 = vmatprep.subr.mxu0 0.0
    %2033 = vmatpush1.msra.mxu0 0.0
    %2034 = vmatprep.subr.mxu0 0.0
    %2035 = vmatpush1.msra.mxu0 0.0
    %2036 = vmatprep.subr.mxu0 0.0
    %2037 = vmatpush1.msra.mxu0 0.0
    %2038 = vmatprep.subr.mxu0 0.0
    %2039 = vmatpush1.msra.mxu0 0.0
    %2040 = vmatprep.subr.mxu0 0.0
    %2041 = vmatpush1.msra.mxu0 0.0
    %2042 = vmatprep.subr.mxu0 0.0
    %2043 = vmatpush1.msra.mxu0 0.0
    %2044 = vmatprep.subr.mxu0 0.0
    %2045 = vmatpush1.msra.mxu0 0.0
    %2046 = vmatprep.subr.mxu0 0.0
    %2047 = vmatpush1.msra.mxu0 0.0
    %2048 = vmatprep.subr.mxu0 0.0
    %2049 = vmatpush1.msra.mxu0 0.0
    %2050 = vmatprep.subr.mxu0 0.0
    %2051 = vmatpush1.msra.mxu0 0.0
    %2052 = vmatprep.subr.mxu0 0.0
    %2053 = vmatpush1.msra.mxu0 0.0
    %2054 = vmatprep.subr.mxu0 0.0
    %2055 = vmatpush1.msra.mxu0 0.0
    %2056 = vmatprep.mubr.f32.mxu0 0.0
    %2057 = vmatmul.mubr.f32.gmra.mrb[0].mxu0 %v1984
    %v2058 = vpop.f32.mrb[0].mxu0
    %v2059 = vadd.f32 0.0, %v2058
    %v2060 = vpop.f32.mrb[0].mxu0
    %v2061 = vadd.f32 0.0, %v2060
    %2062 = vmatprep.mubr.f32.mxu0 0.0
    %2063 = vmatmul.mubr.f32.gmra.mrb[0].mxu0 %v1986
    %v2064 = vpop.f32.mrb[0].mxu0
    %v2065 = vadd.f32 0.0, %v2064
    %v2066 = vpop.f32.mrb[0].mxu0
    %v2067 = vadd.f32 0.0, %v2066
    %2068 = vmatprep.mubr.f32.mxu0 0.0
    %2069 = vmatmul.mubr.f32.gmra.mrb[0].mxu0 %v1988
    %v2070 = vpop.f32.mrb[0].mxu0
    %v2071 = vadd.f32 0.0, %v2070
    %v2072 = vpop.f32.mrb[0].mxu0
    %v2073 = vadd.f32 0.0, %v2072
    %2074 = vmatprep.mubr.f32.mxu0 0.0
    %2075 = vmatmul.mubr.f32.gmra.mrb[0].mxu0 %v1990
    %v2076 = vpop.f32.mrb[0].mxu0
    %v2077 = vadd.f32 0.0, %v2076
    %v2078 = vpop.f32.mrb[0].mxu0
    %v2079 = vadd.f32 0.0, %v2078
    %2080 = vdwg.mxu0
    %2081 = vmatprep.subr.mxu0 %v105
    %2082 = vmatpush1.msra.mxu0 %v103
    %2083 = vmatprep.subr.mxu0 0.0
    %2084 = vmatpush1.msra.mxu0 0.0
    %2085 = vmatprep.subr.mxu0 0.0
    %2086 = vmatpush1.msra.mxu0 0.0
    %2087 = vmatprep.subr.mxu0 0.0
    %2088 = vmatpush1.msra.mxu0 0.0
    %2089 = vmatprep.subr.mxu0 0.0
    %2090 = vmatpush1.msra.mxu0 0.0
    %2091 = vmatprep.subr.mxu0 0.0
    %2092 = vmatpush1.msra.mxu0 0.0
    %2093 = vmatprep.subr.mxu0 0.0
    %2094 = vmatpush1.msra.mxu0 0.0
    %2095 = vmatprep.subr.mxu0 0.0
    %2096 = vmatpush1.msra.mxu0 0.0
    %2097 = vmatprep.subr.mxu0 0.0
    %2098 = vmatpush1.msra.mxu0 0.0
    %2099 = vmatprep.subr.mxu0 0.0
    %2100 = vmatpush1.msra.mxu0 0.0
    %2101 = vmatprep.subr.mxu0 0.0
    %2102 = vmatpush1.msra.mxu0 0.0
    %2103 = vmatprep.subr.mxu0 0.0
    %2104 = vmatpush1.msra.mxu0 0.0
    %2105 = vmatprep.subr.mxu0 0.0
    %2106 = vmatpush1.msra.mxu0 0.0
    %2107 = vmatprep.subr.mxu0 0.0
    %2108 = vmatpush1.msra.mxu0 0.0
    %2109 = vmatprep.subr.mxu0 0.0
    %2110 = vmatpush1.msra.mxu0 0.0
    %2111 = vmatprep.subr.mxu0 0.0
    %2112 = vmatpush1.msra.mxu0 0.0
    %2113 = vmatprep.subr.mxu0 0.0
    %2114 = vmatpush1.msra.mxu0 0.0
    %2115 = vmatprep.subr.mxu0 0.0
    %2116 = vmatpush1.msra.mxu0 0.0
    %2117 = vmatprep.subr.mxu0 0.0
    %2118 = vmatpush1.msra.mxu0 0.0
    %2119 = vmatprep.subr.mxu0 0.0
    %2120 = vmatpush1.msra.mxu0 0.0
    %2121 = vmatprep.subr.mxu0 0.0
    %2122 = vmatpush1.msra.mxu0 0.0
    %2123 = vmatprep.subr.mxu0 0.0
    %2124 = vmatpush1.msra.mxu0 0.0
    %2125 = vmatprep.subr.mxu0 0.0
    %2126 = vmatpush1.msra.mxu0 0.0
    %2127 = vmatprep.subr.mxu0 0.0
    %2128 = vmatpush1.msra.mxu0 0.0
    %2129 = vmatprep.subr.mxu0 0.0
    %2130 = vmatpush1.msra.mxu0 0.0
    %2131 = vmatprep.subr.mxu0 0.0
    %2132 = vmatpush1.msra.mxu0 0.0
    %2133 = vmatprep.subr.mxu0 0.0
    %2134 = vmatpush1.msra.mxu0 0.0
    %2135 = vmatprep.subr.mxu0 0.0
    %2136 = vmatpush1.msra.mxu0 0.0
    %2137 = vmatprep.subr.mxu0 0.0
    %2138 = vmatpush1.msra.mxu0 0.0
    %2139 = vmatprep.subr.mxu0 0.0
    %2140 = vmatpush1.msra.mxu0 0.0
    %2141 = vmatprep.subr.mxu0 0.0
    %2142 = vmatpush1.msra.mxu0 0.0
    %2143 = vmatprep.subr.mxu0 0.0
    %2144 = vmatpush1.msra.mxu0 0.0
    %2145 = vmatprep.mubr.f32.mxu0 0.0
    %2146 = vmatmul.mubr.f32.gmra.mrb[0].mxu0 %v1984
    %v2147 = vpop.f32.mrb[0].mxu0
    %v2148 = vadd.f32 0.0, %v2147
    %v2149 = vpop.f32.mrb[0].mxu0
    %v2150 = vadd.f32 0.0, %v2149
    %2151 = vmatprep.mubr.f32.mxu0 0.0
    %2152 = vmatmul.mubr.f32.gmra.mrb[0].mxu0 %v1986
    %v2153 = vpop.f32.mrb[0].mxu0
    %v2154 = vadd.f32 0.0, %v2153
    %v2155 = vpop.f32.mrb[0].mxu0
    %v2156 = vadd.f32 0.0, %v2155
    %2157 = vmatprep.mubr.f32.mxu0 0.0
    %2158 = vmatmul.mubr.f32.gmra.mrb[0].mxu0 %v1988
    %v2159 = vpop.f32.mrb[0].mxu0
    %v2160 = vadd.f32 0.0, %v2159
    %v2161 = vpop.f32.mrb[0].mxu0
    %v2162 = vadd.f32 0.0, %v2161
    %2163 = vmatprep.mubr.f32.mxu0 0.0
    %2164 = vmatmul.mubr.f32.gmra.mrb[0].mxu0 %v1990
    %v2165 = vpop.f32.mrb[0].mxu0
    %v2166 = vadd.f32 0.0, %v2165
    %v2167 = vpop.f32.mrb[0].mxu0
    %v2168 = vadd.f32 0.0, %v2167
    %2169 = vdwg.mxu0
    %vm2170 = vcmask 236544
    %v2171 = vsel %vm2170, %v1964, 0
    %v2173 = vsel %vm2170, %v1965, 0
    %v2175 = vsel %vm2170, %v1966, 0
    %v2177 = vsel %vm2170, %v1967, 0
    %vm2179 = vcmask 1044480
    %v2181 = vsel %vm2179, %v1960, 0
    %v2184 = vsel %vm2179, %v1961, 0
    %v2187 = vsel %vm2179, %v1962, 0
    %v2190 = vsel %vm2179, %v1963, 0
    %2192 = vmatprep.subr.mxu0 %v1949
    %2193 = vmatpush1.msra.mxu0 %v1948
    %2194 = vmatprep.subr.mxu0 %v1953
    %2195 = vmatpush1.msra.mxu0 %v1952
    %2196 = vmatprep.subr.mxu0 %v1957
    %2197 = vmatpush1.msra.mxu0 %v1956
    %2198 = vmatprep.subr.mxu0 %v2184
    %2199 = vmatpush1.msra.mxu0 %v2181
    %2200 = vmatprep.subr.mxu0 0.0
    %2201 = vmatpush1.msra.mxu0 0.0
    %2202 = vmatprep.subr.mxu0 0.0
    %2203 = vmatpush1.msra.mxu0 0.0
    %2204 = vmatprep.subr.mxu0 0.0
    %2205 = vmatpush1.msra.mxu0 0.0
    %2206 = vmatprep.subr.mxu0 0.0
    %2207 = vmatpush1.msra.mxu0 0.0
    %2208 = vmatprep.subr.mxu0 0.0
    %2209 = vmatpush1.msra.mxu0 0.0
    %2210 = vmatprep.subr.mxu0 0.0
    %2211 = vmatpush1.msra.mxu0 0.0
    %2212 = vmatprep.subr.mxu0 0.0
    %2213 = vmatpush1.msra.mxu0 0.0
    %2214 = vmatprep.subr.mxu0 0.0
    %2215 = vmatpush1.msra.mxu0 0.0
    %2216 = vmatprep.subr.mxu0 0.0
    %2217 = vmatpush1.msra.mxu0 0.0
    %2218 = vmatprep.subr.mxu0 0.0
    %2219 = vmatpush1.msra.mxu0 0.0
    %2220 = vmatprep.subr.mxu0 0.0
    %2221 = vmatpush1.msra.mxu0 0.0
    %2222 = vmatprep.subr.mxu0 0.0
    %2223 = vmatpush1.msra.mxu0 0.0
    %2224 = vmatprep.subr.mxu0 0.0
    %2225 = vmatpush1.msra.mxu0 0.0
    %2226 = vmatprep.subr.mxu0 0.0
    %2227 = vmatpush1.msra.mxu0 0.0
    %2228 = vmatprep.subr.mxu0 0.0
    %2229 = vmatpush1.msra.mxu0 0.0
    %2230 = vmatprep.subr.mxu0 0.0
    %2231 = vmatpush1.msra.mxu0 0.0
    %2232 = vmatprep.subr.mxu0 0.0
    %2233 = vmatpush1.msra.mxu0 0.0
    %2234 = vmatprep.subr.mxu0 0.0
    %2235 = vmatpush1.msra.mxu0 0.0
    %2236 = vmatprep.subr.mxu0 0.0
    %2237 = vmatpush1.msra.mxu0 0.0
    %2238 = vmatprep.subr.mxu0 0.0
    %2239 = vmatpush1.msra.mxu0 0.0
    %2240 = vmatprep.subr.mxu0 0.0
    %2241 = vmatpush1.msra.mxu0 0.0
    %2242 = vmatprep.subr.mxu0 0.0
    %2243 = vmatpush1.msra.mxu0 0.0
    %2244 = vmatprep.subr.mxu0 0.0
    %2245 = vmatpush1.msra.mxu0 0.0
    %2246 = vmatprep.subr.mxu0 0.0
    %2247 = vmatpush1.msra.mxu0 0.0
    %2248 = vmatprep.subr.mxu0 0.0
    %2249 = vmatpush1.msra.mxu0 0.0
    %2250 = vmatprep.subr.mxu0 0.0
    %2251 = vmatpush1.msra.mxu0 0.0
    %2252 = vmatprep.subr.mxu0 0.0
    %2253 = vmatpush1.msra.mxu0 0.0
    %2254 = vmatprep.subr.mxu0 0.0
    %2255 = vmatpush1.msra.mxu0 0.0
    %2256 = vmatprep.mubr.f32.mxu0 0.0
    %2257 = vmatmul.mubr.f32.gmra.mrb[0].mxu0 %v2171
    %v2258 = vpop.f32.mrb[0].mxu0
    %v2259 = vadd.f32 %v2059, %v2258
    %v2260 = vpop.f32.mrb[0].mxu0
    %v2261 = vadd.f32 %v2061, %v2260
    %2262 = vmatprep.mubr.f32.mxu0 0.0
    %2263 = vmatmul.mubr.f32.gmra.mrb[0].mxu0 %v2173
    %v2264 = vpop.f32.mrb[0].mxu0
    %v2265 = vadd.f32 %v2065, %v2264
    %v2266 = vpop.f32.mrb[0].mxu0
    %v2267 = vadd.f32 %v2067, %v2266
    %2268 = vmatprep.mubr.f32.mxu0 0.0
    %2269 = vmatmul.mubr.f32.gmra.mrb[0].mxu0 %v2175
    %v2270 = vpop.f32.mrb[0].mxu0
    %v2271 = vadd.f32 %v2071, %v2270
    %v2272 = vpop.f32.mrb[0].mxu0
    %v2273 = vadd.f32 %v2073, %v2272
    %2274 = vmatprep.mubr.f32.mxu0 0.0
    %2275 = vmatmul.mubr.f32.gmra.mrb[0].mxu0 %v2177
    %v2276 = vpop.f32.mrb[0].mxu0
    %v2277 = vadd.f32 %v2077, %v2276
    %v2278 = vpop.f32.mrb[0].mxu0
    %v2279 = vadd.f32 %v2079, %v2278
    %2280 = vdwg.mxu0
    %2281 = vmatprep.subr.mxu0 %v1951
    %2282 = vmatpush1.msra.mxu0 %v1950
    %2283 = vmatprep.subr.mxu0 %v1955
    %2284 = vmatpush1.msra.mxu0 %v1954
    %2285 = vmatprep.subr.mxu0 %v1959
    %2286 = vmatpush1.msra.mxu0 %v1958
    %2287 = vmatprep.subr.mxu0 %v2190
    %2288 = vmatpush1.msra.mxu0 %v2187
    %2289 = vmatprep.subr.mxu0 0.0
    %2290 = vmatpush1.msra.mxu0 0.0
    %2291 = vmatprep.subr.mxu0 0.0
    %2292 = vmatpush1.msra.mxu0 0.0
    %2293 = vmatprep.subr.mxu0 0.0
    %2294 = vmatpush1.msra.mxu0 0.0
    %2295 = vmatprep.subr.mxu0 0.0
    %2296 = vmatpush1.msra.mxu0 0.0
    %2297 = vmatprep.subr.mxu0 0.0
    %2298 = vmatpush1.msra.mxu0 0.0
    %2299 = vmatprep.subr.mxu0 0.0
    %2300 = vmatpush1.msra.mxu0 0.0
    %2301 = vmatprep.subr.mxu0 0.0
    %2302 = vmatpush1.msra.mxu0 0.0
    %2303 = vmatprep.subr.mxu0 0.0
    %2304 = vmatpush1.msra.mxu0 0.0
    %2305 = vmatprep.subr.mxu0 0.0
    %2306 = vmatpush1.msra.mxu0 0.0
    %2307 = vmatprep.subr.mxu0 0.0
    %2308 = vmatpush1.msra.mxu0 0.0
    %2309 = vmatprep.subr.mxu0 0.0
    %2310 = vmatpush1.msra.mxu0 0.0
    %2311 = vmatprep.subr.mxu0 0.0
    %2312 = vmatpush1.msra.mxu0 0.0
    %2313 = vmatprep.subr.mxu0 0.0
    %2314 = vmatpush1.msra.mxu0 0.0
    %2315 = vmatprep.subr.mxu0 0.0
    %2316 = vmatpush1.msra.mxu0 0.0
    %2317 = vmatprep.subr.mxu0 0.0
    %2318 = vmatpush1.msra.mxu0 0.0
    %2319 = vmatprep.subr.mxu0 0.0
    %2320 = vmatpush1.msra.mxu0 0.0
    %2321 = vmatprep.subr.mxu0 0.0
    %2322 = vmatpush1.msra.mxu0 0.0
    %2323 = vmatprep.subr.mxu0 0.0
    %2324 = vmatpush1.msra.mxu0 0.0
    %2325 = vmatprep.subr.mxu0 0.0
    %2326 = vmatpush1.msra.mxu0 0.0
    %2327 = vmatprep.subr.mxu0 0.0
    %2328 = vmatpush1.msra.mxu0 0.0
    %2329 = vmatprep.subr.mxu0 0.0
    %2330 = vmatpush1.msra.mxu0 0.0
    %2331 = vmatprep.subr.mxu0 0.0
    %2332 = vmatpush1.msra.mxu0 0.0
    %2333 = vmatprep.subr.mxu0 0.0
    %2334 = vmatpush1.msra.mxu0 0.0
    %2335 = vmatprep.subr.mxu0 0.0
    %2336 = vmatpush1.msra.mxu0 0.0
    %2337 = vmatprep.subr.mxu0 0.0
    %2338 = vmatpush1.msra.mxu0 0.0
    %2339 = vmatprep.subr.mxu0 0.0
    %2340 = vmatpush1.msra.mxu0 0.0
    %2341 = vmatprep.subr.mxu0 0.0
    %2342 = vmatpush1.msra.mxu0 0.0
    %2343 = vmatprep.subr.mxu0 0.0
    %2344 = vmatpush1.msra.mxu0 0.0
    %2345 = vmatprep.mubr.f32.mxu0 0.0
    %2346 = vmatmul.mubr.f32.gmra.mrb[0].mxu0 %v2171
    %v2347 = vpop.f32.mrb[0].mxu0
    %v2348 = vadd.f32 %v2148, %v2347
    %v2349 = vpop.f32.mrb[0].mxu0
    %v2350 = vadd.f32 %v2150, %v2349
    %2351 = vmatprep.mubr.f32.mxu0 0.0
    %2352 = vmatmul.mubr.f32.gmra.mrb[0].mxu0 %v2173
    %v2353 = vpop.f32.mrb[0].mxu0
    %v2354 = vadd.f32 %v2154, %v2353
    %v2355 = vpop.f32.mrb[0].mxu0
    %v2356 = vadd.f32 %v2156, %v2355
    %2357 = vmatprep.mubr.f32.mxu0 0.0
    %2358 = vmatmul.mubr.f32.gmra.mrb[0].mxu0 %v2175
    %v2359 = vpop.f32.mrb[0].mxu0
    %v2360 = vadd.f32 %v2160, %v2359
    %v2361 = vpop.f32.mrb[0].mxu0
    %v2362 = vadd.f32 %v2162, %v2361
    %2363 = vmatprep.mubr.f32.mxu0 0.0
    %2364 = vmatmul.mubr.f32.gmra.mrb[0].mxu0 %v2177
    %v2365 = vpop.f32.mrb[0].mxu0
    %v2366 = vadd.f32 %v2166, %v2365
    %v2367 = vpop.f32.mrb[0].mxu0
    %v2368 = vadd.f32 %v2168, %v2367
    %2369 = vdwg.mxu0
    %2371 = vset.pattern.permute.xlu0 0
    %2372 = vperm.xlu0 %2371, %v1968
    %v2373 = vpop.permute.xlu0 %2372
    %2376 = vset.pattern.permute.xlu0 0
    %2377 = vperm.xlu0 %2376, %v1969
    %v2378 = vpop.permute.xlu0 %2377
    %2381 = vset.pattern.permute.xlu0 0
    %2382 = vperm.xlu0 %2381, %v1970
    %v2383 = vpop.permute.xlu0 %2382
    %2386 = vset.pattern.permute.xlu0 0
    %2387 = vperm.xlu0 %2386, %v1971
    %v2388 = vpop.permute.xlu0 %2387
    %v2390 = vadd.f32 %v2259, %v2373
    %v2391 = vadd.f32 %v2261, %v2373
    %v2392 = vadd.f32 %v2348, %v2373
    %v2393 = vadd.f32 %v2350, %v2373
    %v2394 = vadd.f32 %v2265, %v2378
    %v2395 = vadd.f32 %v2267, %v2378
    %v2396 = vadd.f32 %v2354, %v2378
    %v2397 = vadd.f32 %v2356, %v2378
    %v2398 = vadd.f32 %v2271, %v2383
    %v2399 = vadd.f32 %v2273, %v2383
    %v2400 = vadd.f32 %v2360, %v2383
    %v2401 = vadd.f32 %v2362, %v2383
    %v2402 = vadd.f32 %v2277, %v2388
    %v2403 = vadd.f32 %v2279, %v2388
    %v2404 = vadd.f32 %v2366, %v2388
    %v2405 = vadd.f32 %v2368, %v2388
    %v2406 = vmul.f32 %v2390, 100.0
    %v2407 = vmul.f32 %v2391, 100.0
    %v2408 = vmul.f32 %v2392, 100.0
    %v2409 = vmul.f32 %v2393, 100.0
    %v2410 = vmul.f32 %v2394, 100.0
    %v2411 = vmul.f32 %v2395, 100.0
    %v2412 = vmul.f32 %v2396, 100.0
    %v2413 = vmul.f32 %v2397, 100.0
    %v2414 = vmul.f32 %v2398, 100.0
    %v2415 = vmul.f32 %v2399, 100.0
    %v2416 = vmul.f32 %v2400, 100.0
    %v2417 = vmul.f32 %v2401, 100.0
    %v2418 = vmul.f32 %v2402, 100.0
    %v2419 = vmul.f32 %v2403, 100.0
    %v2420 = vmul.f32 %v2404, 100.0
    %v2421 = vmul.f32 %v2405, 100.0
    %v2422 = vmin.f32 %v2406, 20.0
    %v2423 = vmin.f32 %v2407, 20.0
    %v2424 = vmin.f32 %v2408, 20.0
    %v2425 = vmin.f32 %v2409, 20.0
    %v2426 = vmin.f32 %v2410, 20.0
    %v2427 = vmin.f32 %v2411, 20.0
    %v2428 = vmin.f32 %v2412, 20.0
    %v2429 = vmin.f32 %v2413, 20.0
    %v2430 = vmin.f32 %v2414, 20.0
    %v2431 = vmin.f32 %v2415, 20.0
    %v2432 = vmin.f32 %v2416, 20.0
    %v2433 = vmin.f32 %v2417, 20.0
    %v2434 = vmin.f32 %v2418, 20.0
    %v2435 = vmin.f32 %v2419, 20.0
    %v2436 = vmin.f32 %v2420, 20.0
    %v2437 = vmin.f32 %v2421, 20.0
    %vm2438 = vcmp.gt.f32.partialorder %v2406, 20.0
    %vm2439 = vcmp.gt.f32.partialorder %v2407, 20.0
    %vm2440 = vcmp.gt.f32.partialorder %v2408, 20.0
    %vm2441 = vcmp.gt.f32.partialorder %v2409, 20.0
    %vm2442 = vcmp.gt.f32.partialorder %v2410, 20.0
    %vm2443 = vcmp.gt.f32.partialorder %v2411, 20.0
    %vm2444 = vcmp.gt.f32.partialorder %v2412, 20.0
    %vm2445 = vcmp.gt.f32.partialorder %v2413, 20.0
    %vm2446 = vcmp.gt.f32.partialorder %v2414, 20.0
    %vm2447 = vcmp.gt.f32.partialorder %v2415, 20.0
    %vm2448 = vcmp.gt.f32.partialorder %v2416, 20.0
    %vm2449 = vcmp.gt.f32.partialorder %v2417, 20.0
    %vm2450 = vcmp.gt.f32.partialorder %v2418, 20.0
    %vm2451 = vcmp.gt.f32.partialorder %v2419, 20.0
    %vm2452 = vcmp.gt.f32.partialorder %v2420, 20.0
    %vm2453 = vcmp.gt.f32.partialorder %v2421, 20.0
    %v2454 = vmul.f32 %v2422, 1.442695
    %v2455 = vpow.pop %v2454
    %v2456 = vmul.f32 %v2423, 1.442695
    %v2457 = vpow.pop %v2456
    %v2458 = vmul.f32 %v2424, 1.442695
    %v2459 = vpow.pop %v2458
    %v2460 = vmul.f32 %v2425, 1.442695
    %v2461 = vpow.pop %v2460
    %v2462 = vmul.f32 %v2426, 1.442695
    %v2463 = vpow.pop %v2462
    %v2464 = vmul.f32 %v2427, 1.442695
    %v2465 = vpow.pop %v2464
    %v2466 = vmul.f32 %v2428, 1.442695
    %v2467 = vpow.pop %v2466
    %v2468 = vmul.f32 %v2429, 1.442695
    %v2469 = vpow.pop %v2468
    %v2470 = vmul.f32 %v2430, 1.442695
    %v2471 = vpow.pop %v2470
    %v2472 = vmul.f32 %v2431, 1.442695
    %v2473 = vpow.pop %v2472
    %v2474 = vmul.f32 %v2432, 1.442695
    %v2475 = vpow.pop %v2474
    %v2476 = vmul.f32 %v2433, 1.442695
    %v2477 = vpow.pop %v2476
    %v2478 = vmul.f32 %v2434, 1.442695
    %v2479 = vpow.pop %v2478
    %v2480 = vmul.f32 %v2435, 1.442695
    %v2481 = vpow.pop %v2480
    %v2482 = vmul.f32 %v2436, 1.442695
    %v2483 = vpow.pop %v2482
    %v2484 = vmul.f32 %v2437, 1.442695
    %v2485 = vpow.pop %v2484
    %v2486 = vadd.f32 %v2455, 1.0
    %v2487 = vlog2.pop %v2486
    %v2488 = vmul.f32 %v2487, 0.6931472
    %v2489 = vmul.f32 -0.5, %v2455
    %v2490 = vadd.f32 %v2489, 1.0
    %v2491 = vmul.f32 %v2490, %v2455
    %v2492 = vand.u32 2147483647, %v2455
    %vm2493 = vcmp.lt.f32.partialorder %v2492, 0.0004427343
    %v2494 = vsel %vm2493, %v2491, %v2488
    %v2495 = vadd.f32 %v2457, 1.0
    %v2496 = vlog2.pop %v2495
    %v2497 = vmul.f32 %v2496, 0.6931472
    %v2498 = vmul.f32 -0.5, %v2457
    %v2499 = vadd.f32 %v2498, 1.0
    %v2500 = vmul.f32 %v2499, %v2457
    %v2501 = vand.u32 2147483647, %v2457
    %vm2502 = vcmp.lt.f32.partialorder %v2501, 0.0004427343
    %v2503 = vsel %vm2502, %v2500, %v2497
    %v2504 = vadd.f32 %v2459, 1.0
    %v2505 = vlog2.pop %v2504
    %v2506 = vmul.f32 %v2505, 0.6931472
    %v2507 = vmul.f32 -0.5, %v2459
    %v2508 = vadd.f32 %v2507, 1.0
    %v2509 = vmul.f32 %v2508, %v2459
    %v2510 = vand.u32 2147483647, %v2459
    %vm2511 = vcmp.lt.f32.partialorder %v2510, 0.0004427343
    %v2512 = vsel %vm2511, %v2509, %v2506
    %v2513 = vadd.f32 %v2461, 1.0
    %v2514 = vlog2.pop %v2513
    %v2515 = vmul.f32 %v2514, 0.6931472
    %v2516 = vmul.f32 -0.5, %v2461
    %v2517 = vadd.f32 %v2516, 1.0
    %v2518 = vmul.f32 %v2517, %v2461
    %v2519 = vand.u32 2147483647, %v2461
    %vm2520 = vcmp.lt.f32.partialorder %v2519, 0.0004427343
    %v2521 = vsel %vm2520, %v2518, %v2515
    %v2522 = vadd.f32 %v2463, 1.0
    %v2523 = vlog2.pop %v2522
    %v2524 = vmul.f32 %v2523, 0.6931472
    %v2525 = vmul.f32 -0.5, %v2463
    %v2526 = vadd.f32 %v2525, 1.0
    %v2527 = vmul.f32 %v2526, %v2463
    %v2528 = vand.u32 2147483647, %v2463
    %vm2529 = vcmp.lt.f32.partialorder %v2528, 0.0004427343
    %v2530 = vsel %vm2529, %v2527, %v2524
    %v2531 = vadd.f32 %v2465, 1.0
    %v2532 = vlog2.pop %v2531
    %v2533 = vmul.f32 %v2532, 0.6931472
    %v2534 = vmul.f32 -0.5, %v2465
    %v2535 = vadd.f32 %v2534, 1.0
    %v2536 = vmul.f32 %v2535, %v2465
    %v2537 = vand.u32 2147483647, %v2465
    %vm2538 = vcmp.lt.f32.partialorder %v2537, 0.0004427343
    %v2539 = vsel %vm2538, %v2536, %v2533
    %v2540 = vadd.f32 %v2467, 1.0
    %v2541 = vlog2.pop %v2540
    %v2542 = vmul.f32 %v2541, 0.6931472
    %v2543 = vmul.f32 -0.5, %v2467
    %v2544 = vadd.f32 %v2543, 1.0
    %v2545 = vmul.f32 %v2544, %v2467
    %v2546 = vand.u32 2147483647, %v2467
    %vm2547 = vcmp.lt.f32.partialorder %v2546, 0.0004427343
    %v2548 = vsel %vm2547, %v2545, %v2542
    %v2549 = vadd.f32 %v2469, 1.0
    %v2550 = vlog2.pop %v2549
    %v2551 = vmul.f32 %v2550, 0.6931472
    %v2552 = vmul.f32 -0.5, %v2469
    %v2553 = vadd.f32 %v2552, 1.0
    %v2554 = vmul.f32 %v2553, %v2469
    %v2555 = vand.u32 2147483647, %v2469
    %vm2556 = vcmp.lt.f32.partialorder %v2555, 0.0004427343
    %v2557 = vsel %vm2556, %v2554, %v2551
    %v2558 = vadd.f32 %v2471, 1.0
    %v2559 = vlog2.pop %v2558
    %v2560 = vmul.f32 %v2559, 0.6931472
    %v2561 = vmul.f32 -0.5, %v2471
    %v2562 = vadd.f32 %v2561, 1.0
    %v2563 = vmul.f32 %v2562, %v2471
    %v2564 = vand.u32 2147483647, %v2471
    %vm2565 = vcmp.lt.f32.partialorder %v2564, 0.0004427343
    %v2566 = vsel %vm2565, %v2563, %v2560
    %v2567 = vadd.f32 %v2473, 1.0
    %v2568 = vlog2.pop %v2567
    %v2569 = vmul.f32 %v2568, 0.6931472
    %v2570 = vmul.f32 -0.5, %v2473
    %v2571 = vadd.f32 %v2570, 1.0
    %v2572 = vmul.f32 %v2571, %v2473
    %v2573 = vand.u32 2147483647, %v2473
    %vm2574 = vcmp.lt.f32.partialorder %v2573, 0.0004427343
    %v2575 = vsel %vm2574, %v2572, %v2569
    %v2576 = vadd.f32 %v2475, 1.0
    %v2577 = vlog2.pop %v2576
    %v2578 = vmul.f32 %v2577, 0.6931472
    %v2579 = vmul.f32 -0.5, %v2475
    %v2580 = vadd.f32 %v2579, 1.0
    %v2581 = vmul.f32 %v2580, %v2475
    %v2582 = vand.u32 2147483647, %v2475
    %vm2583 = vcmp.lt.f32.partialorder %v2582, 0.0004427343
    %v2584 = vsel %vm2583, %v2581, %v2578
    %v2585 = vadd.f32 %v2477, 1.0
    %v2586 = vlog2.pop %v2585
    %v2587 = vmul.f32 %v2586, 0.6931472
    %v2588 = vmul.f32 -0.5, %v2477
    %v2589 = vadd.f32 %v2588, 1.0
    %v2590 = vmul.f32 %v2589, %v2477
    %v2591 = vand.u32 2147483647, %v2477
    %vm2592 = vcmp.lt.f32.partialorder %v2591, 0.0004427343
    %v2593 = vsel %vm2592, %v2590, %v2587
    %v2594 = vadd.f32 %v2479, 1.0
    %v2595 = vlog2.pop %v2594
    %v2596 = vmul.f32 %v2595, 0.6931472
    %v2597 = vmul.f32 -0.5, %v2479
    %v2598 = vadd.f32 %v2597, 1.0
    %v2599 = vmul.f32 %v2598, %v2479
    %v2600 = vand.u32 2147483647, %v2479
    %vm2601 = vcmp.lt.f32.partialorder %v2600, 0.0004427343
    %v2602 = vsel %vm2601, %v2599, %v2596
    %v2603 = vadd.f32 %v2481, 1.0
    %v2604 = vlog2.pop %v2603
    %v2605 = vmul.f32 %v2604, 0.6931472
    %v2606 = vmul.f32 -0.5, %v2481
    %v2607 = vadd.f32 %v2606, 1.0
    %v2608 = vmul.f32 %v2607, %v2481
    %v2609 = vand.u32 2147483647, %v2481
    %vm2610 = vcmp.lt.f32.partialorder %v2609, 0.0004427343
    %v2611 = vsel %vm2610, %v2608, %v2605
    %v2612 = vadd.f32 %v2483, 1.0
    %v2613 = vlog2.pop %v2612
    %v2614 = vmul.f32 %v2613, 0.6931472
    %v2615 = vmul.f32 -0.5, %v2483
    %v2616 = vadd.f32 %v2615, 1.0
    %v2617 = vmul.f32 %v2616, %v2483
    %v2618 = vand.u32 2147483647, %v2483
    %vm2619 = vcmp.lt.f32.partialorder %v2618, 0.0004427343
    %v2620 = vsel %vm2619, %v2617, %v2614
    %v2621 = vadd.f32 %v2485, 1.0
    %v2622 = vlog2.pop %v2621
    %v2623 = vmul.f32 %v2622, 0.6931472
    %v2624 = vmul.f32 -0.5, %v2485
    %v2625 = vadd.f32 %v2624, 1.0
    %v2626 = vmul.f32 %v2625, %v2485
    %v2627 = vand.u32 2147483647, %v2485
    %vm2628 = vcmp.lt.f32.partialorder %v2627, 0.0004427343
    %v2629 = vsel %vm2628, %v2626, %v2623
    %v2630 = vmul.f32 %v2494, 0.01
    %v2631 = vmul.f32 %v2503, 0.01
    %v2632 = vmul.f32 %v2512, 0.01
    %v2633 = vmul.f32 %v2521, 0.01
    %v2634 = vmul.f32 %v2530, 0.01
    %v2635 = vmul.f32 %v2539, 0.01
    %v2636 = vmul.f32 %v2548, 0.01
    %v2637 = vmul.f32 %v2557, 0.01
    %v2638 = vmul.f32 %v2566, 0.01
    %v2639 = vmul.f32 %v2575, 0.01
    %v2640 = vmul.f32 %v2584, 0.01
    %v2641 = vmul.f32 %v2593, 0.01
    %v2642 = vmul.f32 %v2602, 0.01
    %v2643 = vmul.f32 %v2611, 0.01
    %v2644 = vmul.f32 %v2620, 0.01
    %v2645 = vmul.f32 %v2629, 0.01
    %v2646 = vsel %vm2438, %v2390, %v2630
    %v2647 = vsel %vm2439, %v2391, %v2631
    %v2648 = vsel %vm2440, %v2392, %v2632
    %v2649 = vsel %vm2441, %v2393, %v2633
    %v2650 = vsel %vm2442, %v2394, %v2634
    %v2651 = vsel %vm2443, %v2395, %v2635
    %v2652 = vsel %vm2444, %v2396, %v2636
    %v2653 = vsel %vm2445, %v2397, %v2637
    %v2654 = vsel %vm2446, %v2398, %v2638
    %v2655 = vsel %vm2447, %v2399, %v2639
    %v2656 = vsel %vm2448, %v2400, %v2640
    %v2657 = vsel %vm2449, %v2401, %v2641
    %v2658 = vsel %vm2450, %v2402, %v2642
    %v2659 = vsel %vm2451, %v2403, %v2643
    %v2660 = vsel %vm2452, %v2404, %v2644
    %v2661 = vsel %vm2453, %v2405, %v2645
    %v2662 = vld [vmem:[%s6] sm:$0xff]
    %v2663 = vld [vmem:[%s6 + $0x8] sm:$0xff]
    %v2664 = vld [vmem:[%s6 + $0x10] sm:$0xff]
    %v2665 = vld [vmem:[%s6 + $0x18] sm:$0xff]
    %v2666 = vld [vmem:[%s13] sm:$0xff]
    %v2667 = vld [vmem:[%s13 + $0x8] sm:$0xff]
    %v2668 = vld [vmem:[%s13 + $0x10] sm:$0xff]
    %v2669 = vld [vmem:[%s13 + $0x18] sm:$0xff]
    %2671 = vset.pattern.permute.xlu0 0
    %2672 = vperm.xlu0 %2671, %v2666
    %v2673 = vpop.permute.xlu0 %2672
    %2676 = vset.pattern.permute.xlu0 0
    %2677 = vperm.xlu0 %2676, %v2667
    %v2678 = vpop.permute.xlu0 %2677
    %2681 = vset.pattern.permute.xlu0 0
    %2682 = vperm.xlu0 %2681, %v2668
    %v2683 = vpop.permute.xlu0 %2682
    %2686 = vset.pattern.permute.xlu0 0
    %2687 = vperm.xlu0 %2686, %v2669
    %v2688 = vpop.permute.xlu0 %2687
    %v2691 = vsel %vm569, %v2662, 0
    %v2694 = vsel %vm569, %v2663, 0
    %v2697 = vsel %vm569, %v2664, 0
    %v2700 = vsel %vm569, %v2665, 0
    %2702 = vmatprep.subr.mxu0 %v2647
    %2703 = vmatpush1.msra.mxu0 %v2646
    %2704 = vmatprep.subr.mxu0 %v2651
    %2705 = vmatpush1.msra.mxu0 %v2650
    %2706 = vmatprep.subr.mxu0 %v2655
    %2707 = vmatpush1.msra.mxu0 %v2654
    %2708 = vmatprep.subr.mxu0 %v2659
    %2709 = vmatpush1.msra.mxu0 %v2658
    %2710 = vmatprep.subr.mxu0 0.0
    %2711 = vmatpush1.msra.mxu0 0.0
    %2712 = vmatprep.subr.mxu0 0.0
    %2713 = vmatpush1.msra.mxu0 0.0
    %2714 = vmatprep.subr.mxu0 0.0
    %2715 = vmatpush1.msra.mxu0 0.0
    %2716 = vmatprep.subr.mxu0 0.0
    %2717 = vmatpush1.msra.mxu0 0.0
    %2718 = vmatprep.subr.mxu0 0.0
    %2719 = vmatpush1.msra.mxu0 0.0
    %2720 = vmatprep.subr.mxu0 0.0
    %2721 = vmatpush1.msra.mxu0 0.0
    %2722 = vmatprep.subr.mxu0 0.0
    %2723 = vmatpush1.msra.mxu0 0.0
    %2724 = vmatprep.subr.mxu0 0.0
    %2725 = vmatpush1.msra.mxu0 0.0
    %2726 = vmatprep.subr.mxu0 0.0
    %2727 = vmatpush1.msra.mxu0 0.0
    %2728 = vmatprep.subr.mxu0 0.0
    %2729 = vmatpush1.msra.mxu0 0.0
    %2730 = vmatprep.subr.mxu0 0.0
    %2731 = vmatpush1.msra.mxu0 0.0
    %2732 = vmatprep.subr.mxu0 0.0
    %2733 = vmatpush1.msra.mxu0 0.0
    %2734 = vmatprep.subr.mxu0 0.0
    %2735 = vmatpush1.msra.mxu0 0.0
    %2736 = vmatprep.subr.mxu0 0.0
    %2737 = vmatpush1.msra.mxu0 0.0
    %2738 = vmatprep.subr.mxu0 0.0
    %2739 = vmatpush1.msra.mxu0 0.0
    %2740 = vmatprep.subr.mxu0 0.0
    %2741 = vmatpush1.msra.mxu0 0.0
    %2742 = vmatprep.subr.mxu0 0.0
    %2743 = vmatpush1.msra.mxu0 0.0
    %2744 = vmatprep.subr.mxu0 0.0
    %2745 = vmatpush1.msra.mxu0 0.0
    %2746 = vmatprep.subr.mxu0 0.0
    %2747 = vmatpush1.msra.mxu0 0.0
    %2748 = vmatprep.subr.mxu0 0.0
    %2749 = vmatpush1.msra.mxu0 0.0
    %2750 = vmatprep.subr.mxu0 0.0
    %2751 = vmatpush1.msra.mxu0 0.0
    %2752 = vmatprep.subr.mxu0 0.0
    %2753 = vmatpush1.msra.mxu0 0.0
    %2754 = vmatprep.subr.mxu0 0.0
    %2755 = vmatpush1.msra.mxu0 0.0
    %2756 = vmatprep.subr.mxu0 0.0
    %2757 = vmatpush1.msra.mxu0 0.0
    %2758 = vmatprep.subr.mxu0 0.0
    %2759 = vmatpush1.msra.mxu0 0.0
    %2760 = vmatprep.subr.mxu0 0.0
    %2761 = vmatpush1.msra.mxu0 0.0
    %2762 = vmatprep.subr.mxu0 0.0
    %2763 = vmatpush1.msra.mxu0 0.0
    %2764 = vmatprep.subr.mxu0 0.0
    %2765 = vmatpush1.msra.mxu0 0.0
    %2766 = vmatprep.mubr.f32.mxu0 0.0
    %2767 = vmatmul.mubr.f32.gmra.mrb[0].mxu0 %v2691
    %v2768 = vpop.f32.mrb[0].mxu0
    %v2769 = vadd.f32 %v2673, %v2768
    %v2770 = vpop.f32.mrb[0].mxu0
    %v2771 = vadd.f32 %v2673, %v2770
    %2772 = vmatprep.mubr.f32.mxu0 0.0
    %2773 = vmatmul.mubr.f32.gmra.mrb[0].mxu0 %v2694
    %v2774 = vpop.f32.mrb[0].mxu0
    %v2775 = vadd.f32 %v2678, %v2774
    %v2776 = vpop.f32.mrb[0].mxu0
    %v2777 = vadd.f32 %v2678, %v2776
    %2778 = vmatprep.mubr.f32.mxu0 0.0
    %2779 = vmatmul.mubr.f32.gmra.mrb[0].mxu0 %v2697
    %v2780 = vpop.f32.mrb[0].mxu0
    %v2781 = vadd.f32 %v2683, %v2780
    %v2782 = vpop.f32.mrb[0].mxu0
    %v2783 = vadd.f32 %v2683, %v2782
    %2784 = vmatprep.mubr.f32.mxu0 0.0
    %2785 = vmatmul.mubr.f32.gmra.mrb[0].mxu0 %v2700
    %v2786 = vpop.f32.mrb[0].mxu0
    %v2787 = vadd.f32 %v2688, %v2786
    %v2788 = vpop.f32.mrb[0].mxu0
    %v2789 = vadd.f32 %v2688, %v2788
    %2790 = vdwg.mxu0
    %2791 = vmatprep.subr.mxu0 %v2649
    %2792 = vmatpush1.msra.mxu0 %v2648
    %2793 = vmatprep.subr.mxu0 %v2653
    %2794 = vmatpush1.msra.mxu0 %v2652
    %2795 = vmatprep.subr.mxu0 %v2657
    %2796 = vmatpush1.msra.mxu0 %v2656
    %2797 = vmatprep.subr.mxu0 %v2661
    %2798 = vmatpush1.msra.mxu0 %v2660
    %2799 = vmatprep.subr.mxu0 0.0
    %2800 = vmatpush1.msra.mxu0 0.0
    %2801 = vmatprep.subr.mxu0 0.0
    %2802 = vmatpush1.msra.mxu0 0.0
    %2803 = vmatprep.subr.mxu0 0.0
    %2804 = vmatpush1.msra.mxu0 0.0
    %2805 = vmatprep.subr.mxu0 0.0
    %2806 = vmatpush1.msra.mxu0 0.0
    %2807 = vmatprep.subr.mxu0 0.0
    %2808 = vmatpush1.msra.mxu0 0.0
    %2809 = vmatprep.subr.mxu0 0.0
    %2810 = vmatpush1.msra.mxu0 0.0
    %2811 = vmatprep.subr.mxu0 0.0
    %2812 = vmatpush1.msra.mxu0 0.0
    %2813 = vmatprep.subr.mxu0 0.0
    %2814 = vmatpush1.msra.mxu0 0.0
    %2815 = vmatprep.subr.mxu0 0.0
    %2816 = vmatpush1.msra.mxu0 0.0
    %2817 = vmatprep.subr.mxu0 0.0
    %2818 = vmatpush1.msra.mxu0 0.0
    %2819 = vmatprep.subr.mxu0 0.0
    %2820 = vmatpush1.msra.mxu0 0.0
    %2821 = vmatprep.subr.mxu0 0.0
    %2822 = vmatpush1.msra.mxu0 0.0
    %2823 = vmatprep.subr.mxu0 0.0
    %2824 = vmatpush1.msra.mxu0 0.0
    %2825 = vmatprep.subr.mxu0 0.0
    %2826 = vmatpush1.msra.mxu0 0.0
    %2827 = vmatprep.subr.mxu0 0.0
    %2828 = vmatpush1.msra.mxu0 0.0
    %2829 = vmatprep.subr.mxu0 0.0
    %2830 = vmatpush1.msra.mxu0 0.0
    %2831 = vmatprep.subr.mxu0 0.0
    %2832 = vmatpush1.msra.mxu0 0.0
    %2833 = vmatprep.subr.mxu0 0.0
    %2834 = vmatpush1.msra.mxu0 0.0
    %2835 = vmatprep.subr.mxu0 0.0
    %2836 = vmatpush1.msra.mxu0 0.0
    %2837 = vmatprep.subr.mxu0 0.0
    %2838 = vmatpush1.msra.mxu0 0.0
    %2839 = vmatprep.subr.mxu0 0.0
    %2840 = vmatpush1.msra.mxu0 0.0
    %2841 = vmatprep.subr.mxu0 0.0
    %2842 = vmatpush1.msra.mxu0 0.0
    %2843 = vmatprep.subr.mxu0 0.0
    %2844 = vmatpush1.msra.mxu0 0.0
    %2845 = vmatprep.subr.mxu0 0.0
    %2846 = vmatpush1.msra.mxu0 0.0
    %2847 = vmatprep.subr.mxu0 0.0
    %2848 = vmatpush1.msra.mxu0 0.0
    %2849 = vmatprep.subr.mxu0 0.0
    %2850 = vmatpush1.msra.mxu0 0.0
    %2851 = vmatprep.subr.mxu0 0.0
    %2852 = vmatpush1.msra.mxu0 0.0
    %2853 = vmatprep.subr.mxu0 0.0
    %2854 = vmatpush1.msra.mxu0 0.0
    %2855 = vmatprep.mubr.f32.mxu0 0.0
    %2856 = vmatmul.mubr.f32.gmra.mrb[0].mxu0 %v2691
    %v2857 = vpop.f32.mrb[0].mxu0
    %v2858 = vadd.f32 %v2673, %v2857
    %v2859 = vpop.f32.mrb[0].mxu0
    %v2860 = vadd.f32 %v2673, %v2859
    %2861 = vmatprep.mubr.f32.mxu0 0.0
    %2862 = vmatmul.mubr.f32.gmra.mrb[0].mxu0 %v2694
    %v2863 = vpop.f32.mrb[0].mxu0
    %v2864 = vadd.f32 %v2678, %v2863
    %v2865 = vpop.f32.mrb[0].mxu0
    %v2866 = vadd.f32 %v2678, %v2865
    %2867 = vmatprep.mubr.f32.mxu0 0.0
    %2868 = vmatmul.mubr.f32.gmra.mrb[0].mxu0 %v2697
    %v2869 = vpop.f32.mrb[0].mxu0
    %v2870 = vadd.f32 %v2683, %v2869
    %v2871 = vpop.f32.mrb[0].mxu0
    %v2872 = vadd.f32 %v2683, %v2871
    %2873 = vmatprep.mubr.f32.mxu0 0.0
    %2874 = vmatmul.mubr.f32.gmra.mrb[0].mxu0 %v2700
    %v2875 = vpop.f32.mrb[0].mxu0
    %v2876 = vadd.f32 %v2688, %v2875
    %v2877 = vpop.f32.mrb[0].mxu0
    %v2878 = vadd.f32 %v2688, %v2877
    %2879 = vdwg.mxu0
    %v2880 = vmul.f32 %v2769, 100.0
    %v2881 = vmul.f32 %v2771, 100.0
    %v2882 = vmul.f32 %v2858, 100.0
    %v2883 = vmul.f32 %v2860, 100.0
    %v2884 = vmul.f32 %v2775, 100.0
    %v2885 = vmul.f32 %v2777, 100.0
    %v2886 = vmul.f32 %v2864, 100.0
    %v2887 = vmul.f32 %v2866, 100.0
    %v2888 = vmul.f32 %v2781, 100.0
    %v2889 = vmul.f32 %v2783, 100.0
    %v2890 = vmul.f32 %v2870, 100.0
    %v2891 = vmul.f32 %v2872, 100.0
    %v2892 = vmul.f32 %v2787, 100.0
    %v2893 = vmul.f32 %v2789, 100.0
    %v2894 = vmul.f32 %v2876, 100.0
    %v2895 = vmul.f32 %v2878, 100.0
    %v2896 = vmin.f32 %v2880, 20.0
    %v2897 = vmin.f32 %v2881, 20.0
    %v2898 = vmin.f32 %v2882, 20.0
    %v2899 = vmin.f32 %v2883, 20.0
    %v2900 = vmin.f32 %v2884, 20.0
    %v2901 = vmin.f32 %v2885, 20.0
    %v2902 = vmin.f32 %v2886, 20.0
    %v2903 = vmin.f32 %v2887, 20.0
    %v2904 = vmin.f32 %v2888, 20.0
    %v2905 = vmin.f32 %v2889, 20.0
    %v2906 = vmin.f32 %v2890, 20.0
    %v2907 = vmin.f32 %v2891, 20.0
    %v2908 = vmin.f32 %v2892, 20.0
    %v2909 = vmin.f32 %v2893, 20.0
    %v2910 = vmin.f32 %v2894, 20.0
    %v2911 = vmin.f32 %v2895, 20.0
    %vm2912 = vcmp.gt.f32.partialorder %v2880, 20.0
    %vm2913 = vcmp.gt.f32.partialorder %v2881, 20.0
    %vm2914 = vcmp.gt.f32.partialorder %v2882, 20.0
    %vm2915 = vcmp.gt.f32.partialorder %v2883, 20.0
    %vm2916 = vcmp.gt.f32.partialorder %v2884, 20.0
    %vm2917 = vcmp.gt.f32.partialorder %v2885, 20.0
    %vm2918 = vcmp.gt.f32.partialorder %v2886, 20.0
    %vm2919 = vcmp.gt.f32.partialorder %v2887, 20.0
    %vm2920 = vcmp.gt.f32.partialorder %v2888, 20.0
    %vm2921 = vcmp.gt.f32.partialorder %v2889, 20.0
    %vm2922 = vcmp.gt.f32.partialorder %v2890, 20.0
    %vm2923 = vcmp.gt.f32.partialorder %v2891, 20.0
    %vm2924 = vcmp.gt.f32.partialorder %v2892, 20.0
    %vm2925 = vcmp.gt.f32.partialorder %v2893, 20.0
    %vm2926 = vcmp.gt.f32.partialorder %v2894, 20.0
    %vm2927 = vcmp.gt.f32.partialorder %v2895, 20.0
    %v2928 = vmul.f32 %v2896, 1.442695
    %v2929 = vpow.pop %v2928
    %v2930 = vmul.f32 %v2897, 1.442695
    %v2931 = vpow.pop %v2930
    %v2932 = vmul.f32 %v2898, 1.442695
    %v2933 = vpow.pop %v2932
    %v2934 = vmul.f32 %v2899, 1.442695
    %v2935 = vpow.pop %v2934
    %v2936 = vmul.f32 %v2900, 1.442695
    %v2937 = vpow.pop %v2936
    %v2938 = vmul.f32 %v2901, 1.442695
    %v2939 = vpow.pop %v2938
    %v2940 = vmul.f32 %v2902, 1.442695
    %v2941 = vpow.pop %v2940
    %v2942 = vmul.f32 %v2903, 1.442695
    %v2943 = vpow.pop %v2942
    %v2944 = vmul.f32 %v2904, 1.442695
    %v2945 = vpow.pop %v2944
    %v2946 = vmul.f32 %v2905, 1.442695
    %v2947 = vpow.pop %v2946
    %v2948 = vmul.f32 %v2906, 1.442695
    %v2949 = vpow.pop %v2948
    %v2950 = vmul.f32 %v2907, 1.442695
    %v2951 = vpow.pop %v2950
    %v2952 = vmul.f32 %v2908, 1.442695
    %v2953 = vpow.pop %v2952
    %v2954 = vmul.f32 %v2909, 1.442695
    %v2955 = vpow.pop %v2954
    %v2956 = vmul.f32 %v2910, 1.442695
    %v2957 = vpow.pop %v2956
    %v2958 = vmul.f32 %v2911, 1.442695
    %v2959 = vpow.pop %v2958
    %v2960 = vadd.f32 %v2929, 1.0
    %v2961 = vlog2.pop %v2960
    %v2962 = vmul.f32 %v2961, 0.6931472
    %v2963 = vmul.f32 -0.5, %v2929
    %v2964 = vadd.f32 %v2963, 1.0
    %v2965 = vmul.f32 %v2964, %v2929
    %v2966 = vand.u32 2147483647, %v2929
    %vm2967 = vcmp.lt.f32.partialorder %v2966, 0.0004427343
    %v2968 = vsel %vm2967, %v2965, %v2962
    %v2969 = vadd.f32 %v2931, 1.0
    %v2970 = vlog2.pop %v2969
    %v2971 = vmul.f32 %v2970, 0.6931472
    %v2972 = vmul.f32 -0.5, %v2931
    %v2973 = vadd.f32 %v2972, 1.0
    %v2974 = vmul.f32 %v2973, %v2931
    %v2975 = vand.u32 2147483647, %v2931
    %vm2976 = vcmp.lt.f32.partialorder %v2975, 0.0004427343
    %v2977 = vsel %vm2976, %v2974, %v2971
    %v2978 = vadd.f32 %v2933, 1.0
    %v2979 = vlog2.pop %v2978
    %v2980 = vmul.f32 %v2979, 0.6931472
    %v2981 = vmul.f32 -0.5, %v2933
    %v2982 = vadd.f32 %v2981, 1.0
    %v2983 = vmul.f32 %v2982, %v2933
    %v2984 = vand.u32 2147483647, %v2933
    %vm2985 = vcmp.lt.f32.partialorder %v2984, 0.0004427343
    %v2986 = vsel %vm2985, %v2983, %v2980
    %v2987 = vadd.f32 %v2935, 1.0
    %v2988 = vlog2.pop %v2987
    %v2989 = vmul.f32 %v2988, 0.6931472
    %v2990 = vmul.f32 -0.5, %v2935
    %v2991 = vadd.f32 %v2990, 1.0
    %v2992 = vmul.f32 %v2991, %v2935
    %v2993 = vand.u32 2147483647, %v2935
    %vm2994 = vcmp.lt.f32.partialorder %v2993, 0.0004427343
    %v2995 = vsel %vm2994, %v2992, %v2989
    %v2996 = vadd.f32 %v2937, 1.0
    %v2997 = vlog2.pop %v2996
    %v2998 = vmul.f32 %v2997, 0.6931472
    %v2999 = vmul.f32 -0.5, %v2937
    %v3000 = vadd.f32 %v2999, 1.0
    %v3001 = vmul.f32 %v3000, %v2937
    %v3002 = vand.u32 2147483647, %v2937
    %vm3003 = vcmp.lt.f32.partialorder %v3002, 0.0004427343
    %v3004 = vsel %vm3003, %v3001, %v2998
    %v3005 = vadd.f32 %v2939, 1.0
    %v3006 = vlog2.pop %v3005
    %v3007 = vmul.f32 %v3006, 0.6931472
    %v3008 = vmul.f32 -0.5, %v2939
    %v3009 = vadd.f32 %v3008, 1.0
    %v3010 = vmul.f32 %v3009, %v2939
    %v3011 = vand.u32 2147483647, %v2939
    %vm3012 = vcmp.lt.f32.partialorder %v3011, 0.0004427343
    %v3013 = vsel %vm3012, %v3010, %v3007
    %v3014 = vadd.f32 %v2941, 1.0
    %v3015 = vlog2.pop %v3014
    %v3016 = vmul.f32 %v3015, 0.6931472
    %v3017 = vmul.f32 -0.5, %v2941
    %v3018 = vadd.f32 %v3017, 1.0
    %v3019 = vmul.f32 %v3018, %v2941
    %v3020 = vand.u32 2147483647, %v2941
    %vm3021 = vcmp.lt.f32.partialorder %v3020, 0.0004427343
    %v3022 = vsel %vm3021, %v3019, %v3016
    %v3023 = vadd.f32 %v2943, 1.0
    %v3024 = vlog2.pop %v3023
    %v3025 = vmul.f32 %v3024, 0.6931472
    %v3026 = vmul.f32 -0.5, %v2943
    %v3027 = vadd.f32 %v3026, 1.0
    %v3028 = vmul.f32 %v3027, %v2943
    %v3029 = vand.u32 2147483647, %v2943
    %vm3030 = vcmp.lt.f32.partialorder %v3029, 0.0004427343
    %v3031 = vsel %vm3030, %v3028, %v3025
    %v3032 = vadd.f32 %v2945, 1.0
    %v3033 = vlog2.pop %v3032
    %v3034 = vmul.f32 %v3033, 0.6931472
    %v3035 = vmul.f32 -0.5, %v2945
    %v3036 = vadd.f32 %v3035, 1.0
    %v3037 = vmul.f32 %v3036, %v2945
    %v3038 = vand.u32 2147483647, %v2945
    %vm3039 = vcmp.lt.f32.partialorder %v3038, 0.0004427343
    %v3040 = vsel %vm3039, %v3037, %v3034
    %v3041 = vadd.f32 %v2947, 1.0
    %v3042 = vlog2.pop %v3041
    %v3043 = vmul.f32 %v3042, 0.6931472
    %v3044 = vmul.f32 -0.5, %v2947
    %v3045 = vadd.f32 %v3044, 1.0
    %v3046 = vmul.f32 %v3045, %v2947
    %v3047 = vand.u32 2147483647, %v2947
    %vm3048 = vcmp.lt.f32.partialorder %v3047, 0.0004427343
    %v3049 = vsel %vm3048, %v3046, %v3043
    %v3050 = vadd.f32 %v2949, 1.0
    %v3051 = vlog2.pop %v3050
    %v3052 = vmul.f32 %v3051, 0.6931472
    %v3053 = vmul.f32 -0.5, %v2949
    %v3054 = vadd.f32 %v3053, 1.0
    %v3055 = vmul.f32 %v3054, %v2949
    %v3056 = vand.u32 2147483647, %v2949
    %vm3057 = vcmp.lt.f32.partialorder %v3056, 0.0004427343
    %v3058 = vsel %vm3057, %v3055, %v3052
    %v3059 = vadd.f32 %v2951, 1.0
    %v3060 = vlog2.pop %v3059
    %v3061 = vmul.f32 %v3060, 0.6931472
    %v3062 = vmul.f32 -0.5, %v2951
    %v3063 = vadd.f32 %v3062, 1.0
    %v3064 = vmul.f32 %v3063, %v2951
    %v3065 = vand.u32 2147483647, %v2951
    %vm3066 = vcmp.lt.f32.partialorder %v3065, 0.0004427343
    %v3067 = vsel %vm3066, %v3064, %v3061
    %v3068 = vadd.f32 %v2953, 1.0
    %v3069 = vlog2.pop %v3068
    %v3070 = vmul.f32 %v3069, 0.6931472
    %v3071 = vmul.f32 -0.5, %v2953
    %v3072 = vadd.f32 %v3071, 1.0
    %v3073 = vmul.f32 %v3072, %v2953
    %v3074 = vand.u32 2147483647, %v2953
    %vm3075 = vcmp.lt.f32.partialorder %v3074, 0.0004427343
    %v3076 = vsel %vm3075, %v3073, %v3070
    %v3077 = vadd.f32 %v2955, 1.0
    %v3078 = vlog2.pop %v3077
    %v3079 = vmul.f32 %v3078, 0.6931472
    %v3080 = vmul.f32 -0.5, %v2955
    %v3081 = vadd.f32 %v3080, 1.0
    %v3082 = vmul.f32 %v3081, %v2955
    %v3083 = vand.u32 2147483647, %v2955
    %vm3084 = vcmp.lt.f32.partialorder %v3083, 0.0004427343
    %v3085 = vsel %vm3084, %v3082, %v3079
    %v3086 = vadd.f32 %v2957, 1.0
    %v3087 = vlog2.pop %v3086
    %v3088 = vmul.f32 %v3087, 0.6931472
    %v3089 = vmul.f32 -0.5, %v2957
    %v3090 = vadd.f32 %v3089, 1.0
    %v3091 = vmul.f32 %v3090, %v2957
    %v3092 = vand.u32 2147483647, %v2957
    %vm3093 = vcmp.lt.f32.partialorder %v3092, 0.0004427343
    %v3094 = vsel %vm3093, %v3091, %v3088
    %v3095 = vadd.f32 %v2959, 1.0
    %v3096 = vlog2.pop %v3095
    %v3097 = vmul.f32 %v3096, 0.6931472
    %v3098 = vmul.f32 -0.5, %v2959
    %v3099 = vadd.f32 %v3098, 1.0
    %v3100 = vmul.f32 %v3099, %v2959
    %v3101 = vand.u32 2147483647, %v2959
    %vm3102 = vcmp.lt.f32.partialorder %v3101, 0.0004427343
    %v3103 = vsel %vm3102, %v3100, %v3097
    %v3104 = vmul.f32 %v2968, 0.01
    %v3105 = vmul.f32 %v2977, 0.01
    %v3106 = vmul.f32 %v2986, 0.01
    %v3107 = vmul.f32 %v2995, 0.01
    %v3108 = vmul.f32 %v3004, 0.01
    %v3109 = vmul.f32 %v3013, 0.01
    %v3110 = vmul.f32 %v3022, 0.01
    %v3111 = vmul.f32 %v3031, 0.01
    %v3112 = vmul.f32 %v3040, 0.01
    %v3113 = vmul.f32 %v3049, 0.01
    %v3114 = vmul.f32 %v3058, 0.01
    %v3115 = vmul.f32 %v3067, 0.01
    %v3116 = vmul.f32 %v3076, 0.01
    %v3117 = vmul.f32 %v3085, 0.01
    %v3118 = vmul.f32 %v3094, 0.01
    %v3119 = vmul.f32 %v3103, 0.01
    %v3120 = vsel %vm2912, %v2769, %v3104
    %v3121 = vsel %vm2913, %v2771, %v3105
    %v3122 = vsel %vm2914, %v2858, %v3106
    %v3123 = vsel %vm2915, %v2860, %v3107
    %v3124 = vsel %vm2916, %v2775, %v3108
    %v3125 = vsel %vm2917, %v2777, %v3109
    %v3126 = vsel %vm2918, %v2864, %v3110
    %v3127 = vsel %vm2919, %v2866, %v3111
    %v3128 = vsel %vm2920, %v2781, %v3112
    %v3129 = vsel %vm2921, %v2783, %v3113
    %v3130 = vsel %vm2922, %v2870, %v3114
    %v3131 = vsel %vm2923, %v2872, %v3115
    %v3132 = vsel %vm2924, %v2787, %v3116
    %v3133 = vsel %vm2925, %v2789, %v3117
    %v3134 = vsel %vm2926, %v2876, %v3118
    %v3135 = vsel %vm2927, %v2878, %v3119
    %v3136 = vld [vmem:[%s7] sm:$0x1f]
    %v3137 = vld [vmem:[%s14] sm:$0x1f]
    %3139 = vset.pattern.permute.xlu0 0
    %3140 = vperm.xlu0 %3139, %v3137
    %v3141 = vpop.permute.xlu0 %3140
    %v3144 = vsel %vm569, %v3136, 0
    %3146 = vmatprep.subr.mxu0 %v3121
    %3147 = vmatpush1.msra.mxu0 %v3120
    %3148 = vmatprep.subr.mxu0 %v3125
    %3149 = vmatpush1.msra.mxu0 %v3124
    %3150 = vmatprep.subr.mxu0 %v3129
    %3151 = vmatpush1.msra.mxu0 %v3128
    %3152 = vmatprep.subr.mxu0 %v3133
    %3153 = vmatpush1.msra.mxu0 %v3132
    %3154 = vmatprep.subr.mxu0 0.0
    %3155 = vmatpush1.msra.mxu0 0.0
    %3156 = vmatprep.subr.mxu0 0.0
    %3157 = vmatpush1.msra.mxu0 0.0
    %3158 = vmatprep.subr.mxu0 0.0
    %3159 = vmatpush1.msra.mxu0 0.0
    %3160 = vmatprep.subr.mxu0 0.0
    %3161 = vmatpush1.msra.mxu0 0.0
    %3162 = vmatprep.subr.mxu0 0.0
    %3163 = vmatpush1.msra.mxu0 0.0
    %3164 = vmatprep.subr.mxu0 0.0
    %3165 = vmatpush1.msra.mxu0 0.0
    %3166 = vmatprep.subr.mxu0 0.0
    %3167 = vmatpush1.msra.mxu0 0.0
    %3168 = vmatprep.subr.mxu0 0.0
    %3169 = vmatpush1.msra.mxu0 0.0
    %3170 = vmatprep.subr.mxu0 0.0
    %3171 = vmatpush1.msra.mxu0 0.0
    %3172 = vmatprep.subr.mxu0 0.0
    %3173 = vmatpush1.msra.mxu0 0.0
    %3174 = vmatprep.subr.mxu0 0.0
    %3175 = vmatpush1.msra.mxu0 0.0
    %3176 = vmatprep.subr.mxu0 0.0
    %3177 = vmatpush1.msra.mxu0 0.0
    %3178 = vmatprep.subr.mxu0 0.0
    %3179 = vmatpush1.msra.mxu0 0.0
    %3180 = vmatprep.subr.mxu0 0.0
    %3181 = vmatpush1.msra.mxu0 0.0
    %3182 = vmatprep.subr.mxu0 0.0
    %3183 = vmatpush1.msra.mxu0 0.0
    %3184 = vmatprep.subr.mxu0 0.0
    %3185 = vmatpush1.msra.mxu0 0.0
    %3186 = vmatprep.subr.mxu0 0.0
    %3187 = vmatpush1.msra.mxu0 0.0
    %3188 = vmatprep.subr.mxu0 0.0
    %3189 = vmatpush1.msra.mxu0 0.0
    %3190 = vmatprep.subr.mxu0 0.0
    %3191 = vmatpush1.msra.mxu0 0.0
    %3192 = vmatprep.subr.mxu0 0.0
    %3193 = vmatpush1.msra.mxu0 0.0
    %3194 = vmatprep.subr.mxu0 0.0
    %3195 = vmatpush1.msra.mxu0 0.0
    %3196 = vmatprep.subr.mxu0 0.0
    %3197 = vmatpush1.msra.mxu0 0.0
    %3198 = vmatprep.subr.mxu0 0.0
    %3199 = vmatpush1.msra.mxu0 0.0
    %3200 = vmatprep.subr.mxu0 0.0
    %3201 = vmatpush1.msra.mxu0 0.0
    %3202 = vmatprep.subr.mxu0 0.0
    %3203 = vmatpush1.msra.mxu0 0.0
    %3204 = vmatprep.subr.mxu0 0.0
    %3205 = vmatpush1.msra.mxu0 0.0
    %3206 = vmatprep.subr.mxu0 0.0
    %3207 = vmatpush1.msra.mxu0 0.0
    %3208 = vmatprep.subr.mxu0 0.0
    %3209 = vmatpush1.msra.mxu0 0.0
    %3210 = vmatprep.mubr.f32.mxu0 0.0
    %3211 = vmatmul.mubr.f32.gmra.mrb[0].mxu0 %v3144
    %v3212 = vpop.f32.mrb[0].mxu0
    %v3213 = vadd.f32 %v3141, %v3212
    %v3214 = vpop.f32.mrb[0].mxu0
    %v3215 = vadd.f32 %v3141, %v3214
    %3216 = vdwg.mxu0
    %3217 = vmatprep.subr.mxu0 %v3123
    %3218 = vmatpush1.msra.mxu0 %v3122
    %3219 = vmatprep.subr.mxu0 %v3127
    %3220 = vmatpush1.msra.mxu0 %v3126
    %3221 = vmatprep.subr.mxu0 %v3131
    %3222 = vmatpush1.msra.mxu0 %v3130
    %3223 = vmatprep.subr.mxu0 %v3135
    %3224 = vmatpush1.msra.mxu0 %v3134
    %3225 = vmatprep.subr.mxu0 0.0
    %3226 = vmatpush1.msra.mxu0 0.0
    %3227 = vmatprep.subr.mxu0 0.0
    %3228 = vmatpush1.msra.mxu0 0.0
    %3229 = vmatprep.subr.mxu0 0.0
    %3230 = vmatpush1.msra.mxu0 0.0
    %3231 = vmatprep.subr.mxu0 0.0
    %3232 = vmatpush1.msra.mxu0 0.0
    %3233 = vmatprep.subr.mxu0 0.0
    %3234 = vmatpush1.msra.mxu0 0.0
    %3235 = vmatprep.subr.mxu0 0.0
    %3236 = vmatpush1.msra.mxu0 0.0
    %3237 = vmatprep.subr.mxu0 0.0
    %3238 = vmatpush1.msra.mxu0 0.0
    %3239 = vmatprep.subr.mxu0 0.0
    %3240 = vmatpush1.msra.mxu0 0.0
    %3241 = vmatprep.subr.mxu0 0.0
    %3242 = vmatpush1.msra.mxu0 0.0
    %3243 = vmatprep.subr.mxu0 0.0
    %3244 = vmatpush1.msra.mxu0 0.0
    %3245 = vmatprep.subr.mxu0 0.0
    %3246 = vmatpush1.msra.mxu0 0.0
    %3247 = vmatprep.subr.mxu0 0.0
    %3248 = vmatpush1.msra.mxu0 0.0
    %3249 = vmatprep.subr.mxu0 0.0
    %3250 = vmatpush1.msra.mxu0 0.0
    %3251 = vmatprep.subr.mxu0 0.0
    %3252 = vmatpush1.msra.mxu0 0.0
    %3253 = vmatprep.subr.mxu0 0.0
    %3254 = vmatpush1.msra.mxu0 0.0
    %3255 = vmatprep.subr.mxu0 0.0
    %3256 = vmatpush1.msra.mxu0 0.0
    %3257 = vmatprep.subr.mxu0 0.0
    %3258 = vmatpush1.msra.mxu0 0.0
    %3259 = vmatprep.subr.mxu0 0.0
    %3260 = vmatpush1.msra.mxu0 0.0
    %3261 = vmatprep.subr.mxu0 0.0
    %3262 = vmatpush1.msra.mxu0 0.0
    %3263 = vmatprep.subr.mxu0 0.0
    %3264 = vmatpush1.msra.mxu0 0.0
    %3265 = vmatprep.subr.mxu0 0.0
    %3266 = vmatpush1.msra.mxu0 0.0
    %3267 = vmatprep.subr.mxu0 0.0
    %3268 = vmatpush1.msra.mxu0 0.0
    %3269 = vmatprep.subr.mxu0 0.0
    %3270 = vmatpush1.msra.mxu0 0.0
    %3271 = vmatprep.subr.mxu0 0.0
    %3272 = vmatpush1.msra.mxu0 0.0
    %3273 = vmatprep.subr.mxu0 0.0
    %3274 = vmatpush1.msra.mxu0 0.0
    %3275 = vmatprep.subr.mxu0 0.0
    %3276 = vmatpush1.msra.mxu0 0.0
    %3277 = vmatprep.subr.mxu0 0.0
    %3278 = vmatpush1.msra.mxu0 0.0
    %3279 = vmatprep.subr.mxu0 0.0
    %3280 = vmatpush1.msra.mxu0 0.0
    %3281 = vmatprep.mubr.f32.mxu0 0.0
    %3282 = vmatmul.mubr.f32.gmra.mrb[0].mxu0 %v3144
    %v3283 = vpop.f32.mrb[0].mxu0
    %v3284 = vadd.f32 %v3141, %v3283
    %v3285 = vpop.f32.mrb[0].mxu0
    %v3286 = vadd.f32 %v3141, %v3285
    %3287 = vdwg.mxu0
    %3288 = vst [vmem:[#allocation2] sm:$0x1f] %v3213
    %3289 = vst [vmem:[#allocation2 + $0x8] sm:$0x1f] %v3215
    %3290 = vst [vmem:[#allocation2 + $0x10] sm:$0x1f] %v3284
    %3291 = vst [vmem:[#allocation2 + $0x18] sm:$0x1f] %v3286
    // Predicated region
    $region62: #{tpu_custom_call.1} parent=1 // pred_check
      _
    $region63: #{tpu_custom_call.1} parent=1 // pred_check_branch
      %3293 = sbr.rel (0) target = $region65
    $region64: #{tpu_custom_call.1} parent=1 // pred_region
      %s3295 = ssub.s32 512, 512
      %3296 = vsyncadd [#allocation3], %s3295
      %s3298 = sshll.u32 [#allocation2], 4
      %s3299 = int_to_ptr.vmem [resolvable:$true] %s3298
      %3301 = dma.vmem_to_hbm [thread:$0]  %s3299, 512, %s15, [#allocation3]
    $region65: #{tpu_custom_call.1} parent=1 // pred_fallthru
      _
    // Predicated region
    $region66: #{tpu_custom_call.1} parent=1 // pred_check
      _
    $region67: #{tpu_custom_call.1} parent=1 // pred_check_branch
      %3303 = sbr.rel (0) target = $region69
    $region68: #{tpu_custom_call.1} parent=1 // pred_region
      %3304 = dma.done [#allocation3], 512
    $region69: #{tpu_custom_call.1} parent=1 // pred_fallthru
      _
    %3305 = vsyncpa [#allocation3], 1

</llo_original>
